<compile_context>
chip_gen: v5e
topology: v5e:2x2
jax: 0.10.0
libtpu: 0.0.40
codegen_flags: <defaults>
</compile_context>

<pallas_src>
import numpy as np
import jax
import jax.numpy as jnp
from jax.experimental import pallas as pl
from jax.experimental.pallas import tpu as pltpu

BN_EPS = 1e-5
VMEM_LIMIT = 32 * 1024 * 1024  # fits v7x's 64 MiB physical VMEM with headroom


# ------------------------------ Pallas kernels ------------------------------ #

def _l1_matmul_bn_relu_kernel(x_ref, w_ref, g_ref, b_ref, o_ref):
    """x(N,Cin) @ W(Cin, taps*C) -> per-channel BN over (N, taps) -> ReLU."""
    C = g_ref.shape[1]
    taps = o_ref.shape[1] // C
    y = jnp.dot(x_ref[...], w_ref[...], preferred_element_type=jnp.float32)
    ys = [y[:, t * C:(t + 1) * C] for t in range(taps)]          # taps x (N, C) f32
    cnt = float(taps * y.shape[0])
    s = ys[0]
    for t in range(1, taps):
        s = s + ys[t]
    mean = jnp.sum(s, axis=0, keepdims=True) / cnt               # (1, C)
    v = jnp.zeros_like(mean)
    for t in range(taps):
        d = ys[t] - mean
        v = v + jnp.sum(d * d, axis=0, keepdims=True)
    inv = jax.lax.rsqrt(v / cnt + BN_EPS)
    g = g_ref[...]
    b = b_ref[...]
    for t in range(taps):
        o_ref[:, t * C:(t + 1) * C] = jnp.maximum(
            (ys[t] - mean) * inv * g + b, 0.0).astype(o_ref.dtype)


def _phase_matmul_bn_relu_kernel(p_ref, w_ref, g_ref, b_ref, o_ref, y_ref):
    """Grid over the 4 sub-pixel phases; BN + ReLU fused at the last step."""
    ph = pl.program_id(0)
    # Dense per-phase matmul (no structural zeros), f32 accumulation.
    y_ref[ph] = jnp.dot(p_ref[...], w_ref[...], preferred_element_type=jnp.float32)

    @pl.when(ph == pl.num_programs(0) - 1)
    def _():
        P, M, C = y_ref.shape
        cnt = float(P * M)
        s = jnp.zeros((1, C), jnp.float32)
        for q in range(P):
            s = s + jnp.sum(y_ref[q], axis=0, keepdims=True)
        mean = s / cnt
        v = jnp.zeros((1, C), jnp.float32)
        for q in range(P):
            d = y_ref[q] - mean
            v = v + jnp.sum(d * d, axis=0, keepdims=True)
        inv = jax.lax.rsqrt(v / cnt + BN_EPS)
        g = g_ref[...]
        b = b_ref[...]
        for q in range(P):
            o_ref[q] = jnp.maximum(
                (y_ref[q] - mean) * inv * g + b, 0.0).astype(o_ref.dtype)


def _matmul_tanh_kernel(p_ref, w_ref, o_ref):
    y = jnp.dot(p_ref[...], w_ref[...], preferred_element_type=jnp.float32)
    o_ref[...] = jnp.tanh(y)


# ------------------------------ kernel wrappers ------------------------------ #

def _l1_call(x2, w1m, gamma, beta):
    N = x2.shape[0]
    C = gamma.shape[0]
    cols = w1m.shape[1]
    return pl.pallas_call(
        _l1_matmul_bn_relu_kernel,
        out_shape=jax.ShapeDtypeStruct((N, cols), jnp.bfloat16),
        compiler_params=pltpu.CompilerParams(vmem_limit_bytes=VMEM_LIMIT),
    )(x2, w1m, gamma.reshape(1, C), beta.reshape(1, C))


def _phase_bn_relu_call(patches, wph, gamma, beta):
    P, M, Kd = patches.shape
    C = wph.shape[2]
    return pl.pallas_call(
        _phase_matmul_bn_relu_kernel,
        out_shape=jax.ShapeDtypeStruct((P, M, C), jnp.bfloat16),
        grid=(P,),
        in_specs=[
            pl.BlockSpec((None, M, Kd), lambda ph: (ph, 0, 0)),   # per-phase patches
            pl.BlockSpec((None, Kd, C), lambda ph: (ph, 0, 0)),   # per-phase weights
            pl.BlockSpec((1, C), lambda ph: (0, 0)),
            pl.BlockSpec((1, C), lambda ph: (0, 0)),
        ],
        # Output stays resident across the (reduction-like) phase axis.
        out_specs=pl.BlockSpec((P, M, C), lambda ph: (0, 0, 0)),
        scratch_shapes=[pltpu.VMEM((P, M, C), jnp.float32)],
        compiler_params=pltpu.CompilerParams(
            dimension_semantics=("arbitrary",),
            vmem_limit_bytes=VMEM_LIMIT),
    )(patches, wph, gamma.reshape(1, C), beta.reshape(1, C))


def _tap_tanh_call(patches, wc):
    M, Kd = patches.shape
    C = wc.shape[1]
    bm = 56 if M % 56 == 0 else (8 if M % 8 == 0 else M)
    return pl.pallas_call(
        _matmul_tanh_kernel,
        out_shape=jax.ShapeDtypeStruct((M, C), jnp.float32),
        grid=(M // bm,),
        in_specs=[
            pl.BlockSpec((bm, Kd), lambda i: (i, 0)),
            pl.BlockSpec((Kd, C), lambda i: (0, 0)),
        ],
        out_specs=pl.BlockSpec((bm, C), lambda i: (i, 0)),
        compiler_params=pltpu.CompilerParams(
            dimension_semantics=("parallel",),    # both TCs on v7x
            vmem_limit_bytes=VMEM_LIMIT),
    )(patches, wc)


# ------------------- plain-JAX glue (dense sub-pixel patches) ---------------- #

def _phase_patches_and_weights(x_nhwc, w, pad):
    """Sub-pixel decomposition of ConvTranspose2d(K=4, stride=2, padding=pad).

    x_nhwc: (N, H, W, Cin) bf16;  w: (Cin, Cout, 4, 4) PyTorch ConvT layout.
    Returns patches (4, N*Ho*Wo, 4*Cin) bf16 and weights (4, 4*Cin, Cout) bf16,
    where phase ph = r*2 + c produces output pixels (2j + r, 2k + c).
    """
    N, H, W_, Cin = x_nhwc.shape
    K, s = 4, 2
    OH = (H - 1) * s - 2 * pad + K
    OW = (W_ - 1) * s - 2 * pad + K
    Ho, Wo = OH // 2, OW // 2
    a = (K - 1 - pad) // 2
    xp = jnp.pad(x_nhwc, ((0, 0), (a, a), (a, a), (0, 0)))
    pats, wmats = [], []
    for r in (0, 1):
        for c in (0, 1):
            cols, rows = [], []
            for dh in (0, 1):
                for dw in (0, 1):
                    cols.append(xp[:, r + dh:r + dh + Ho, c + dw:c + dw + Wo, :])
                    kh = ((r + pad) % 2 + 2) - 2 * dh
                    kw = ((c + pad) % 2 + 2) - 2 * dw
                    rows.append(w[:, :, kh, kw])                  # (Cin, Cout)
            pats.append(jnp.concatenate(cols, axis=-1).reshape(N * Ho * Wo, 4 * Cin))
            wmats.append(jnp.concatenate(rows, axis=0))           # (4*Cin, Cout)
    patches = jnp.stack(pats, axis=0).astype(jnp.bfloat16)
    wph = jnp.stack(wmats, axis=0).astype(jnp.bfloat16)
    return patches, wph, Ho, Wo


def _tap_folded_patches_and_weight(x_nhwc, w, pad):
    """Final ConvT(Cin->1, K=4, s=2, p=pad): fold the 4 sub-pixel phases into
    4 output lanes of a single matmul over a 3x3 input window."""
    N, H, W_, Cin = x_nhwc.shape
    K, s = 4, 2
    OH = (H - 1) * s - 2 * pad + K
    OW = (W_ - 1) * s - 2 * pad + K
    Ho, Wo = OH // 2, OW // 2
    a = (K - 1 - pad) // 2
    xp = jnp.pad(x_nhwc, ((0, 0), (a, a), (a, a), (0, 0)))
    cols = [xp[:, e:e + Ho, f:f + Wo, :] for e in (0, 1, 2) for f in (0, 1, 2)]
    patches = jnp.concatenate(cols, axis=-1).reshape(N * Ho * Wo, 9 * Cin)
    wc = jnp.zeros((3, 3, Cin, 4), jnp.float32)
    for r in (0, 1):
        for c in (0, 1):
            col = r * 2 + c
            for dh in (0, 1):
                for dw in (0, 1):
                    kh = ((r + pad) % 2 + 2) - 2 * dh
                    kw = ((c + pad) % 2 + 2) - 2 * dw
                    wc = wc.at[r + dh, c + dw, :, col].set(w[:, 0, kh, kw])
    return (patches.astype(jnp.bfloat16),
            wc.reshape(9 * Cin, 4).astype(jnp.bfloat16), Ho, Wo)


# --------------------------------- Generator --------------------------------- #

def init_params(key, nc=1, nz=32, ngf=32):
    k1, k2, k3, k4 = jax.random.split(key, 4)
    return {
        "w1": jax.random.normal(k1, (nz, ngf * 8, 4, 4), jnp.float32) * 0.05,
        "w2": jax.random.normal(k2, (ngf * 8, ngf * 4, 4, 4), jnp.float32) * 0.05,
        "w3": jax.random.normal(k3, (ngf * 4, ngf * 2, 4, 4), jnp.float32) * 0.05,
        "w4": jax.random.normal(k4, (ngf * 2, nc, 4, 4), jnp.float32) * 0.05,
        "g1": jnp.ones((ngf * 8,), jnp.float32), "b1": jnp.zeros((ngf * 8,), jnp.float32),
        "g2": jnp.ones((ngf * 4,), jnp.float32), "b2": jnp.zeros((ngf * 4,), jnp.float32),
        "g3": jnp.ones((ngf * 2,), jnp.float32), "b3": jnp.zeros((ngf * 2,), jnp.float32),
    }


def generator_forward(x, params):
    # TODO(synk): BatchNorm running-stat updates (a training-time side effect) are
    # not modeled; normalization uses batch statistics like PyTorch train-mode.
    N = x.shape[0]

    # Layer 1: ConvT(nz->256, 4, s=1, p=0) on a 1x1 input == plain matmul.
    nz = params["w1"].shape[0]
    c1 = params["w1"].shape[1]
    x2 = x.reshape(N, nz).astype(jnp.bfloat16)
    w1m = params["w1"].transpose(0, 2, 3, 1).reshape(nz, 16 * c1).astype(jnp.bfloat16)
    h = _l1_call(x2, w1m, params["g1"], params["b1"])              # (N, 16*c1) bf16
    h = h.reshape(N, 4, 4, c1)                                     # NHWC

    # Layers 2 & 3: stride-2 ConvT via dense sub-pixel phases, fused BN + ReLU.
    for w, g, b in ((params["w2"], params["g2"], params["b2"]),
                    (params["w3"], params["g3"], params["b3"])):
        C = w.shape[1]
        patches, wph, Ho, Wo = _phase_patches_and_weights(h, w, pad=1)
        out = _phase_bn_relu_call(patches, wph, g, b)              # (4, N*Ho*Wo, C) bf16
        h = (out.reshape(2, 2, N, Ho, Wo, C)
                .transpose(2, 3, 0, 4, 1, 5)
                .reshape(N, 2 * Ho, 2 * Wo, C))                    # NHWC

    # Layer 4: ConvT(64->1, 4, s=2, p=3) + Tanh, phases folded into 4 lanes.
    patches, wc, Ho, Wo = _tap_folded_patches_and_weight(h, params["w4"], pad=3)
    out = _tap_tanh_call(patches, wc)                              # (N*Ho*Wo, 4) f32
    y = (out.reshape(N, Ho, Wo, 2, 2)
            .transpose(0, 1, 3, 2, 4)
            .reshape(N, 2 * Ho, 2 * Wo))
    return y[:, None, :, :]                                        # (N, 1, 28, 28)


# --------------------------- pure-f32 JAX reference -------------------------- #
# Independent formulation (dilated-input im2col, NCHW) in full float32.

def _dilated_im2col(x, K, stride, pad):
    N, Cin, H, W = x.shape
    Hd, Wd = (H - 1) * stride + 1, (W - 1) * stride + 1
    xd = jnp.zeros((N, Cin, Hd, Wd), x.dtype).at[:, :, ::stride, ::stride].set(x)
    p = K - 1 - pad
    xp = jnp.pad(xd, ((0, 0), (0, 0), (p, p), (p, p)))
    OH = (H - 1) * stride - 2 * pad + K
    OW = (W - 1) * stride - 2 * pad + K
    cols = []
    for kh in range(K):
        for kw in range(K):
            cols.append(xp[:, :, kh:kh + OH, kw:kw + OW])
    pat = jnp.stack(cols, axis=0).reshape(K, K, N, Cin, OH, OW)
    pat = pat.transpose(2, 4, 5, 3, 0, 1).reshape(N * OH * OW, Cin * K * K)
    return pat, OH, OW


def _convT_weight_to_matrix(w):
    Cin, Cout, K, _ = w.shape
    wf = w[:, :, ::-1, ::-1]
    return wf.transpose(0, 2, 3, 1).reshape(Cin * K * K, Cout)


def _reference_forward(x, params):
    h = x
    N = x.shape[0]
    for w, g, b, stride, pad in (
            (params["w1"], params["g1"], params["b1"], 1, 0),
            (params["w2"], params["g2"], params["b2"], 2, 1),
            (params["w3"], params["g3"], params["b3"], 2, 1)):
        pat, OH, OW = _dilated_im2col(h, 4, stride, pad)
        y = pat @ _convT_weight_to_matrix(w)
        mean = jnp.mean(y, axis=0, keepdims=True)
        var = jnp.mean(jnp.square(y - mean), axis=0, keepdims=True)
        y = (y - mean) * jax.lax.rsqrt(var + BN_EPS) * g[None, :] + b[None, :]
        y = jnp.maximum(y, 0.0)
        C = w.shape[1]
        h = y.reshape(N, OH, OW, C).transpose(0, 3, 1, 2)
    pat, OH, OW = _dilated_im2col(h, 4, 2, 3)
    y = jnp.tanh(pat @ _convT_weight_to_matrix(params["w4"]))
    return y.reshape(N, OH, OW, 1).transpose(0, 3, 1, 2)


# ------------------------------------ main ------------------------------------ #

if __name__ == "__main__":
    key = jax.random.PRNGKey(0)
    pkey, xkey = jax.random.split(key)
    params = init_params(pkey, nc=1, nz=32, ngf=32)
    x = jax.random.normal(xkey, (2, 32, 1, 1), jnp.float32)        # (N, nz, 1, 1)

    out = jax.jit(generator_forward)(x, params)
    out = jax.block_until_ready(out)
    assert out.shape == (2, 1, 28, 28), out.shape

    # The Pallas path uses bf16 MXU operands and bf16 inter-layer activations
    # (f32 accumulation / BN stats); the reference is pure f32, so the tolerance
    # budgets the bf16 quantization error of a 4-layer pipeline.
    ref = _reference_forward(x, params)
    np.testing.assert_allclose(np.asarray(out), np.asarray(ref), atol=2e-2, rtol=2e-2)
    print("KERNEL_OK")
</pallas_src>

<mosaic_0001>
module attributes {stable_mosaic.version = 11 : i64} {
  func.func @_l1_matmul_bn_relu_kernel(%arg0: memref<2x32xbf16, #tpu.memory_space<vmem>>, %arg1: memref<32x4096xbf16, #tpu.memory_space<vmem>>, %arg2: memref<1x256xf32, #tpu.memory_space<vmem>>, %arg3: memref<1x256xf32, #tpu.memory_space<vmem>>, %arg4: memref<2x4096xbf16, #tpu.memory_space<vmem>>) attributes {dimension_semantics = [], scalar_prefetch = 0 : i64, scratch_operands = 0 : i64, tpu.core_type = #tpu.core_type<tc>} {
    %c0 = arith.constant 0 : index
    %c0_0 = arith.constant 0 : index
    %0 = vector.load %arg0[%c0, %c0_0] : memref<2x32xbf16, #tpu.memory_space<vmem>>, vector<2x32xbf16>
    %c0_1 = arith.constant 0 : index
    %c0_2 = arith.constant 0 : index
    %1 = vector.load %arg1[%c0_1, %c0_2] : memref<32x4096xbf16, #tpu.memory_space<vmem>>, vector<32x4096xbf16>
    %cst = arith.constant dense<0.000000e+00> : vector<2x4096xf32>
    %2 = tpu.matmul %0, %1, %cst {dimension_numbers = #tpu.dot_dimension_numbers<[1], [0], [0], [1], [0, 0, 1, 1], [], []>} : vector<2x32xbf16>, vector<32x4096xbf16>, vector<2x4096xf32> -> vector<2x4096xf32>
    %3 = vector.extract_strided_slice %2 {offsets = [0, 0], sizes = [2, 256], strides = [1, 1]} : vector<2x4096xf32> to vector<2x256xf32>
    %4 = vector.extract_strided_slice %2 {offsets = [0, 256], sizes = [2, 256], strides = [1, 1]} : vector<2x4096xf32> to vector<2x256xf32>
    %5 = vector.extract_strided_slice %2 {offsets = [0, 512], sizes = [2, 256], strides = [1, 1]} : vector<2x4096xf32> to vector<2x256xf32>
    %6 = vector.extract_strided_slice %2 {offsets = [0, 768], sizes = [2, 256], strides = [1, 1]} : vector<2x4096xf32> to vector<2x256xf32>
    %7 = vector.extract_strided_slice %2 {offsets = [0, 1024], sizes = [2, 256], strides = [1, 1]} : vector<2x4096xf32> to vector<2x256xf32>
    %8 = vector.extract_strided_slice %2 {offsets = [0, 1280], sizes = [2, 256], strides = [1, 1]} : vector<2x4096xf32> to vector<2x256xf32>
    %9 = vector.extract_strided_slice %2 {offsets = [0, 1536], sizes = [2, 256], strides = [1, 1]} : vector<2x4096xf32> to vector<2x256xf32>
    %10 = vector.extract_strided_slice %2 {offsets = [0, 1792], sizes = [2, 256], strides = [1, 1]} : vector<2x4096xf32> to vector<2x256xf32>
    %11 = vector.extract_strided_slice %2 {offsets = [0, 2048], sizes = [2, 256], strides = [1, 1]} : vector<2x4096xf32> to vector<2x256xf32>
    %12 = vector.extract_strided_slice %2 {offsets = [0, 2304], sizes = [2, 256], strides = [1, 1]} : vector<2x4096xf32> to vector<2x256xf32>
    %13 = vector.extract_strided_slice %2 {offsets = [0, 2560], sizes = [2, 256], strides = [1, 1]} : vector<2x4096xf32> to vector<2x256xf32>
    %14 = vector.extract_strided_slice %2 {offsets = [0, 2816], sizes = [2, 256], strides = [1, 1]} : vector<2x4096xf32> to vector<2x256xf32>
    %15 = vector.extract_strided_slice %2 {offsets = [0, 3072], sizes = [2, 256], strides = [1, 1]} : vector<2x4096xf32> to vector<2x256xf32>
    %16 = vector.extract_strided_slice %2 {offsets = [0, 3328], sizes = [2, 256], strides = [1, 1]} : vector<2x4096xf32> to vector<2x256xf32>
    %17 = vector.extract_strided_slice %2 {offsets = [0, 3584], sizes = [2, 256], strides = [1, 1]} : vector<2x4096xf32> to vector<2x256xf32>
    %18 = vector.extract_strided_slice %2 {offsets = [0, 3840], sizes = [2, 256], strides = [1, 1]} : vector<2x4096xf32> to vector<2x256xf32>
    %19 = arith.addf %3, %4 : vector<2x256xf32>
    %20 = arith.addf %19, %5 : vector<2x256xf32>
    %21 = arith.addf %20, %6 : vector<2x256xf32>
    %22 = arith.addf %21, %7 : vector<2x256xf32>
    %23 = arith.addf %22, %8 : vector<2x256xf32>
    %24 = arith.addf %23, %9 : vector<2x256xf32>
    %25 = arith.addf %24, %10 : vector<2x256xf32>
    %26 = arith.addf %25, %11 : vector<2x256xf32>
    %27 = arith.addf %26, %12 : vector<2x256xf32>
    %28 = arith.addf %27, %13 : vector<2x256xf32>
    %29 = arith.addf %28, %14 : vector<2x256xf32>
    %30 = arith.addf %29, %15 : vector<2x256xf32>
    %31 = arith.addf %30, %16 : vector<2x256xf32>
    %32 = arith.addf %31, %17 : vector<2x256xf32>
    %33 = arith.addf %32, %18 : vector<2x256xf32>
    %cst_3 = arith.constant dense<0.000000e+00> : vector<256xf32>
    %34 = vector.multi_reduction <add>, %33, %cst_3 [0] : vector<2x256xf32> to vector<256xf32>
    %35 = vector.shape_cast %34 : vector<256xf32> to vector<1x256xf32>
    %cst_4 = arith.constant 3.200000e+01 : f32
    %36 = vector.broadcast %cst_4 : f32 to vector<1x256xf32>
    %37 = arith.divf %35, %36 : vector<1x256xf32>
    %cst_5 = arith.constant 0.000000e+00 : f32
    %38 = vector.broadcast %cst_5 : f32 to vector<1x256xf32>
    %39 = vector.broadcast %37 : vector<1x256xf32> to vector<2x256xf32>
    %40 = arith.subf %3, %39 : vector<2x256xf32>
    %41 = arith.mulf %40, %40 : vector<2x256xf32>
    %cst_6 = arith.constant dense<0.000000e+00> : vector<256xf32>
    %42 = vector.multi_reduction <add>, %41, %cst_6 [0] : vector<2x256xf32> to vector<256xf32>
    %43 = vector.shape_cast %42 : vector<256xf32> to vector<1x256xf32>
    %44 = arith.addf %38, %43 : vector<1x256xf32>
    %45 = vector.broadcast %37 : vector<1x256xf32> to vector<2x256xf32>
    %46 = arith.subf %4, %45 : vector<2x256xf32>
    %47 = arith.mulf %46, %46 : vector<2x256xf32>
    %cst_7 = arith.constant dense<0.000000e+00> : vector<256xf32>
    %48 = vector.multi_reduction <add>, %47, %cst_7 [0] : vector<2x256xf32> to vector<256xf32>
    %49 = vector.shape_cast %48 : vector<256xf32> to vector<1x256xf32>
    %50 = arith.addf %44, %49 : vector<1x256xf32>
    %51 = vector.broadcast %37 : vector<1x256xf32> to vector<2x256xf32>
    %52 = arith.subf %5, %51 : vector<2x256xf32>
    %53 = arith.mulf %52, %52 : vector<2x256xf32>
    %cst_8 = arith.constant dense<0.000000e+00> : vector<256xf32>
    %54 = vector.multi_reduction <add>, %53, %cst_8 [0] : vector<2x256xf32> to vector<256xf32>
    %55 = vector.shape_cast %54 : vector<256xf32> to vector<1x256xf32>
    %56 = arith.addf %50, %55 : vector<1x256xf32>
    %57 = vector.broadcast %37 : vector<1x256xf32> to vector<2x256xf32>
    %58 = arith.subf %6, %57 : vector<2x256xf32>
    %59 = arith.mulf %58, %58 : vector<2x256xf32>
    %cst_9 = arith.constant dense<0.000000e+00> : vector<256xf32>
    %60 = vector.multi_reduction <add>, %59, %cst_9 [0] : vector<2x256xf32> to vector<256xf32>
    %61 = vector.shape_cast %60 : vector<256xf32> to vector<1x256xf32>
    %62 = arith.addf %56, %61 : vector<1x256xf32>
    %63 = vector.broadcast %37 : vector<1x256xf32> to vector<2x256xf32>
    %64 = arith.subf %7, %63 : vector<2x256xf32>
    %65 = arith.mulf %64, %64 : vector<2x256xf32>
    %cst_10 = arith.constant dense<0.000000e+00> : vector<256xf32>
    %66 = vector.multi_reduction <add>, %65, %cst_10 [0] : vector<2x256xf32> to vector<256xf32>
    %67 = vector.shape_cast %66 : vector<256xf32> to vector<1x256xf32>
    %68 = arith.addf %62, %67 : vector<1x256xf32>
    %69 = vector.broadcast %37 : vector<1x256xf32> to vector<2x256xf32>
    %70 = arith.subf %8, %69 : vector<2x256xf32>
    %71 = arith.mulf %70, %70 : vector<2x256xf32>
    %cst_11 = arith.constant dense<0.000000e+00> : vector<256xf32>
    %72 = vector.multi_reduction <add>, %71, %cst_11 [0] : vector<2x256xf32> to vector<256xf32>
    %73 = vector.shape_cast %72 : vector<256xf32> to vector<1x256xf32>
    %74 = arith.addf %68, %73 : vector<1x256xf32>
    %75 = vector.broadcast %37 : vector<1x256xf32> to vector<2x256xf32>
    %76 = arith.subf %9, %75 : vector<2x256xf32>
    %77 = arith.mulf %76, %76 : vector<2x256xf32>
    %cst_12 = arith.constant dense<0.000000e+00> : vector<256xf32>
    %78 = vector.multi_reduction <add>, %77, %cst_12 [0] : vector<2x256xf32> to vector<256xf32>
    %79 = vector.shape_cast %78 : vector<256xf32> to vector<1x256xf32>
    %80 = arith.addf %74, %79 : vector<1x256xf32>
    %81 = vector.broadcast %37 : vector<1x256xf32> to vector<2x256xf32>
    %82 = arith.subf %10, %81 : vector<2x256xf32>
    %83 = arith.mulf %82, %82 : vector<2x256xf32>
    %cst_13 = arith.constant dense<0.000000e+00> : vector<256xf32>
    %84 = vector.multi_reduction <add>, %83, %cst_13 [0] : vector<2x256xf32> to vector<256xf32>
    %85 = vector.shape_cast %84 : vector<256xf32> to vector<1x256xf32>
    %86 = arith.addf %80, %85 : vector<1x256xf32>
    %87 = vector.broadcast %37 : vector<1x256xf32> to vector<2x256xf32>
    %88 = arith.subf %11, %87 : vector<2x256xf32>
    %89 = arith.mulf %88, %88 : vector<2x256xf32>
    %cst_14 = arith.constant dense<0.000000e+00> : vector<256xf32>
    %90 = vector.multi_reduction <add>, %89, %cst_14 [0] : vector<2x256xf32> to vector<256xf32>
    %91 = vector.shape_cast %90 : vector<256xf32> to vector<1x256xf32>
    %92 = arith.addf %86, %91 : vector<1x256xf32>
    %93 = vector.broadcast %37 : vector<1x256xf32> to vector<2x256xf32>
    %94 = arith.subf %12, %93 : vector<2x256xf32>
    %95 = arith.mulf %94, %94 : vector<2x256xf32>
    %cst_15 = arith.constant dense<0.000000e+00> : vector<256xf32>
    %96 = vector.multi_reduction <add>, %95, %cst_15 [0] : vector<2x256xf32> to vector<256xf32>
    %97 = vector.shape_cast %96 : vector<256xf32> to vector<1x256xf32>
    %98 = arith.addf %92, %97 : vector<1x256xf32>
    %99 = vector.broadcast %37 : vector<1x256xf32> to vector<2x256xf32>
    %100 = arith.subf %13, %99 : vector<2x256xf32>
    %101 = arith.mulf %100, %100 : vector<2x256xf32>
    %cst_16 = arith.constant dense<0.000000e+00> : vector<256xf32>
    %102 = vector.multi_reduction <add>, %101, %cst_16 [0] : vector<2x256xf32> to vector<256xf32>
    %103 = vector.shape_cast %102 : vector<256xf32> to vector<1x256xf32>
    %104 = arith.addf %98, %103 : vector<1x256xf32>
    %105 = vector.broadcast %37 : vector<1x256xf32> to vector<2x256xf32>
    %106 = arith.subf %14, %105 : vector<2x256xf32>
    %107 = arith.mulf %106, %106 : vector<2x256xf32>
    %cst_17 = arith.constant dense<0.000000e+00> : vector<256xf32>
    %108 = vector.multi_reduction <add>, %107, %cst_17 [0] : vector<2x256xf32> to vector<256xf32>
    %109 = vector.shape_cast %108 : vector<256xf32> to vector<1x256xf32>
    %110 = arith.addf %104, %109 : vector<1x256xf32>
    %111 = vector.broadcast %37 : vector<1x256xf32> to vector<2x256xf32>
    %112 = arith.subf %15, %111 : vector<2x256xf32>
    %113 = arith.mulf %112, %112 : vector<2x256xf32>
    %cst_18 = arith.constant dense<0.000000e+00> : vector<256xf32>
    %114 = vector.multi_reduction <add>, %113, %cst_18 [0] : vector<2x256xf32> to vector<256xf32>
    %115 = vector.shape_cast %114 : vector<256xf32> to vector<1x256xf32>
    %116 = arith.addf %110, %115 : vector<1x256xf32>
    %117 = vector.broadcast %37 : vector<1x256xf32> to vector<2x256xf32>
    %118 = arith.subf %16, %117 : vector<2x256xf32>
    %119 = arith.mulf %118, %118 : vector<2x256xf32>
    %cst_19 = arith.constant dense<0.000000e+00> : vector<256xf32>
    %120 = vector.multi_reduction <add>, %119, %cst_19 [0] : vector<2x256xf32> to vector<256xf32>
    %121 = vector.shape_cast %120 : vector<256xf32> to vector<1x256xf32>
    %122 = arith.addf %116, %121 : vector<1x256xf32>
    %123 = vector.broadcast %37 : vector<1x256xf32> to vector<2x256xf32>
    %124 = arith.subf %17, %123 : vector<2x256xf32>
    %125 = arith.mulf %124, %124 : vector<2x256xf32>
    %cst_20 = arith.constant dense<0.000000e+00> : vector<256xf32>
    %126 = vector.multi_reduction <add>, %125, %cst_20 [0] : vector<2x256xf32> to vector<256xf32>
    %127 = vector.shape_cast %126 : vector<256xf32> to vector<1x256xf32>
    %128 = arith.addf %122, %127 : vector<1x256xf32>
    %129 = vector.broadcast %37 : vector<1x256xf32> to vector<2x256xf32>
    %130 = arith.subf %18, %129 : vector<2x256xf32>
    %131 = arith.mulf %130, %130 : vector<2x256xf32>
    %cst_21 = arith.constant dense<0.000000e+00> : vector<256xf32>
    %132 = vector.multi_reduction <add>, %131, %cst_21 [0] : vector<2x256xf32> to vector<256xf32>
    %133 = vector.shape_cast %132 : vector<256xf32> to vector<1x256xf32>
    %134 = arith.addf %128, %133 : vector<1x256xf32>
    %cst_22 = arith.constant 3.200000e+01 : f32
    %135 = vector.broadcast %cst_22 : f32 to vector<1x256xf32>
    %136 = arith.divf %134, %135 : vector<1x256xf32>
    %cst_23 = arith.constant 9.99999974E-6 : f32
    %137 = vector.broadcast %cst_23 : f32 to vector<1x256xf32>
    %138 = arith.addf %136, %137 : vector<1x256xf32>
    %139 = math.rsqrt %138 : vector<1x256xf32>
    %c0_24 = arith.constant 0 : index
    %c0_25 = arith.constant 0 : index
    %140 = vector.load %arg2[%c0_24, %c0_25] : memref<1x256xf32, #tpu.memory_space<vmem>>, vector<1x256xf32>
    %c0_26 = arith.constant 0 : index
    %c0_27 = arith.constant 0 : index
    %141 = vector.load %arg3[%c0_26, %c0_27] : memref<1x256xf32, #tpu.memory_space<vmem>>, vector<1x256xf32>
    %142 = vector.broadcast %37 : vector<1x256xf32> to vector<2x256xf32>
    %143 = arith.subf %3, %142 : vector<2x256xf32>
    %144 = vector.broadcast %139 : vector<1x256xf32> to vector<2x256xf32>
    %145 = arith.mulf %143, %144 : vector<2x256xf32>
    %146 = vector.broadcast %140 : vector<1x256xf32> to vector<2x256xf32>
    %147 = arith.mulf %145, %146 : vector<2x256xf32>
    %148 = vector.broadcast %141 : vector<1x256xf32> to vector<2x256xf32>
    %149 = arith.addf %147, %148 : vector<2x256xf32>
    %cst_28 = arith.constant 0.000000e+00 : f32
    %150 = vector.broadcast %cst_28 : f32 to vector<2x256xf32>
    %151 = arith.maximumf %149, %150 : vector<2x256xf32>
    %152 = arith.truncf %151 : vector<2x256xf32> to vector<2x256xbf16>
    %c0_29 = arith.constant 0 : index
    %c0_30 = arith.constant 0 : index
    %153 = vector.load %arg4[%c0_29, %c0_30] : memref<2x4096xbf16, #tpu.memory_space<vmem>>, vector<2x256xbf16>
    tpu.vector_store %arg4[%c0_29, %c0_30], %152 {strides = array<i32>} : memref<2x4096xbf16, #tpu.memory_space<vmem>>, vector<2x256xbf16>,
    %154 = vector.broadcast %37 : vector<1x256xf32> to vector<2x256xf32>
    %155 = arith.subf %4, %154 : vector<2x256xf32>
    %156 = vector.broadcast %139 : vector<1x256xf32> to vector<2x256xf32>
    %157 = arith.mulf %155, %156 : vector<2x256xf32>
    %158 = vector.broadcast %140 : vector<1x256xf32> to vector<2x256xf32>
    %159 = arith.mulf %157, %158 : vector<2x256xf32>
    %160 = vector.broadcast %141 : vector<1x256xf32> to vector<2x256xf32>
    %161 = arith.addf %159, %160 : vector<2x256xf32>
    %cst_31 = arith.constant 0.000000e+00 : f32
    %162 = vector.broadcast %cst_31 : f32 to vector<2x256xf32>
    %163 = arith.maximumf %161, %162 : vector<2x256xf32>
    %164 = arith.truncf %163 : vector<2x256xf32> to vector<2x256xbf16>
    %c0_32 = arith.constant 0 : index
    %c256 = arith.constant 256 : index
    %165 = vector.load %arg4[%c0_32, %c256] : memref<2x4096xbf16, #tpu.memory_space<vmem>>, vector<2x256xbf16>
    tpu.vector_store %arg4[%c0_32, %c256], %164 {strides = array<i32>} : memref<2x4096xbf16, #tpu.memory_space<vmem>>, vector<2x256xbf16>,
    %166 = vector.broadcast %37 : vector<1x256xf32> to vector<2x256xf32>
    %167 = arith.subf %5, %166 : vector<2x256xf32>
    %168 = vector.broadcast %139 : vector<1x256xf32> to vector<2x256xf32>
    %169 = arith.mulf %167, %168 : vector<2x256xf32>
    %170 = vector.broadcast %140 : vector<1x256xf32> to vector<2x256xf32>
    %171 = arith.mulf %169, %170 : vector<2x256xf32>
    %172 = vector.broadcast %141 : vector<1x256xf32> to vector<2x256xf32>
    %173 = arith.addf %171, %172 : vector<2x256xf32>
    %cst_33 = arith.constant 0.000000e+00 : f32
    %174 = vector.broadcast %cst_33 : f32 to vector<2x256xf32>
    %175 = arith.maximumf %173, %174 : vector<2x256xf32>
    %176 = arith.truncf %175 : vector<2x256xf32> to vector<2x256xbf16>
    %c0_34 = arith.constant 0 : index
    %c512 = arith.constant 512 : index
    %177 = vector.load %arg4[%c0_34, %c512] : memref<2x4096xbf16, #tpu.memory_space<vmem>>, vector<2x256xbf16>
    tpu.vector_store %arg4[%c0_34, %c512], %176 {strides = array<i32>} : memref<2x4096xbf16, #tpu.memory_space<vmem>>, vector<2x256xbf16>,
    %178 = vector.broadcast %37 : vector<1x256xf32> to vector<2x256xf32>
    %179 = arith.subf %6, %178 : vector<2x256xf32>
    %180 = vector.broadcast %139 : vector<1x256xf32> to vector<2x256xf32>
    %181 = arith.mulf %179, %180 : vector<2x256xf32>
    %182 = vector.broadcast %140 : vector<1x256xf32> to vector<2x256xf32>
    %183 = arith.mulf %181, %182 : vector<2x256xf32>
    %184 = vector.broadcast %141 : vector<1x256xf32> to vector<2x256xf32>
    %185 = arith.addf %183, %184 : vector<2x256xf32>
    %cst_35 = arith.constant 0.000000e+00 : f32
    %186 = vector.broadcast %cst_35 : f32 to vector<2x256xf32>
    %187 = arith.maximumf %185, %186 : vector<2x256xf32>
    %188 = arith.truncf %187 : vector<2x256xf32> to vector<2x256xbf16>
    %c0_36 = arith.constant 0 : index
    %c768 = arith.constant 768 : index
    %189 = vector.load %arg4[%c0_36, %c768] : memref<2x4096xbf16, #tpu.memory_space<vmem>>, vector<2x256xbf16>
    tpu.vector_store %arg4[%c0_36, %c768], %188 {strides = array<i32>} : memref<2x4096xbf16, #tpu.memory_space<vmem>>, vector<2x256xbf16>,
    %190 = vector.broadcast %37 : vector<1x256xf32> to vector<2x256xf32>
    %191 = arith.subf %7, %190 : vector<2x256xf32>
    %192 = vector.broadcast %139 : vector<1x256xf32> to vector<2x256xf32>
    %193 = arith.mulf %191, %192 : vector<2x256xf32>
    %194 = vector.broadcast %140 : vector<1x256xf32> to vector<2x256xf32>
    %195 = arith.mulf %193, %194 : vector<2x256xf32>
    %196 = vector.broadcast %141 : vector<1x256xf32> to vector<2x256xf32>
    %197 = arith.addf %195, %196 : vector<2x256xf32>
    %cst_37 = arith.constant 0.000000e+00 : f32
    %198 = vector.broadcast %cst_37 : f32 to vector<2x256xf32>
    %199 = arith.maximumf %197, %198 : vector<2x256xf32>
    %200 = arith.truncf %199 : vector<2x256xf32> to vector<2x256xbf16>
    %c0_38 = arith.constant 0 : index
    %c1024 = arith.constant 1024 : index
    %201 = vector.load %arg4[%c0_38, %c1024] : memref<2x4096xbf16, #tpu.memory_space<vmem>>, vector<2x256xbf16>
    tpu.vector_store %arg4[%c0_38, %c1024], %200 {strides = array<i32>} : memref<2x4096xbf16, #tpu.memory_space<vmem>>, vector<2x256xbf16>,
    %202 = vector.broadcast %37 : vector<1x256xf32> to vector<2x256xf32>
    %203 = arith.subf %8, %202 : vector<2x256xf32>
    %204 = vector.broadcast %139 : vector<1x256xf32> to vector<2x256xf32>
    %205 = arith.mulf %203, %204 : vector<2x256xf32>
    %206 = vector.broadcast %140 : vector<1x256xf32> to vector<2x256xf32>
    %207 = arith.mulf %205, %206 : vector<2x256xf32>
    %208 = vector.broadcast %141 : vector<1x256xf32> to vector<2x256xf32>
    %209 = arith.addf %207, %208 : vector<2x256xf32>
    %cst_39 = arith.constant 0.000000e+00 : f32
    %210 = vector.broadcast %cst_39 : f32 to vector<2x256xf32>
    %211 = arith.maximumf %209, %210 : vector<2x256xf32>
    %212 = arith.truncf %211 : vector<2x256xf32> to vector<2x256xbf16>
    %c0_40 = arith.constant 0 : index
    %c1280 = arith.constant 1280 : index
    %213 = vector.load %arg4[%c0_40, %c1280] : memref<2x4096xbf16, #tpu.memory_space<vmem>>, vector<2x256xbf16>
    tpu.vector_store %arg4[%c0_40, %c1280], %212 {strides = array<i32>} : memref<2x4096xbf16, #tpu.memory_space<vmem>>, vector<2x256xbf16>,
    %214 = vector.broadcast %37 : vector<1x256xf32> to vector<2x256xf32>
    %215 = arith.subf %9, %214 : vector<2x256xf32>
    %216 = vector.broadcast %139 : vector<1x256xf32> to vector<2x256xf32>
    %217 = arith.mulf %215, %216 : vector<2x256xf32>
    %218 = vector.broadcast %140 : vector<1x256xf32> to vector<2x256xf32>
    %219 = arith.mulf %217, %218 : vector<2x256xf32>
    %220 = vector.broadcast %141 : vector<1x256xf32> to vector<2x256xf32>
    %221 = arith.addf %219, %220 : vector<2x256xf32>
    %cst_41 = arith.constant 0.000000e+00 : f32
    %222 = vector.broadcast %cst_41 : f32 to vector<2x256xf32>
    %223 = arith.maximumf %221, %222 : vector<2x256xf32>
    %224 = arith.truncf %223 : vector<2x256xf32> to vector<2x256xbf16>
    %c0_42 = arith.constant 0 : index
    %c1536 = arith.constant 1536 : index
    %225 = vector.load %arg4[%c0_42, %c1536] : memref<2x4096xbf16, #tpu.memory_space<vmem>>, vector<2x256xbf16>
    tpu.vector_store %arg4[%c0_42, %c1536], %224 {strides = array<i32>} : memref<2x4096xbf16, #tpu.memory_space<vmem>>, vector<2x256xbf16>,
    %226 = vector.broadcast %37 : vector<1x256xf32> to vector<2x256xf32>
    %227 = arith.subf %10, %226 : vector<2x256xf32>
    %228 = vector.broadcast %139 : vector<1x256xf32> to vector<2x256xf32>
    %229 = arith.mulf %227, %228 : vector<2x256xf32>
    %230 = vector.broadcast %140 : vector<1x256xf32> to vector<2x256xf32>
    %231 = arith.mulf %229, %230 : vector<2x256xf32>
    %232 = vector.broadcast %141 : vector<1x256xf32> to vector<2x256xf32>
    %233 = arith.addf %231, %232 : vector<2x256xf32>
    %cst_43 = arith.constant 0.000000e+00 : f32
    %234 = vector.broadcast %cst_43 : f32 to vector<2x256xf32>
    %235 = arith.maximumf %233, %234 : vector<2x256xf32>
    %236 = arith.truncf %235 : vector<2x256xf32> to vector<2x256xbf16>
    %c0_44 = arith.constant 0 : index
    %c1792 = arith.constant 1792 : index
    %237 = vector.load %arg4[%c0_44, %c1792] : memref<2x4096xbf16, #tpu.memory_space<vmem>>, vector<2x256xbf16>
    tpu.vector_store %arg4[%c0_44, %c1792], %236 {strides = array<i32>} : memref<2x4096xbf16, #tpu.memory_space<vmem>>, vector<2x256xbf16>,
    %238 = vector.broadcast %37 : vector<1x256xf32> to vector<2x256xf32>
    %239 = arith.subf %11, %238 : vector<2x256xf32>
    %240 = vector.broadcast %139 : vector<1x256xf32> to vector<2x256xf32>
    %241 = arith.mulf %239, %240 : vector<2x256xf32>
    %242 = vector.broadcast %140 : vector<1x256xf32> to vector<2x256xf32>
    %243 = arith.mulf %241, %242 : vector<2x256xf32>
    %244 = vector.broadcast %141 : vector<1x256xf32> to vector<2x256xf32>
    %245 = arith.addf %243, %244 : vector<2x256xf32>
    %cst_45 = arith.constant 0.000000e+00 : f32
    %246 = vector.broadcast %cst_45 : f32 to vector<2x256xf32>
    %247 = arith.maximumf %245, %246 : vector<2x256xf32>
    %248 = arith.truncf %247 : vector<2x256xf32> to vector<2x256xbf16>
    %c0_46 = arith.constant 0 : index
    %c2048 = arith.constant 2048 : index
    %249 = vector.load %arg4[%c0_46, %c2048] : memref<2x4096xbf16, #tpu.memory_space<vmem>>, vector<2x256xbf16>
    tpu.vector_store %arg4[%c0_46, %c2048], %248 {strides = array<i32>} : memref<2x4096xbf16, #tpu.memory_space<vmem>>, vector<2x256xbf16>,
    %250 = vector.broadcast %37 : vector<1x256xf32> to vector<2x256xf32>
    %251 = arith.subf %12, %250 : vector<2x256xf32>
    %252 = vector.broadcast %139 : vector<1x256xf32> to vector<2x256xf32>
    %253 = arith.mulf %251, %252 : vector<2x256xf32>
    %254 = vector.broadcast %140 : vector<1x256xf32> to vector<2x256xf32>
    %255 = arith.mulf %253, %254 : vector<2x256xf32>
    %256 = vector.broadcast %141 : vector<1x256xf32> to vector<2x256xf32>
    %257 = arith.addf %255, %256 : vector<2x256xf32>
    %cst_47 = arith.constant 0.000000e+00 : f32
    %258 = vector.broadcast %cst_47 : f32 to vector<2x256xf32>
    %259 = arith.maximumf %257, %258 : vector<2x256xf32>
    %260 = arith.truncf %259 : vector<2x256xf32> to vector<2x256xbf16>
    %c0_48 = arith.constant 0 : index
    %c2304 = arith.constant 2304 : index
    %261 = vector.load %arg4[%c0_48, %c2304] : memref<2x4096xbf16, #tpu.memory_space<vmem>>, vector<2x256xbf16>
    tpu.vector_store %arg4[%c0_48, %c2304], %260 {strides = array<i32>} : memref<2x4096xbf16, #tpu.memory_space<vmem>>, vector<2x256xbf16>,
    %262 = vector.broadcast %37 : vector<1x256xf32> to vector<2x256xf32>
    %263 = arith.subf %13, %262 : vector<2x256xf32>
    %264 = vector.broadcast %139 : vector<1x256xf32> to vector<2x256xf32>
    %265 = arith.mulf %263, %264 : vector<2x256xf32>
    %266 = vector.broadcast %140 : vector<1x256xf32> to vector<2x256xf32>
    %267 = arith.mulf %265, %266 : vector<2x256xf32>
    %268 = vector.broadcast %141 : vector<1x256xf32> to vector<2x256xf32>
    %269 = arith.addf %267, %268 : vector<2x256xf32>
    %cst_49 = arith.constant 0.000000e+00 : f32
    %270 = vector.broadcast %cst_49 : f32 to vector<2x256xf32>
    %271 = arith.maximumf %269, %270 : vector<2x256xf32>
    %272 = arith.truncf %271 : vector<2x256xf32> to vector<2x256xbf16>
    %c0_50 = arith.constant 0 : index
    %c2560 = arith.constant 2560 : index
    %273 = vector.load %arg4[%c0_50, %c2560] : memref<2x4096xbf16, #tpu.memory_space<vmem>>, vector<2x256xbf16>
    tpu.vector_store %arg4[%c0_50, %c2560], %272 {strides = array<i32>} : memref<2x4096xbf16, #tpu.memory_space<vmem>>, vector<2x256xbf16>,
    %274 = vector.broadcast %37 : vector<1x256xf32> to vector<2x256xf32>
    %275 = arith.subf %14, %274 : vector<2x256xf32>
    %276 = vector.broadcast %139 : vector<1x256xf32> to vector<2x256xf32>
    %277 = arith.mulf %275, %276 : vector<2x256xf32>
    %278 = vector.broadcast %140 : vector<1x256xf32> to vector<2x256xf32>
    %279 = arith.mulf %277, %278 : vector<2x256xf32>
    %280 = vector.broadcast %141 : vector<1x256xf32> to vector<2x256xf32>
    %281 = arith.addf %279, %280 : vector<2x256xf32>
    %cst_51 = arith.constant 0.000000e+00 : f32
    %282 = vector.broadcast %cst_51 : f32 to vector<2x256xf32>
    %283 = arith.maximumf %281, %282 : vector<2x256xf32>
    %284 = arith.truncf %283 : vector<2x256xf32> to vector<2x256xbf16>
    %c0_52 = arith.constant 0 : index
    %c2816 = arith.constant 2816 : index
    %285 = vector.load %arg4[%c0_52, %c2816] : memref<2x4096xbf16, #tpu.memory_space<vmem>>, vector<2x256xbf16>
    tpu.vector_store %arg4[%c0_52, %c2816], %284 {strides = array<i32>} : memref<2x4096xbf16, #tpu.memory_space<vmem>>, vector<2x256xbf16>,
    %286 = vector.broadcast %37 : vector<1x256xf32> to vector<2x256xf32>
    %287 = arith.subf %15, %286 : vector<2x256xf32>
    %288 = vector.broadcast %139 : vector<1x256xf32> to vector<2x256xf32>
    %289 = arith.mulf %287, %288 : vector<2x256xf32>
    %290 = vector.broadcast %140 : vector<1x256xf32> to vector<2x256xf32>
    %291 = arith.mulf %289, %290 : vector<2x256xf32>
    %292 = vector.broadcast %141 : vector<1x256xf32> to vector<2x256xf32>
    %293 = arith.addf %291, %292 : vector<2x256xf32>
    %cst_53 = arith.constant 0.000000e+00 : f32
    %294 = vector.broadcast %cst_53 : f32 to vector<2x256xf32>
    %295 = arith.maximumf %293, %294 : vector<2x256xf32>
    %296 = arith.truncf %295 : vector<2x256xf32> to vector<2x256xbf16>
    %c0_54 = arith.constant 0 : index
    %c3072 = arith.constant 3072 : index
    %297 = vector.load %arg4[%c0_54, %c3072] : memref<2x4096xbf16, #tpu.memory_space<vmem>>, vector<2x256xbf16>
    tpu.vector_store %arg4[%c0_54, %c3072], %296 {strides = array<i32>} : memref<2x4096xbf16, #tpu.memory_space<vmem>>, vector<2x256xbf16>,
    %298 = vector.broadcast %37 : vector<1x256xf32> to vector<2x256xf32>
    %299 = arith.subf %16, %298 : vector<2x256xf32>
    %300 = vector.broadcast %139 : vector<1x256xf32> to vector<2x256xf32>
    %301 = arith.mulf %299, %300 : vector<2x256xf32>
    %302 = vector.broadcast %140 : vector<1x256xf32> to vector<2x256xf32>
    %303 = arith.mulf %301, %302 : vector<2x256xf32>
    %304 = vector.broadcast %141 : vector<1x256xf32> to vector<2x256xf32>
    %305 = arith.addf %303, %304 : vector<2x256xf32>
    %cst_55 = arith.constant 0.000000e+00 : f32
    %306 = vector.broadcast %cst_55 : f32 to vector<2x256xf32>
    %307 = arith.maximumf %305, %306 : vector<2x256xf32>
    %308 = arith.truncf %307 : vector<2x256xf32> to vector<2x256xbf16>
    %c0_56 = arith.constant 0 : index
    %c3328 = arith.constant 3328 : index
    %309 = vector.load %arg4[%c0_56, %c3328] : memref<2x4096xbf16, #tpu.memory_space<vmem>>, vector<2x256xbf16>
    tpu.vector_store %arg4[%c0_56, %c3328], %308 {strides = array<i32>} : memref<2x4096xbf16, #tpu.memory_space<vmem>>, vector<2x256xbf16>,
    %310 = vector.broadcast %37 : vector<1x256xf32> to vector<2x256xf32>
    %311 = arith.subf %17, %310 : vector<2x256xf32>
    %312 = vector.broadcast %139 : vector<1x256xf32> to vector<2x256xf32>
    %313 = arith.mulf %311, %312 : vector<2x256xf32>
    %314 = vector.broadcast %140 : vector<1x256xf32> to vector<2x256xf32>
    %315 = arith.mulf %313, %314 : vector<2x256xf32>
    %316 = vector.broadcast %141 : vector<1x256xf32> to vector<2x256xf32>
    %317 = arith.addf %315, %316 : vector<2x256xf32>
    %cst_57 = arith.constant 0.000000e+00 : f32
    %318 = vector.broadcast %cst_57 : f32 to vector<2x256xf32>
    %319 = arith.maximumf %317, %318 : vector<2x256xf32>
    %320 = arith.truncf %319 : vector<2x256xf32> to vector<2x256xbf16>
    %c0_58 = arith.constant 0 : index
    %c3584 = arith.constant 3584 : index
    %321 = vector.load %arg4[%c0_58, %c3584] : memref<2x4096xbf16, #tpu.memory_space<vmem>>, vector<2x256xbf16>
    tpu.vector_store %arg4[%c0_58, %c3584], %320 {strides = array<i32>} : memref<2x4096xbf16, #tpu.memory_space<vmem>>, vector<2x256xbf16>,
    %322 = vector.broadcast %37 : vector<1x256xf32> to vector<2x256xf32>
    %323 = arith.subf %18, %322 : vector<2x256xf32>
    %324 = vector.broadcast %139 : vector<1x256xf32> to vector<2x256xf32>
    %325 = arith.mulf %323, %324 : vector<2x256xf32>
    %326 = vector.broadcast %140 : vector<1x256xf32> to vector<2x256xf32>
    %327 = arith.mulf %325, %326 : vector<2x256xf32>
    %328 = vector.broadcast %141 : vector<1x256xf32> to vector<2x256xf32>
    %329 = arith.addf %327, %328 : vector<2x256xf32>
    %cst_59 = arith.constant 0.000000e+00 : f32
    %330 = vector.broadcast %cst_59 : f32 to vector<2x256xf32>
    %331 = arith.maximumf %329, %330 : vector<2x256xf32>
    %332 = arith.truncf %331 : vector<2x256xf32> to vector<2x256xbf16>
    %c0_60 = arith.constant 0 : index
    %c3840 = arith.constant 3840 : index
    %333 = vector.load %arg4[%c0_60, %c3840] : memref<2x4096xbf16, #tpu.memory_space<vmem>>, vector<2x256xbf16>
    tpu.vector_store %arg4[%c0_60, %c3840], %332 {strides = array<i32>} : memref<2x4096xbf16, #tpu.memory_space<vmem>>, vector<2x256xbf16>,
    return
  }
}

module attributes {stable_mosaic.version = 11 : i64} {
  func.func @_phase_matmul_bn_relu_kernel(%arg0: i32, %arg1: memref<1x32x1024xbf16, #tpu.memory_space<vmem>>, %arg2: memref<1x1024x128xbf16, #tpu.memory_space<vmem>>, %arg3: memref<1x128xf32, #tpu.memory_space<vmem>>, %arg4: memref<1x128xf32, #tpu.memory_space<vmem>>, %arg5: memref<4x32x128xbf16, #tpu.memory_space<vmem>>, %arg6: memref<4x32x128xf32, #tpu.memory_space<vmem>>) attributes {dimension_semantics = [#tpu.dimension_semantics<arbitrary>], iteration_bounds = array<i64: 4>, scalar_prefetch = 0 : i64, scratch_operands = 1 : i64, tpu.core_type = #tpu.core_type<tc>, window_params = [{transform_indices = @transform_0, window_bounds = array<i64: 1, 32, 1024>}, {transform_indices = @transform_1, window_bounds = array<i64: 1, 1024, 128>}, {pipeline_mode = #tpu.pipeline_mode<synchronous>, transform_indices = @transform_2, window_bounds = array<i64: 1, 128>}, {pipeline_mode = #tpu.pipeline_mode<synchronous>, transform_indices = @transform_3, window_bounds = array<i64: 1, 128>}, {pipeline_mode = #tpu.pipeline_mode<synchronous>, transform_indices = @transform_4, window_bounds = array<i64: 4, 32, 128>}]} {
    %c0 = arith.constant 0 : index
    %c0_0 = arith.constant 0 : index
    %c0_1 = arith.constant 0 : index
    %0 = vector.load %arg1[%c0, %c0_0, %c0_1] : memref<1x32x1024xbf16, #tpu.memory_space<vmem>>, vector<1x32x1024xbf16>
    %1 = vector.shape_cast %0 : vector<1x32x1024xbf16> to vector<32x1024xbf16>
    %c0_2 = arith.constant 0 : index
    %c0_3 = arith.constant 0 : index
    %c0_4 = arith.constant 0 : index
    %2 = vector.load %arg2[%c0_2, %c0_3, %c0_4] : memref<1x1024x128xbf16, #tpu.memory_space<vmem>>, vector<1x1024x128xbf16>
    %3 = vector.shape_cast %2 : vector<1x1024x128xbf16> to vector<1024x128xbf16>
    %cst = arith.constant dense<0.000000e+00> : vector<32x128xf32>
    %4 = tpu.matmul %1, %3, %cst {dimension_numbers = #tpu.dot_dimension_numbers<[1], [0], [0], [1], [0, 0, 1, 1], [], []>} : vector<32x1024xbf16>, vector<1024x128xbf16>, vector<32x128xf32> -> vector<32x128xf32>
    %5 = arith.index_cast %arg0 : i32 to index
    %c0_5 = arith.constant 0 : index
    %c0_6 = arith.constant 0 : index
    %6 = vector.load %arg6[%5, %c0_5, %c0_6] : memref<4x32x128xf32, #tpu.memory_space<vmem>>, vector<1x32x128xf32>
    %7 = vector.shape_cast %6 : vector<1x32x128xf32> to vector<32x128xf32>
    %8 = vector.shape_cast %4 : vector<32x128xf32> to vector<1x32x128xf32>
    tpu.vector_store %arg6[%5, %c0_5, %c0_6], %8 {strides = array<i32>} : memref<4x32x128xf32, #tpu.memory_space<vmem>>, vector<1x32x128xf32>,
    %c3_i32 = arith.constant 3 : i32
    %9 = arith.cmpi eq, %arg0, %c3_i32 : i32
    %10 = arith.extui %9 : i1 to i32
    %c0_i32 = arith.constant 0 : i32
    %11 = arith.cmpi ne, %10, %c0_i32 : i32
    scf.if %11 {
      %cst_7 = arith.constant 0.000000e+00 : f32
      %12 = vector.broadcast %cst_7 : f32 to vector<1x128xf32>
      %c0_8 = arith.constant 0 : index
      %c0_9 = arith.constant 0 : index
      %c0_10 = arith.constant 0 : index
      %13 = vector.load %arg6[%c0_8, %c0_9, %c0_10] : memref<4x32x128xf32, #tpu.memory_space<vmem>>, vector<1x32x128xf32>
      %14 = vector.shape_cast %13 : vector<1x32x128xf32> to vector<32x128xf32>
      %cst_11 = arith.constant dense<0.000000e+00> : vector<128xf32>
      %15 = vector.multi_reduction <add>, %14, %cst_11 [0] : vector<32x128xf32> to vector<128xf32>
      %16 = vector.shape_cast %15 : vector<128xf32> to vector<1x128xf32>
      %17 = arith.addf %12, %16 : vector<1x128xf32>
      %c1 = arith.constant 1 : index
      %c0_12 = arith.constant 0 : index
      %c0_13 = arith.constant 0 : index
      %18 = vector.load %arg6[%c1, %c0_12, %c0_13] : memref<4x32x128xf32, #tpu.memory_space<vmem>>, vector<1x32x128xf32>
      %19 = vector.shape_cast %18 : vector<1x32x128xf32> to vector<32x128xf32>
      %cst_14 = arith.constant dense<0.000000e+00> : vector<128xf32>
      %20 = vector.multi_reduction <add>, %19, %cst_14 [0] : vector<32x128xf32> to vector<128xf32>
      %21 = vector.shape_cast %20 : vector<128xf32> to vector<1x128xf32>
      %22 = arith.addf %17, %21 : vector<1x128xf32>
      %c2 = arith.constant 2 : index
      %c0_15 = arith.constant 0 : index
      %c0_16 = arith.constant 0 : index
      %23 = vector.load %arg6[%c2, %c0_15, %c0_16] : memref<4x32x128xf32, #tpu.memory_space<vmem>>, vector<1x32x128xf32>
      %24 = vector.shape_cast %23 : vector<1x32x128xf32> to vector<32x128xf32>
      %cst_17 = arith.constant dense<0.000000e+00> : vector<128xf32>
      %25 = vector.multi_reduction <add>, %24, %cst_17 [0] : vector<32x128xf32> to vector<128xf32>
      %26 = vector.shape_cast %25 : vector<128xf32> to vector<1x128xf32>
      %27 = arith.addf %22, %26 : vector<1x128xf32>
      %c3 = arith.constant 3 : index
      %c0_18 = arith.constant 0 : index
      %c0_19 = arith.constant 0 : index
      %28 = vector.load %arg6[%c3, %c0_18, %c0_19] : memref<4x32x128xf32, #tpu.memory_space<vmem>>, vector<1x32x128xf32>
      %29 = vector.shape_cast %28 : vector<1x32x128xf32> to vector<32x128xf32>
      %cst_20 = arith.constant dense<0.000000e+00> : vector<128xf32>
      %30 = vector.multi_reduction <add>, %29, %cst_20 [0] : vector<32x128xf32> to vector<128xf32>
      %31 = vector.shape_cast %30 : vector<128xf32> to vector<1x128xf32>
      %32 = arith.addf %27, %31 : vector<1x128xf32>
      %cst_21 = arith.constant 1.280000e+02 : f32
      %33 = vector.broadcast %cst_21 : f32 to vector<1x128xf32>
      %34 = arith.divf %32, %33 : vector<1x128xf32>
      %cst_22 = arith.constant 0.000000e+00 : f32
      %35 = vector.broadcast %cst_22 : f32 to vector<1x128xf32>
      %c0_23 = arith.constant 0 : index
      %c0_24 = arith.constant 0 : index
      %c0_25 = arith.constant 0 : index
      %36 = vector.load %arg6[%c0_23, %c0_24, %c0_25] : memref<4x32x128xf32, #tpu.memory_space<vmem>>, vector<1x32x128xf32>
      %37 = vector.shape_cast %36 : vector<1x32x128xf32> to vector<32x128xf32>
      %38 = vector.broadcast %34 : vector<1x128xf32> to vector<32x128xf32>
      %39 = arith.subf %37, %38 : vector<32x128xf32>
      %40 = arith.mulf %39, %39 : vector<32x128xf32>
      %cst_26 = arith.constant dense<0.000000e+00> : vector<128xf32>
      %41 = vector.multi_reduction <add>, %40, %cst_26 [0] : vector<32x128xf32> to vector<128xf32>
      %42 = vector.shape_cast %41 : vector<128xf32> to vector<1x128xf32>
      %43 = arith.addf %35, %42 : vector<1x128xf32>
      %c1_27 = arith.constant 1 : index
      %c0_28 = arith.constant 0 : index
      %c0_29 = arith.constant 0 : index
      %44 = vector.load %arg6[%c1_27, %c0_28, %c0_29] : memref<4x32x128xf32, #tpu.memory_space<vmem>>, vector<1x32x128xf32>
      %45 = vector.shape_cast %44 : vector<1x32x128xf32> to vector<32x128xf32>
      %46 = vector.broadcast %34 : vector<1x128xf32> to vector<32x128xf32>
      %47 = arith.subf %45, %46 : vector<32x128xf32>
      %48 = arith.mulf %47, %47 : vector<32x128xf32>
      %cst_30 = arith.constant dense<0.000000e+00> : vector<128xf32>
      %49 = vector.multi_reduction <add>, %48, %cst_30 [0] : vector<32x128xf32> to vector<128xf32>
      %50 = vector.shape_cast %49 : vector<128xf32> to vector<1x128xf32>
      %51 = arith.addf %43, %50 : vector<1x128xf32>
      %c2_31 = arith.constant 2 : index
      %c0_32 = arith.constant 0 : index
      %c0_33 = arith.constant 0 : index
      %52 = vector.load %arg6[%c2_31, %c0_32, %c0_33] : memref<4x32x128xf32, #tpu.memory_space<vmem>>, vector<1x32x128xf32>
      %53 = vector.shape_cast %52 : vector<1x32x128xf32> to vector<32x128xf32>
      %54 = vector.broadcast %34 : vector<1x128xf32> to vector<32x128xf32>
      %55 = arith.subf %53, %54 : vector<32x128xf32>
      %56 = arith.mulf %55, %55 : vector<32x128xf32>
      %cst_34 = arith.constant dense<0.000000e+00> : vector<128xf32>
      %57 = vector.multi_reduction <add>, %56, %cst_34 [0] : vector<32x128xf32> to vector<128xf32>
      %58 = vector.shape_cast %57 : vector<128xf32> to vector<1x128xf32>
      %59 = arith.addf %51, %58 : vector<1x128xf32>
      %c3_35 = arith.constant 3 : index
      %c0_36 = arith.constant 0 : index
      %c0_37 = arith.constant 0 : index
      %60 = vector.load %arg6[%c3_35, %c0_36, %c0_37] : memref<4x32x128xf32, #tpu.memory_space<vmem>>, vector<1x32x128xf32>
      %61 = vector.shape_cast %60 : vector<1x32x128xf32> to vector<32x128xf32>
      %62 = vector.broadcast %34 : vector<1x128xf32> to vector<32x128xf32>
      %63 = arith.subf %61, %62 : vector<32x128xf32>
      %64 = arith.mulf %63, %63 : vector<32x128xf32>
      %cst_38 = arith.constant dense<0.000000e+00> : vector<128xf32>
      %65 = vector.multi_reduction <add>, %64, %cst_38 [0] : vector<32x128xf32> to vector<128xf32>
      %66 = vector.shape_cast %65 : vector<128xf32> to vector<1x128xf32>
      %67 = arith.addf %59, %66 : vector<1x128xf32>
      %cst_39 = arith.constant 1.280000e+02 : f32
      %68 = vector.broadcast %cst_39 : f32 to vector<1x128xf32>
      %69 = arith.divf %67, %68 : vector<1x128xf32>
      %cst_40 = arith.constant 9.99999974E-6 : f32
      %70 = vector.broadcast %cst_40 : f32 to vector<1x128xf32>
      %71 = arith.addf %69, %70 : vector<1x128xf32>
      %72 = math.rsqrt %71 : vector<1x128xf32>
      %c0_41 = arith.constant 0 : index
      %c0_42 = arith.constant 0 : index
      %73 = vector.load %arg3[%c0_41, %c0_42] : memref<1x128xf32, #tpu.memory_space<vmem>>, vector<1x128xf32>
      %c0_43 = arith.constant 0 : index
      %c0_44 = arith.constant 0 : index
      %74 = vector.load %arg4[%c0_43, %c0_44] : memref<1x128xf32, #tpu.memory_space<vmem>>, vector<1x128xf32>
      %c0_45 = arith.constant 0 : index
      %c0_46 = arith.constant 0 : index
      %c0_47 = arith.constant 0 : index
      %75 = vector.load %arg6[%c0_45, %c0_46, %c0_47] : memref<4x32x128xf32, #tpu.memory_space<vmem>>, vector<1x32x128xf32>
      %76 = vector.shape_cast %75 : vector<1x32x128xf32> to vector<32x128xf32>
      %77 = vector.broadcast %34 : vector<1x128xf32> to vector<32x128xf32>
      %78 = arith.subf %76, %77 : vector<32x128xf32>
      %79 = vector.broadcast %72 : vector<1x128xf32> to vector<32x128xf32>
      %80 = arith.mulf %78, %79 : vector<32x128xf32>
      %81 = vector.broadcast %73 : vector<1x128xf32> to vector<32x128xf32>
      %82 = arith.mulf %80, %81 : vector<32x128xf32>
      %83 = vector.broadcast %74 : vector<1x128xf32> to vector<32x128xf32>
      %84 = arith.addf %82, %83 : vector<32x128xf32>
      %cst_48 = arith.constant 0.000000e+00 : f32
      %85 = vector.broadcast %cst_48 : f32 to vector<32x128xf32>
      %86 = arith.maximumf %84, %85 : vector<32x128xf32>
      %87 = arith.truncf %86 : vector<32x128xf32> to vector<32x128xbf16>
      %c0_49 = arith.constant 0 : index
      %c0_50 = arith.constant 0 : index
      %c0_51 = arith.constant 0 : index
      %88 = vector.load %arg5[%c0_49, %c0_50, %c0_51] : memref<4x32x128xbf16, #tpu.memory_space<vmem>>, vector<1x32x128xbf16>
      %89 = vector.shape_cast %88 : vector<1x32x128xbf16> to vector<32x128xbf16>
      %90 = vector.shape_cast %87 : vector<32x128xbf16> to vector<1x32x128xbf16>
      tpu.vector_store %arg5[%c0_49, %c0_50, %c0_51], %90 {strides = array<i32>} : memref<4x32x128xbf16, #tpu.memory_space<vmem>>, vector<1x32x128xbf16>,
      %c1_52 = arith.constant 1 : index
      %c0_53 = arith.constant 0 : index
      %c0_54 = arith.constant 0 : index
      %91 = vector.load %arg6[%c1_52, %c0_53, %c0_54] : memref<4x32x128xf32, #tpu.memory_space<vmem>>, vector<1x32x128xf32>
      %92 = vector.shape_cast %91 : vector<1x32x128xf32> to vector<32x128xf32>
      %93 = vector.broadcast %34 : vector<1x128xf32> to vector<32x128xf32>
      %94 = arith.subf %92, %93 : vector<32x128xf32>
      %95 = vector.broadcast %72 : vector<1x128xf32> to vector<32x128xf32>
      %96 = arith.mulf %94, %95 : vector<32x128xf32>
      %97 = vector.broadcast %73 : vector<1x128xf32> to vector<32x128xf32>
      %98 = arith.mulf %96, %97 : vector<32x128xf32>
      %99 = vector.broadcast %74 : vector<1x128xf32> to vector<32x128xf32>
      %100 = arith.addf %98, %99 : vector<32x128xf32>
      %cst_55 = arith.constant 0.000000e+00 : f32
      %101 = vector.broadcast %cst_55 : f32 to vector<32x128xf32>
      %102 = arith.maximumf %100, %101 : vector<32x128xf32>
      %103 = arith.truncf %102 : vector<32x128xf32> to vector<32x128xbf16>
      %c1_56 = arith.constant 1 : index
      %c0_57 = arith.constant 0 : index
      %c0_58 = arith.constant 0 : index
      %104 = vector.load %arg5[%c1_56, %c0_57, %c0_58] : memref<4x32x128xbf16, #tpu.memory_space<vmem>>, vector<1x32x128xbf16>
      %105 = vector.shape_cast %104 : vector<1x32x128xbf16> to vector<32x128xbf16>
      %106 = vector.shape_cast %103 : vector<32x128xbf16> to vector<1x32x128xbf16>
      tpu.vector_store %arg5[%c1_56, %c0_57, %c0_58], %106 {strides = array<i32>} : memref<4x32x128xbf16, #tpu.memory_space<vmem>>, vector<1x32x128xbf16>,
      %c2_59 = arith.constant 2 : index
      %c0_60 = arith.constant 0 : index
      %c0_61 = arith.constant 0 : index
      %107 = vector.load %arg6[%c2_59, %c0_60, %c0_61] : memref<4x32x128xf32, #tpu.memory_space<vmem>>, vector<1x32x128xf32>
      %108 = vector.shape_cast %107 : vector<1x32x128xf32> to vector<32x128xf32>
      %109 = vector.broadcast %34 : vector<1x128xf32> to vector<32x128xf32>
      %110 = arith.subf %108, %109 : vector<32x128xf32>
      %111 = vector.broadcast %72 : vector<1x128xf32> to vector<32x128xf32>
      %112 = arith.mulf %110, %111 : vector<32x128xf32>
      %113 = vector.broadcast %73 : vector<1x128xf32> to vector<32x128xf32>
      %114 = arith.mulf %112, %113 : vector<32x128xf32>
      %115 = vector.broadcast %74 : vector<1x128xf32> to vector<32x128xf32>
      %116 = arith.addf %114, %115 : vector<32x128xf32>
      %cst_62 = arith.constant 0.000000e+00 : f32
      %117 = vector.broadcast %cst_62 : f32 to vector<32x128xf32>
      %118 = arith.maximumf %116, %117 : vector<32x128xf32>
      %119 = arith.truncf %118 : vector<32x128xf32> to vector<32x128xbf16>
      %c2_63 = arith.constant 2 : index
      %c0_64 = arith.constant 0 : index
      %c0_65 = arith.constant 0 : index
      %120 = vector.load %arg5[%c2_63, %c0_64, %c0_65] : memref<4x32x128xbf16, #tpu.memory_space<vmem>>, vector<1x32x128xbf16>
      %121 = vector.shape_cast %120 : vector<1x32x128xbf16> to vector<32x128xbf16>
      %122 = vector.shape_cast %119 : vector<32x128xbf16> to vector<1x32x128xbf16>
      tpu.vector_store %arg5[%c2_63, %c0_64, %c0_65], %122 {strides = array<i32>} : memref<4x32x128xbf16, #tpu.memory_space<vmem>>, vector<1x32x128xbf16>,
      %c3_66 = arith.constant 3 : index
      %c0_67 = arith.constant 0 : index
      %c0_68 = arith.constant 0 : index
      %123 = vector.load %arg6[%c3_66, %c0_67, %c0_68] : memref<4x32x128xf32, #tpu.memory_space<vmem>>, vector<1x32x128xf32>
      %124 = vector.shape_cast %123 : vector<1x32x128xf32> to vector<32x128xf32>
      %125 = vector.broadcast %34 : vector<1x128xf32> to vector<32x128xf32>
      %126 = arith.subf %124, %125 : vector<32x128xf32>
      %127 = vector.broadcast %72 : vector<1x128xf32> to vector<32x128xf32>
      %128 = arith.mulf %126, %127 : vector<32x128xf32>
      %129 = vector.broadcast %73 : vector<1x128xf32> to vector<32x128xf32>
      %130 = arith.mulf %128, %129 : vector<32x128xf32>
      %131 = vector.broadcast %74 : vector<1x128xf32> to vector<32x128xf32>
      %132 = arith.addf %130, %131 : vector<32x128xf32>
      %cst_69 = arith.constant 0.000000e+00 : f32
      %133 = vector.broadcast %cst_69 : f32 to vector<32x128xf32>
      %134 = arith.maximumf %132, %133 : vector<32x128xf32>
      %135 = arith.truncf %134 : vector<32x128xf32> to vector<32x128xbf16>
      %c3_70 = arith.constant 3 : index
      %c0_71 = arith.constant 0 : index
      %c0_72 = arith.constant 0 : index
      %136 = vector.load %arg5[%c3_70, %c0_71, %c0_72] : memref<4x32x128xbf16, #tpu.memory_space<vmem>>, vector<1x32x128xbf16>
      %137 = vector.shape_cast %136 : vector<1x32x128xbf16> to vector<32x128xbf16>
      %138 = vector.shape_cast %135 : vector<32x128xbf16> to vector<1x32x128xbf16>
      tpu.vector_store %arg5[%c3_70, %c0_71, %c0_72], %138 {strides = array<i32>} : memref<4x32x128xbf16, #tpu.memory_space<vmem>>, vector<1x32x128xbf16>,
    } else {
    }
    return
  }
  func.func @transform_0(%arg0: i32) -> (i32, i32, i32) {
    %c0_i32 = arith.constant 0 : i32
    %c0_i32_0 = arith.constant 0 : i32
    %c0_i32_1 = arith.constant 0 : i32
    return %arg0, %c0_i32, %c0_i32_0 : i32, i32, i32
  }
  func.func @transform_1(%arg0: i32) -> (i32, i32, i32) {
    %c0_i32 = arith.constant 0 : i32
    %c0_i32_0 = arith.constant 0 : i32
    %c0_i32_1 = arith.constant 0 : i32
    return %arg0, %c0_i32, %c0_i32_0 : i32, i32, i32
  }
  func.func @transform_2(%arg0: i32) -> (i32, i32) {
    %c0_i32 = arith.constant 0 : i32
    %c0_i32_0 = arith.constant 0 : i32
    %c0_i32_1 = arith.constant 0 : i32
    return %c0_i32, %c0_i32_0 : i32, i32
  }
  func.func @transform_3(%arg0: i32) -> (i32, i32) {
    %c0_i32 = arith.constant 0 : i32
    %c0_i32_0 = arith.constant 0 : i32
    %c0_i32_1 = arith.constant 0 : i32
    return %c0_i32, %c0_i32_0 : i32, i32
  }
  func.func @transform_4(%arg0: i32) -> (i32, i32, i32) {
    %c0_i32 = arith.constant 0 : i32
    %c0_i32_0 = arith.constant 0 : i32
    %c0_i32_1 = arith.constant 0 : i32
    %c0_i32_2 = arith.constant 0 : i32
    return %c0_i32, %c0_i32_0, %c0_i32_1 : i32, i32, i32
  }
}

module attributes {stable_mosaic.version = 11 : i64} {
  func.func @_phase_matmul_bn_relu_kernel(%arg0: i32, %arg1: memref<1x128x512xbf16, #tpu.memory_space<vmem>>, %arg2: memref<1x512x64xbf16, #tpu.memory_space<vmem>>, %arg3: memref<1x64xf32, #tpu.memory_space<vmem>>, %arg4: memref<1x64xf32, #tpu.memory_space<vmem>>, %arg5: memref<4x128x64xbf16, #tpu.memory_space<vmem>>, %arg6: memref<4x128x64xf32, #tpu.memory_space<vmem>>) attributes {dimension_semantics = [#tpu.dimension_semantics<arbitrary>], iteration_bounds = array<i64: 4>, scalar_prefetch = 0 : i64, scratch_operands = 1 : i64, tpu.core_type = #tpu.core_type<tc>, window_params = [{transform_indices = @transform_0, window_bounds = array<i64: 1, 128, 512>}, {transform_indices = @transform_1, window_bounds = array<i64: 1, 512, 64>}, {pipeline_mode = #tpu.pipeline_mode<synchronous>, transform_indices = @transform_2, window_bounds = array<i64: 1, 64>}, {pipeline_mode = #tpu.pipeline_mode<synchronous>, transform_indices = @transform_3, window_bounds = array<i64: 1, 64>}, {pipeline_mode = #tpu.pipeline_mode<synchronous>, transform_indices = @transform_4, window_bounds = array<i64: 4, 128, 64>}]} {
    %c0 = arith.constant 0 : index
    %c0_0 = arith.constant 0 : index
    %c0_1 = arith.constant 0 : index
    %0 = vector.load %arg1[%c0, %c0_0, %c0_1] : memref<1x128x512xbf16, #tpu.memory_space<vmem>>, vector<1x128x512xbf16>
    %1 = vector.shape_cast %0 : vector<1x128x512xbf16> to vector<128x512xbf16>
    %c0_2 = arith.constant 0 : index
    %c0_3 = arith.constant 0 : index
    %c0_4 = arith.constant 0 : index
    %2 = vector.load %arg2[%c0_2, %c0_3, %c0_4] : memref<1x512x64xbf16, #tpu.memory_space<vmem>>, vector<1x512x64xbf16>
    %3 = vector.shape_cast %2 : vector<1x512x64xbf16> to vector<512x64xbf16>
    %cst = arith.constant dense<0.000000e+00> : vector<128x64xf32>
    %4 = tpu.matmul %1, %3, %cst {dimension_numbers = #tpu.dot_dimension_numbers<[1], [0], [0], [1], [0, 0, 1, 1], [], []>} : vector<128x512xbf16>, vector<512x64xbf16>, vector<128x64xf32> -> vector<128x64xf32>
    %5 = arith.index_cast %arg0 : i32 to index
    %c0_5 = arith.constant 0 : index
    %c0_6 = arith.constant 0 : index
    %6 = vector.load %arg6[%5, %c0_5, %c0_6] : memref<4x128x64xf32, #tpu.memory_space<vmem>>, vector<1x128x64xf32>
    %7 = vector.shape_cast %6 : vector<1x128x64xf32> to vector<128x64xf32>
    %8 = vector.shape_cast %4 : vector<128x64xf32> to vector<1x128x64xf32>
    tpu.vector_store %arg6[%5, %c0_5, %c0_6], %8 {strides = array<i32>} : memref<4x128x64xf32, #tpu.memory_space<vmem>>, vector<1x128x64xf32>,
    %c3_i32 = arith.constant 3 : i32
    %9 = arith.cmpi eq, %arg0, %c3_i32 : i32
    %10 = arith.extui %9 : i1 to i32
    %c0_i32 = arith.constant 0 : i32
    %11 = arith.cmpi ne, %10, %c0_i32 : i32
    scf.if %11 {
      %cst_7 = arith.constant 0.000000e+00 : f32
      %12 = vector.broadcast %cst_7 : f32 to vector<1x64xf32>
      %c0_8 = arith.constant 0 : index
      %c0_9 = arith.constant 0 : index
      %c0_10 = arith.constant 0 : index
      %13 = vector.load %arg6[%c0_8, %c0_9, %c0_10] : memref<4x128x64xf32, #tpu.memory_space<vmem>>, vector<1x128x64xf32>
      %14 = vector.shape_cast %13 : vector<1x128x64xf32> to vector<128x64xf32>
      %cst_11 = arith.constant dense<0.000000e+00> : vector<64xf32>
      %15 = vector.multi_reduction <add>, %14, %cst_11 [0] : vector<128x64xf32> to vector<64xf32>
      %16 = vector.shape_cast %15 : vector<64xf32> to vector<1x64xf32>
      %17 = arith.addf %12, %16 : vector<1x64xf32>
      %c1 = arith.constant 1 : index
      %c0_12 = arith.constant 0 : index
      %c0_13 = arith.constant 0 : index
      %18 = vector.load %arg6[%c1, %c0_12, %c0_13] : memref<4x128x64xf32, #tpu.memory_space<vmem>>, vector<1x128x64xf32>
      %19 = vector.shape_cast %18 : vector<1x128x64xf32> to vector<128x64xf32>
      %cst_14 = arith.constant dense<0.000000e+00> : vector<64xf32>
      %20 = vector.multi_reduction <add>, %19, %cst_14 [0] : vector<128x64xf32> to vector<64xf32>
      %21 = vector.shape_cast %20 : vector<64xf32> to vector<1x64xf32>
      %22 = arith.addf %17, %21 : vector<1x64xf32>
      %c2 = arith.constant 2 : index
      %c0_15 = arith.constant 0 : index
      %c0_16 = arith.constant 0 : index
      %23 = vector.load %arg6[%c2, %c0_15, %c0_16] : memref<4x128x64xf32, #tpu.memory_space<vmem>>, vector<1x128x64xf32>
      %24 = vector.shape_cast %23 : vector<1x128x64xf32> to vector<128x64xf32>
      %cst_17 = arith.constant dense<0.000000e+00> : vector<64xf32>
      %25 = vector.multi_reduction <add>, %24, %cst_17 [0] : vector<128x64xf32> to vector<64xf32>
      %26 = vector.shape_cast %25 : vector<64xf32> to vector<1x64xf32>
      %27 = arith.addf %22, %26 : vector<1x64xf32>
      %c3 = arith.constant 3 : index
      %c0_18 = arith.constant 0 : index
      %c0_19 = arith.constant 0 : index
      %28 = vector.load %arg6[%c3, %c0_18, %c0_19] : memref<4x128x64xf32, #tpu.memory_space<vmem>>, vector<1x128x64xf32>
      %29 = vector.shape_cast %28 : vector<1x128x64xf32> to vector<128x64xf32>
      %cst_20 = arith.constant dense<0.000000e+00> : vector<64xf32>
      %30 = vector.multi_reduction <add>, %29, %cst_20 [0] : vector<128x64xf32> to vector<64xf32>
      %31 = vector.shape_cast %30 : vector<64xf32> to vector<1x64xf32>
      %32 = arith.addf %27, %31 : vector<1x64xf32>
      %cst_21 = arith.constant 5.120000e+02 : f32
      %33 = vector.broadcast %cst_21 : f32 to vector<1x64xf32>
      %34 = arith.divf %32, %33 : vector<1x64xf32>
      %cst_22 = arith.constant 0.000000e+00 : f32
      %35 = vector.broadcast %cst_22 : f32 to vector<1x64xf32>
      %c0_23 = arith.constant 0 : index
      %c0_24 = arith.constant 0 : index
      %c0_25 = arith.constant 0 : index
      %36 = vector.load %arg6[%c0_23, %c0_24, %c0_25] : memref<4x128x64xf32, #tpu.memory_space<vmem>>, vector<1x128x64xf32>
      %37 = vector.shape_cast %36 : vector<1x128x64xf32> to vector<128x64xf32>
      %38 = vector.broadcast %34 : vector<1x64xf32> to vector<128x64xf32>
      %39 = arith.subf %37, %38 : vector<128x64xf32>
      %40 = arith.mulf %39, %39 : vector<128x64xf32>
      %cst_26 = arith.constant dense<0.000000e+00> : vector<64xf32>
      %41 = vector.multi_reduction <add>, %40, %cst_26 [0] : vector<128x64xf32> to vector<64xf32>
      %42 = vector.shape_cast %41 : vector<64xf32> to vector<1x64xf32>
      %43 = arith.addf %35, %42 : vector<1x64xf32>
      %c1_27 = arith.constant 1 : index
      %c0_28 = arith.constant 0 : index
      %c0_29 = arith.constant 0 : index
      %44 = vector.load %arg6[%c1_27, %c0_28, %c0_29] : memref<4x128x64xf32, #tpu.memory_space<vmem>>, vector<1x128x64xf32>
      %45 = vector.shape_cast %44 : vector<1x128x64xf32> to vector<128x64xf32>
      %46 = vector.broadcast %34 : vector<1x64xf32> to vector<128x64xf32>
      %47 = arith.subf %45, %46 : vector<128x64xf32>
      %48 = arith.mulf %47, %47 : vector<128x64xf32>
      %cst_30 = arith.constant dense<0.000000e+00> : vector<64xf32>
      %49 = vector.multi_reduction <add>, %48, %cst_30 [0] : vector<128x64xf32> to vector<64xf32>
      %50 = vector.shape_cast %49 : vector<64xf32> to vector<1x64xf32>
      %51 = arith.addf %43, %50 : vector<1x64xf32>
      %c2_31 = arith.constant 2 : index
      %c0_32 = arith.constant 0 : index
      %c0_33 = arith.constant 0 : index
      %52 = vector.load %arg6[%c2_31, %c0_32, %c0_33] : memref<4x128x64xf32, #tpu.memory_space<vmem>>, vector<1x128x64xf32>
      %53 = vector.shape_cast %52 : vector<1x128x64xf32> to vector<128x64xf32>
      %54 = vector.broadcast %34 : vector<1x64xf32> to vector<128x64xf32>
      %55 = arith.subf %53, %54 : vector<128x64xf32>
      %56 = arith.mulf %55, %55 : vector<128x64xf32>
      %cst_34 = arith.constant dense<0.000000e+00> : vector<64xf32>
      %57 = vector.multi_reduction <add>, %56, %cst_34 [0] : vector<128x64xf32> to vector<64xf32>
      %58 = vector.shape_cast %57 : vector<64xf32> to vector<1x64xf32>
      %59 = arith.addf %51, %58 : vector<1x64xf32>
      %c3_35 = arith.constant 3 : index
      %c0_36 = arith.constant 0 : index
      %c0_37 = arith.constant 0 : index
      %60 = vector.load %arg6[%c3_35, %c0_36, %c0_37] : memref<4x128x64xf32, #tpu.memory_space<vmem>>, vector<1x128x64xf32>
      %61 = vector.shape_cast %60 : vector<1x128x64xf32> to vector<128x64xf32>
      %62 = vector.broadcast %34 : vector<1x64xf32> to vector<128x64xf32>
      %63 = arith.subf %61, %62 : vector<128x64xf32>
      %64 = arith.mulf %63, %63 : vector<128x64xf32>
      %cst_38 = arith.constant dense<0.000000e+00> : vector<64xf32>
      %65 = vector.multi_reduction <add>, %64, %cst_38 [0] : vector<128x64xf32> to vector<64xf32>
      %66 = vector.shape_cast %65 : vector<64xf32> to vector<1x64xf32>
      %67 = arith.addf %59, %66 : vector<1x64xf32>
      %cst_39 = arith.constant 5.120000e+02 : f32
      %68 = vector.broadcast %cst_39 : f32 to vector<1x64xf32>
      %69 = arith.divf %67, %68 : vector<1x64xf32>
      %cst_40 = arith.constant 9.99999974E-6 : f32
      %70 = vector.broadcast %cst_40 : f32 to vector<1x64xf32>
      %71 = arith.addf %69, %70 : vector<1x64xf32>
      %72 = math.rsqrt %71 : vector<1x64xf32>
      %c0_41 = arith.constant 0 : index
      %c0_42 = arith.constant 0 : index
      %73 = vector.load %arg3[%c0_41, %c0_42] : memref<1x64xf32, #tpu.memory_space<vmem>>, vector<1x64xf32>
      %c0_43 = arith.constant 0 : index
      %c0_44 = arith.constant 0 : index
      %74 = vector.load %arg4[%c0_43, %c0_44] : memref<1x64xf32, #tpu.memory_space<vmem>>, vector<1x64xf32>
      %c0_45 = arith.constant 0 : index
      %c0_46 = arith.constant 0 : index
      %c0_47 = arith.constant 0 : index
      %75 = vector.load %arg6[%c0_45, %c0_46, %c0_47] : memref<4x128x64xf32, #tpu.memory_space<vmem>>, vector<1x128x64xf32>
      %76 = vector.shape_cast %75 : vector<1x128x64xf32> to vector<128x64xf32>
      %77 = vector.broadcast %34 : vector<1x64xf32> to vector<128x64xf32>
      %78 = arith.subf %76, %77 : vector<128x64xf32>
      %79 = vector.broadcast %72 : vector<1x64xf32> to vector<128x64xf32>
      %80 = arith.mulf %78, %79 : vector<128x64xf32>
      %81 = vector.broadcast %73 : vector<1x64xf32> to vector<128x64xf32>
      %82 = arith.mulf %80, %81 : vector<128x64xf32>
      %83 = vector.broadcast %74 : vector<1x64xf32> to vector<128x64xf32>
      %84 = arith.addf %82, %83 : vector<128x64xf32>
      %cst_48 = arith.constant 0.000000e+00 : f32
      %85 = vector.broadcast %cst_48 : f32 to vector<128x64xf32>
      %86 = arith.maximumf %84, %85 : vector<128x64xf32>
      %87 = arith.truncf %86 : vector<128x64xf32> to vector<128x64xbf16>
      %c0_49 = arith.constant 0 : index
      %c0_50 = arith.constant 0 : index
      %c0_51 = arith.constant 0 : index
      %88 = vector.load %arg5[%c0_49, %c0_50, %c0_51] : memref<4x128x64xbf16, #tpu.memory_space<vmem>>, vector<1x128x64xbf16>
      %89 = vector.shape_cast %88 : vector<1x128x64xbf16> to vector<128x64xbf16>
      %90 = vector.shape_cast %87 : vector<128x64xbf16> to vector<1x128x64xbf16>
      tpu.vector_store %arg5[%c0_49, %c0_50, %c0_51], %90 {strides = array<i32>} : memref<4x128x64xbf16, #tpu.memory_space<vmem>>, vector<1x128x64xbf16>,
      %c1_52 = arith.constant 1 : index
      %c0_53 = arith.constant 0 : index
      %c0_54 = arith.constant 0 : index
      %91 = vector.load %arg6[%c1_52, %c0_53, %c0_54] : memref<4x128x64xf32, #tpu.memory_space<vmem>>, vector<1x128x64xf32>
      %92 = vector.shape_cast %91 : vector<1x128x64xf32> to vector<128x64xf32>
      %93 = vector.broadcast %34 : vector<1x64xf32> to vector<128x64xf32>
      %94 = arith.subf %92, %93 : vector<128x64xf32>
      %95 = vector.broadcast %72 : vector<1x64xf32> to vector<128x64xf32>
      %96 = arith.mulf %94, %95 : vector<128x64xf32>
      %97 = vector.broadcast %73 : vector<1x64xf32> to vector<128x64xf32>
      %98 = arith.mulf %96, %97 : vector<128x64xf32>
      %99 = vector.broadcast %74 : vector<1x64xf32> to vector<128x64xf32>
      %100 = arith.addf %98, %99 : vector<128x64xf32>
      %cst_55 = arith.constant 0.000000e+00 : f32
      %101 = vector.broadcast %cst_55 : f32 to vector<128x64xf32>
      %102 = arith.maximumf %100, %101 : vector<128x64xf32>
      %103 = arith.truncf %102 : vector<128x64xf32> to vector<128x64xbf16>
      %c1_56 = arith.constant 1 : index
      %c0_57 = arith.constant 0 : index
      %c0_58 = arith.constant 0 : index
      %104 = vector.load %arg5[%c1_56, %c0_57, %c0_58] : memref<4x128x64xbf16, #tpu.memory_space<vmem>>, vector<1x128x64xbf16>
      %105 = vector.shape_cast %104 : vector<1x128x64xbf16> to vector<128x64xbf16>
      %106 = vector.shape_cast %103 : vector<128x64xbf16> to vector<1x128x64xbf16>
      tpu.vector_store %arg5[%c1_56, %c0_57, %c0_58], %106 {strides = array<i32>} : memref<4x128x64xbf16, #tpu.memory_space<vmem>>, vector<1x128x64xbf16>,
      %c2_59 = arith.constant 2 : index
      %c0_60 = arith.constant 0 : index
      %c0_61 = arith.constant 0 : index
      %107 = vector.load %arg6[%c2_59, %c0_60, %c0_61] : memref<4x128x64xf32, #tpu.memory_space<vmem>>, vector<1x128x64xf32>
      %108 = vector.shape_cast %107 : vector<1x128x64xf32> to vector<128x64xf32>
      %109 = vector.broadcast %34 : vector<1x64xf32> to vector<128x64xf32>
      %110 = arith.subf %108, %109 : vector<128x64xf32>
      %111 = vector.broadcast %72 : vector<1x64xf32> to vector<128x64xf32>
      %112 = arith.mulf %110, %111 : vector<128x64xf32>
      %113 = vector.broadcast %73 : vector<1x64xf32> to vector<128x64xf32>
      %114 = arith.mulf %112, %113 : vector<128x64xf32>
      %115 = vector.broadcast %74 : vector<1x64xf32> to vector<128x64xf32>
      %116 = arith.addf %114, %115 : vector<128x64xf32>
      %cst_62 = arith.constant 0.000000e+00 : f32
      %117 = vector.broadcast %cst_62 : f32 to vector<128x64xf32>
      %118 = arith.maximumf %116, %117 : vector<128x64xf32>
      %119 = arith.truncf %118 : vector<128x64xf32> to vector<128x64xbf16>
      %c2_63 = arith.constant 2 : index
      %c0_64 = arith.constant 0 : index
      %c0_65 = arith.constant 0 : index
      %120 = vector.load %arg5[%c2_63, %c0_64, %c0_65] : memref<4x128x64xbf16, #tpu.memory_space<vmem>>, vector<1x128x64xbf16>
      %121 = vector.shape_cast %120 : vector<1x128x64xbf16> to vector<128x64xbf16>
      %122 = vector.shape_cast %119 : vector<128x64xbf16> to vector<1x128x64xbf16>
      tpu.vector_store %arg5[%c2_63, %c0_64, %c0_65], %122 {strides = array<i32>} : memref<4x128x64xbf16, #tpu.memory_space<vmem>>, vector<1x128x64xbf16>,
      %c3_66 = arith.constant 3 : index
      %c0_67 = arith.constant 0 : index
      %c0_68 = arith.constant 0 : index
      %123 = vector.load %arg6[%c3_66, %c0_67, %c0_68] : memref<4x128x64xf32, #tpu.memory_space<vmem>>, vector<1x128x64xf32>
      %124 = vector.shape_cast %123 : vector<1x128x64xf32> to vector<128x64xf32>
      %125 = vector.broadcast %34 : vector<1x64xf32> to vector<128x64xf32>
      %126 = arith.subf %124, %125 : vector<128x64xf32>
      %127 = vector.broadcast %72 : vector<1x64xf32> to vector<128x64xf32>
      %128 = arith.mulf %126, %127 : vector<128x64xf32>
      %129 = vector.broadcast %73 : vector<1x64xf32> to vector<128x64xf32>
      %130 = arith.mulf %128, %129 : vector<128x64xf32>
      %131 = vector.broadcast %74 : vector<1x64xf32> to vector<128x64xf32>
      %132 = arith.addf %130, %131 : vector<128x64xf32>
      %cst_69 = arith.constant 0.000000e+00 : f32
      %133 = vector.broadcast %cst_69 : f32 to vector<128x64xf32>
      %134 = arith.maximumf %132, %133 : vector<128x64xf32>
      %135 = arith.truncf %134 : vector<128x64xf32> to vector<128x64xbf16>
      %c3_70 = arith.constant 3 : index
      %c0_71 = arith.constant 0 : index
      %c0_72 = arith.constant 0 : index
      %136 = vector.load %arg5[%c3_70, %c0_71, %c0_72] : memref<4x128x64xbf16, #tpu.memory_space<vmem>>, vector<1x128x64xbf16>
      %137 = vector.shape_cast %136 : vector<1x128x64xbf16> to vector<128x64xbf16>
      %138 = vector.shape_cast %135 : vector<128x64xbf16> to vector<1x128x64xbf16>
      tpu.vector_store %arg5[%c3_70, %c0_71, %c0_72], %138 {strides = array<i32>} : memref<4x128x64xbf16, #tpu.memory_space<vmem>>, vector<1x128x64xbf16>,
    } else {
    }
    return
  }
  func.func @transform_0(%arg0: i32) -> (i32, i32, i32) {
    %c0_i32 = arith.constant 0 : i32
    %c0_i32_0 = arith.constant 0 : i32
    %c0_i32_1 = arith.constant 0 : i32
    return %arg0, %c0_i32, %c0_i32_0 : i32, i32, i32
  }
  func.func @transform_1(%arg0: i32) -> (i32, i32, i32) {
    %c0_i32 = arith.constant 0 : i32
    %c0_i32_0 = arith.constant 0 : i32
    %c0_i32_1 = arith.constant 0 : i32
    return %arg0, %c0_i32, %c0_i32_0 : i32, i32, i32
  }
  func.func @transform_2(%arg0: i32) -> (i32, i32) {
    %c0_i32 = arith.constant 0 : i32
    %c0_i32_0 = arith.constant 0 : i32
    %c0_i32_1 = arith.constant 0 : i32
    return %c0_i32, %c0_i32_0 : i32, i32
  }
  func.func @transform_3(%arg0: i32) -> (i32, i32) {
    %c0_i32 = arith.constant 0 : i32
    %c0_i32_0 = arith.constant 0 : i32
    %c0_i32_1 = arith.constant 0 : i32
    return %c0_i32, %c0_i32_0 : i32, i32
  }
  func.func @transform_4(%arg0: i32) -> (i32, i32, i32) {
    %c0_i32 = arith.constant 0 : i32
    %c0_i32_0 = arith.constant 0 : i32
    %c0_i32_1 = arith.constant 0 : i32
    %c0_i32_2 = arith.constant 0 : i32
    return %c0_i32, %c0_i32_0, %c0_i32_1 : i32, i32, i32
  }
}

module attributes {stable_mosaic.version = 11 : i64} {
  func.func @_matmul_tanh_kernel(%arg0: i32, %arg1: memref<56x576xbf16, #tpu.memory_space<vmem>>, %arg2: memref<576x4xbf16, #tpu.memory_space<vmem>>, %arg3: memref<56x4xf32, #tpu.memory_space<vmem>>) attributes {dimension_semantics = [#tpu.dimension_semantics<parallel>], iteration_bounds = array<i64: 7>, scalar_prefetch = 0 : i64, scratch_operands = 0 : i64, tpu.core_type = #tpu.core_type<tc>, window_params = [{transform_indices = @transform_0, window_bounds = array<i64: 56, 576>}, {pipeline_mode = #tpu.pipeline_mode<synchronous>, transform_indices = @transform_1, window_bounds = array<i64: 576, 4>}, {transform_indices = @transform_2, window_bounds = array<i64: 56, 4>}]} {
    %c0 = arith.constant 0 : index
    %c0_0 = arith.constant 0 : index
    %0 = vector.load %arg1[%c0, %c0_0] : memref<56x576xbf16, #tpu.memory_space<vmem>>, vector<56x576xbf16>
    %c0_1 = arith.constant 0 : index
    %c0_2 = arith.constant 0 : index
    %1 = vector.load %arg2[%c0_1, %c0_2] : memref<576x4xbf16, #tpu.memory_space<vmem>>, vector<576x4xbf16>
    %cst = arith.constant dense<0.000000e+00> : vector<56x4xf32>
    %2 = tpu.matmul %0, %1, %cst {dimension_numbers = #tpu.dot_dimension_numbers<[1], [0], [0], [1], [0, 0, 1, 1], [], []>} : vector<56x576xbf16>, vector<576x4xbf16>, vector<56x4xf32> -> vector<56x4xf32>
    %3 = math.tanh %2 : vector<56x4xf32>
    %c0_3 = arith.constant 0 : index
    %c0_4 = arith.constant 0 : index
    %4 = vector.load %arg3[%c0_3, %c0_4] : memref<56x4xf32, #tpu.memory_space<vmem>>, vector<56x4xf32>
    tpu.vector_store %arg3[%c0_3, %c0_4], %3 {strides = array<i32>} : memref<56x4xf32, #tpu.memory_space<vmem>>, vector<56x4xf32>,
    return
  }
  func.func @transform_0(%arg0: i32) -> (i32, i32) {
    %c0_i32 = arith.constant 0 : i32
    %c0_i32_0 = arith.constant 0 : i32
    return %arg0, %c0_i32 : i32, i32
  }
  func.func @transform_1(%arg0: i32) -> (i32, i32) {
    %c0_i32 = arith.constant 0 : i32
    %c0_i32_0 = arith.constant 0 : i32
    %c0_i32_1 = arith.constant 0 : i32
    return %c0_i32, %c0_i32_0 : i32, i32
  }
  func.func @transform_2(%arg0: i32) -> (i32, i32) {
    %c0_i32 = arith.constant 0 : i32
    %c0_i32_0 = arith.constant 0 : i32
    return %arg0, %c0_i32 : i32, i32
  }
}

</mosaic_0001>

<llo_original>
// kernel: generator_forward.4
$region0: #{generator_forward.4}
  #allocation0 [shape = 'u32[]', space=smem, size = 0x4, offset = 0x4, fixed_abs, tag = 'smem constant byte address 0x4 - core index']
  #allocation1 [shape = 'u32[72,128]{1,0:T(1,128)}', space=vmem, size = 0x9000, scoped, tag = 'internal scratch']
  %s0 = inlined_call_operand.vmem [shape: bf16[2,32], index: 0, kind: input, shape index: {}]
  %s1 = inlined_call_operand.vmem [shape: bf16[32,4096], index: 1, kind: input, shape index: {}]
  %s2 = inlined_call_operand.hbm [shape: f32[1,256], index: 2, kind: input, shape index: {}]
  %s3 = inlined_call_operand.hbm [shape: f32[1,256], index: 3, kind: input, shape index: {}]
  %s4 = inlined_call_operand.vmem [shape: bf16[2,4096], index: 4, kind: output, shape index: {}]
  %s5 = sld [smem:[#allocation0]]
  $region34: #{generator_forward.4} parent=0
    _
  %s7 = ssub.s32 1, %s5
  %s8 = scalar_select 0, %s7, %s5
  $region1: #{generator_forward.4} parent=0
    #allocation2 [shape = 'u8[1024]{0}', space=vmem, size = 0x400, scoped, tag = 'input window, operand 2, single buffered']
    #allocation3 [shape = 's32[1]{0}', space=sflag, size = 0x4, scoped, tag = 'scoped memory for generator_forward.4']
    #allocation4 [shape = 'u8[1024]{0}', space=vmem, size = 0x400, scoped, tag = 'input window, operand 3, single buffered']
    #allocation5 [shape = 's32[1]{0}', space=sflag, size = 0x4, scoped, tag = 'scoped memory for generator_forward.4']
    %9 = vsyncpa [#allocation3], 0
    %10 = vsyncpa [#allocation5], 0
    // Predicated region
    $region2: #{generator_forward.4} parent=1 // pred_check
      _
    $region3: #{generator_forward.4} parent=1 // pred_check_branch
      %12 = sbr.rel (0) target = $region5
    $region4: #{generator_forward.4} parent=1 // pred_region
      _
    $region5: #{generator_forward.4} parent=1 // pred_fallthru
      _
    // Predicated region
    $region6: #{generator_forward.4} parent=1 // pred_check
      _
    $region7: #{generator_forward.4} parent=1 // pred_check_branch
      %14 = sbr.rel (0) target = $region9
    $region8: #{generator_forward.4} parent=1 // pred_region
      _
    $region9: #{generator_forward.4} parent=1 // pred_fallthru
      _
    // Predicated region
    $region10: #{generator_forward.4} parent=1 // pred_check
      _
    $region11: #{generator_forward.4} parent=1 // pred_check_branch
      %16 = sbr.rel (0) target = $region13
    $region12: #{generator_forward.4} parent=1 // pred_region
      %18 = vsyncadd [#allocation3], 0
      %s20 = sshll.u32 %s2, 4
      %s21 = int_to_ptr.hbm [resolvable:$true] %s20
      %s22 = sshll.u32 [#allocation2], 4
      %s23 = int_to_ptr.vmem [resolvable:$true] %s22
      %25 = dma.hbm_to_vmem [thread:$0]  %s21, 32, %s23, [#allocation3]
    $region13: #{generator_forward.4} parent=1 // pred_fallthru
      _
    // Predicated region
    $region14: #{generator_forward.4} parent=1 // pred_check
      _
    $region15: #{generator_forward.4} parent=1 // pred_check_branch
      %27 = sbr.rel (0) target = $region17
    $region16: #{generator_forward.4} parent=1 // pred_region
      %29 = vsyncadd [#allocation5], 0
      %s31 = sshll.u32 %s3, 4
      %s32 = int_to_ptr.hbm [resolvable:$true] %s31
      %s33 = sshll.u32 [#allocation4], 4
      %s34 = int_to_ptr.vmem [resolvable:$true] %s33
      %36 = dma.hbm_to_vmem [thread:$0]  %s32, 32, %s34, [#allocation5]
    $region17: #{generator_forward.4} parent=1 // pred_fallthru
      _
    // Predicated region
    $region18: #{generator_forward.4} parent=1 // pred_check
      _
    $region19: #{generator_forward.4} parent=1 // pred_check_branch
      %38 = sbr.rel (0) target = $region21
    $region20: #{generator_forward.4} parent=1 // pred_region
      %40 = dma.done [#allocation3], 32
    $region21: #{generator_forward.4} parent=1 // pred_fallthru
      _
    // Predicated region
    $region22: #{generator_forward.4} parent=1 // pred_check
      _
    $region23: #{generator_forward.4} parent=1 // pred_check_branch
      %42 = sbr.rel (0) target = $region25
    $region24: #{generator_forward.4} parent=1 // pred_region
      %44 = dma.done [#allocation5], 32
    $region25: #{generator_forward.4} parent=1 // pred_fallthru
      _
    %v46 = vld [vmem:[%s0] sm:$0x1]
    %v47 = vld [vmem:[%s1] sm:$0xff]
    %v48 = vld [vmem:[%s1 + $0x8] sm:$0xff]
    %v49 = vld [vmem:[%s1 + $0x10] sm:$0xff]
    %v50 = vld [vmem:[%s1 + $0x18] sm:$0xff]
    %v51 = vld [vmem:[%s1 + $0x20] sm:$0xff]
    %v52 = vld [vmem:[%s1 + $0x28] sm:$0xff]
    %v53 = vld [vmem:[%s1 + $0x30] sm:$0xff]
    %v54 = vld [vmem:[%s1 + $0x38] sm:$0xff]
    %v55 = vld [vmem:[%s1 + $0x40] sm:$0xff]
    %v56 = vld [vmem:[%s1 + $0x48] sm:$0xff]
    %v57 = vld [vmem:[%s1 + $0x50] sm:$0xff]
    %v58 = vld [vmem:[%s1 + $0x58] sm:$0xff]
    %v59 = vld [vmem:[%s1 + $0x60] sm:$0xff]
    %v60 = vld [vmem:[%s1 + $0x68] sm:$0xff]
    %v61 = vld [vmem:[%s1 + $0x70] sm:$0xff]
    %v62 = vld [vmem:[%s1 + $0x78] sm:$0xff]
    %v63 = vld [vmem:[%s1 + $0x80] sm:$0xff]
    %v64 = vld [vmem:[%s1 + $0x88] sm:$0xff]
    %v65 = vld [vmem:[%s1 + $0x90] sm:$0xff]
    %v66 = vld [vmem:[%s1 + $0x98] sm:$0xff]
    %v67 = vld [vmem:[%s1 + $0xa0] sm:$0xff]
    %v68 = vld [vmem:[%s1 + $0xa8] sm:$0xff]
    %v69 = vld [vmem:[%s1 + $0xb0] sm:$0xff]
    %v70 = vld [vmem:[%s1 + $0xb8] sm:$0xff]
    %v71 = vld [vmem:[%s1 + $0xc0] sm:$0xff]
    %v72 = vld [vmem:[%s1 + $0xc8] sm:$0xff]
    %v73 = vld [vmem:[%s1 + $0xd0] sm:$0xff]
    %v74 = vld [vmem:[%s1 + $0xd8] sm:$0xff]
    %v75 = vld [vmem:[%s1 + $0xe0] sm:$0xff]
    %v76 = vld [vmem:[%s1 + $0xe8] sm:$0xff]
    %v77 = vld [vmem:[%s1 + $0xf0] sm:$0xff]
    %v78 = vld [vmem:[%s1 + $0xf8] sm:$0xff]
    %v79 = vld [vmem:[%s1 + $0x100] sm:$0xff]
    %v80 = vld [vmem:[%s1 + $0x108] sm:$0xff]
    %v81 = vld [vmem:[%s1 + $0x110] sm:$0xff]
    %v82 = vld [vmem:[%s1 + $0x118] sm:$0xff]
    %v83 = vld [vmem:[%s1 + $0x120] sm:$0xff]
    %v84 = vld [vmem:[%s1 + $0x128] sm:$0xff]
    %v85 = vld [vmem:[%s1 + $0x130] sm:$0xff]
    %v86 = vld [vmem:[%s1 + $0x138] sm:$0xff]
    %v87 = vld [vmem:[%s1 + $0x140] sm:$0xff]
    %v88 = vld [vmem:[%s1 + $0x148] sm:$0xff]
    %v89 = vld [vmem:[%s1 + $0x150] sm:$0xff]
    %v90 = vld [vmem:[%s1 + $0x158] sm:$0xff]
    %v91 = vld [vmem:[%s1 + $0x160] sm:$0xff]
    %v92 = vld [vmem:[%s1 + $0x168] sm:$0xff]
    %v93 = vld [vmem:[%s1 + $0x170] sm:$0xff]
    %v94 = vld [vmem:[%s1 + $0x178] sm:$0xff]
    %v95 = vld [vmem:[%s1 + $0x180] sm:$0xff]
    %v96 = vld [vmem:[%s1 + $0x188] sm:$0xff]
    %v97 = vld [vmem:[%s1 + $0x190] sm:$0xff]
    %v98 = vld [vmem:[%s1 + $0x198] sm:$0xff]
    %v99 = vld [vmem:[%s1 + $0x1a0] sm:$0xff]
    %v100 = vld [vmem:[%s1 + $0x1a8] sm:$0xff]
    %v101 = vld [vmem:[%s1 + $0x1b0] sm:$0xff]
    %v102 = vld [vmem:[%s1 + $0x1b8] sm:$0xff]
    %v103 = vld [vmem:[%s1 + $0x1c0] sm:$0xff]
    %v104 = vld [vmem:[%s1 + $0x1c8] sm:$0xff]
    %v105 = vld [vmem:[%s1 + $0x1d0] sm:$0xff]
    %v106 = vld [vmem:[%s1 + $0x1d8] sm:$0xff]
    %v107 = vld [vmem:[%s1 + $0x1e0] sm:$0xff]
    %v108 = vld [vmem:[%s1 + $0x1e8] sm:$0xff]
    %v109 = vld [vmem:[%s1 + $0x1f0] sm:$0xff]
    %v110 = vld [vmem:[%s1 + $0x1f8] sm:$0xff]
    %v175 = vunpack.c.l.b16 %v47
    %v176 = vunpack.c.h.b16 %v47
    %v177 = vunpack.c.l.b16 %v48
    %v178 = vunpack.c.h.b16 %v48
    %v179 = vunpack.c.l.b16 %v49
    %v180 = vunpack.c.h.b16 %v49
    %v181 = vunpack.c.l.b16 %v50
    %v182 = vunpack.c.h.b16 %v50
    %v183 = vunpack.c.l.b16 %v51
    %v184 = vunpack.c.h.b16 %v51
    %v185 = vunpack.c.l.b16 %v52
    %v186 = vunpack.c.h.b16 %v52
    %v187 = vunpack.c.l.b16 %v53
    %v188 = vunpack.c.h.b16 %v53
    %v189 = vunpack.c.l.b16 %v54
    %v190 = vunpack.c.h.b16 %v54
    %v191 = vunpack.c.l.b16 %v55
    %v192 = vunpack.c.h.b16 %v55
    %v193 = vunpack.c.l.b16 %v56
    %v194 = vunpack.c.h.b16 %v56
    %v195 = vunpack.c.l.b16 %v57
    %v196 = vunpack.c.h.b16 %v57
    %v197 = vunpack.c.l.b16 %v58
    %v198 = vunpack.c.h.b16 %v58
    %v199 = vunpack.c.l.b16 %v59
    %v200 = vunpack.c.h.b16 %v59
    %v201 = vunpack.c.l.b16 %v60
    %v202 = vunpack.c.h.b16 %v60
    %v203 = vunpack.c.l.b16 %v61
    %v204 = vunpack.c.h.b16 %v61
    %v205 = vunpack.c.l.b16 %v62
    %v206 = vunpack.c.h.b16 %v62
    %v207 = vunpack.c.l.b16 %v63
    %v208 = vunpack.c.h.b16 %v63
    %v209 = vunpack.c.l.b16 %v64
    %v210 = vunpack.c.h.b16 %v64
    %v211 = vunpack.c.l.b16 %v65
    %v212 = vunpack.c.h.b16 %v65
    %v213 = vunpack.c.l.b16 %v66
    %v214 = vunpack.c.h.b16 %v66
    %v215 = vunpack.c.l.b16 %v67
    %v216 = vunpack.c.h.b16 %v67
    %v217 = vunpack.c.l.b16 %v68
    %v218 = vunpack.c.h.b16 %v68
    %v219 = vunpack.c.l.b16 %v69
    %v220 = vunpack.c.h.b16 %v69
    %v221 = vunpack.c.l.b16 %v70
    %v222 = vunpack.c.h.b16 %v70
    %v223 = vunpack.c.l.b16 %v71
    %v224 = vunpack.c.h.b16 %v71
    %v225 = vunpack.c.l.b16 %v72
    %v226 = vunpack.c.h.b16 %v72
    %v227 = vunpack.c.l.b16 %v73
    %v228 = vunpack.c.h.b16 %v73
    %v229 = vunpack.c.l.b16 %v74
    %v230 = vunpack.c.h.b16 %v74
    %v231 = vunpack.c.l.b16 %v75
    %v232 = vunpack.c.h.b16 %v75
    %v233 = vunpack.c.l.b16 %v76
    %v234 = vunpack.c.h.b16 %v76
    %v235 = vunpack.c.l.b16 %v77
    %v236 = vunpack.c.h.b16 %v77
    %v237 = vunpack.c.l.b16 %v78
    %v238 = vunpack.c.h.b16 %v78
    %v239 = vunpack.c.l.b16 %v79
    %v240 = vunpack.c.h.b16 %v79
    %v241 = vunpack.c.l.b16 %v80
    %v242 = vunpack.c.h.b16 %v80
    %v243 = vunpack.c.l.b16 %v81
    %v244 = vunpack.c.h.b16 %v81
    %v245 = vunpack.c.l.b16 %v82
    %v246 = vunpack.c.h.b16 %v82
    %v247 = vunpack.c.l.b16 %v83
    %v248 = vunpack.c.h.b16 %v83
    %v249 = vunpack.c.l.b16 %v84
    %v250 = vunpack.c.h.b16 %v84
    %v251 = vunpack.c.l.b16 %v85
    %v252 = vunpack.c.h.b16 %v85
    %v253 = vunpack.c.l.b16 %v86
    %v254 = vunpack.c.h.b16 %v86
    %v255 = vunpack.c.l.b16 %v87
    %v256 = vunpack.c.h.b16 %v87
    %v257 = vunpack.c.l.b16 %v88
    %v258 = vunpack.c.h.b16 %v88
    %v259 = vunpack.c.l.b16 %v89
    %v260 = vunpack.c.h.b16 %v89
    %v261 = vunpack.c.l.b16 %v90
    %v262 = vunpack.c.h.b16 %v90
    %v263 = vunpack.c.l.b16 %v91
    %v264 = vunpack.c.h.b16 %v91
    %v265 = vunpack.c.l.b16 %v92
    %v266 = vunpack.c.h.b16 %v92
    %v267 = vunpack.c.l.b16 %v93
    %v268 = vunpack.c.h.b16 %v93
    %v269 = vunpack.c.l.b16 %v94
    %v270 = vunpack.c.h.b16 %v94
    %v271 = vunpack.c.l.b16 %v95
    %v272 = vunpack.c.h.b16 %v95
    %v273 = vunpack.c.l.b16 %v96
    %v274 = vunpack.c.h.b16 %v96
    %v275 = vunpack.c.l.b16 %v97
    %v276 = vunpack.c.h.b16 %v97
    %v277 = vunpack.c.l.b16 %v98
    %v278 = vunpack.c.h.b16 %v98
    %v279 = vunpack.c.l.b16 %v99
    %v280 = vunpack.c.h.b16 %v99
    %v281 = vunpack.c.l.b16 %v100
    %v282 = vunpack.c.h.b16 %v100
    %v283 = vunpack.c.l.b16 %v101
    %v284 = vunpack.c.h.b16 %v101
    %v285 = vunpack.c.l.b16 %v102
    %v286 = vunpack.c.h.b16 %v102
    %v287 = vunpack.c.l.b16 %v103
    %v288 = vunpack.c.h.b16 %v103
    %v289 = vunpack.c.l.b16 %v104
    %v290 = vunpack.c.h.b16 %v104
    %v291 = vunpack.c.l.b16 %v105
    %v292 = vunpack.c.h.b16 %v105
    %v293 = vunpack.c.l.b16 %v106
    %v294 = vunpack.c.h.b16 %v106
    %v295 = vunpack.c.l.b16 %v107
    %v296 = vunpack.c.h.b16 %v107
    %v297 = vunpack.c.l.b16 %v108
    %v298 = vunpack.c.h.b16 %v108
    %v299 = vunpack.c.l.b16 %v109
    %v300 = vunpack.c.h.b16 %v109
    %v301 = vunpack.c.l.b16 %v110
    %v302 = vunpack.c.h.b16 %v110
    %v303 = vpack.c.b16 %v207, %v175
    %v304 = vpack.c.b16 %v208, %v176
    %v305 = vpack.c.b16 %v209, %v177
    %v306 = vpack.c.b16 %v210, %v178
    %v307 = vpack.c.b16 %v211, %v179
    %v308 = vpack.c.b16 %v212, %v180
    %v309 = vpack.c.b16 %v213, %v181
    %v310 = vpack.c.b16 %v214, %v182
    %v311 = vpack.c.b16 %v215, %v183
    %v312 = vpack.c.b16 %v216, %v184
    %v313 = vpack.c.b16 %v217, %v185
    %v314 = vpack.c.b16 %v218, %v186
    %v315 = vpack.c.b16 %v219, %v187
    %v316 = vpack.c.b16 %v220, %v188
    %v317 = vpack.c.b16 %v221, %v189
    %v318 = vpack.c.b16 %v222, %v190
    %v319 = vpack.c.b16 %v223, %v191
    %v320 = vpack.c.b16 %v224, %v192
    %v321 = vpack.c.b16 %v225, %v193
    %v322 = vpack.c.b16 %v226, %v194
    %v323 = vpack.c.b16 %v227, %v195
    %v324 = vpack.c.b16 %v228, %v196
    %v325 = vpack.c.b16 %v229, %v197
    %v326 = vpack.c.b16 %v230, %v198
    %v327 = vpack.c.b16 %v231, %v199
    %v328 = vpack.c.b16 %v232, %v200
    %v329 = vpack.c.b16 %v233, %v201
    %v330 = vpack.c.b16 %v234, %v202
    %v331 = vpack.c.b16 %v235, %v203
    %v332 = vpack.c.b16 %v236, %v204
    %v333 = vpack.c.b16 %v237, %v205
    %v334 = vpack.c.b16 %v238, %v206
    %v335 = vpack.c.b16 %v271, %v239
    %v336 = vpack.c.b16 %v272, %v240
    %v337 = vpack.c.b16 %v273, %v241
    %v338 = vpack.c.b16 %v274, %v242
    %v339 = vpack.c.b16 %v275, %v243
    %v340 = vpack.c.b16 %v276, %v244
    %v341 = vpack.c.b16 %v277, %v245
    %v342 = vpack.c.b16 %v278, %v246
    %v343 = vpack.c.b16 %v279, %v247
    %v344 = vpack.c.b16 %v280, %v248
    %v345 = vpack.c.b16 %v281, %v249
    %v346 = vpack.c.b16 %v282, %v250
    %v347 = vpack.c.b16 %v283, %v251
    %v348 = vpack.c.b16 %v284, %v252
    %v349 = vpack.c.b16 %v285, %v253
    %v350 = vpack.c.b16 %v286, %v254
    %v351 = vpack.c.b16 %v287, %v255
    %v352 = vpack.c.b16 %v288, %v256
    %v353 = vpack.c.b16 %v289, %v257
    %v354 = vpack.c.b16 %v290, %v258
    %v355 = vpack.c.b16 %v291, %v259
    %v356 = vpack.c.b16 %v292, %v260
    %v357 = vpack.c.b16 %v293, %v261
    %v358 = vpack.c.b16 %v294, %v262
    %v359 = vpack.c.b16 %v295, %v263
    %v360 = vpack.c.b16 %v296, %v264
    %v361 = vpack.c.b16 %v297, %v265
    %v362 = vpack.c.b16 %v298, %v266
    %v363 = vpack.c.b16 %v299, %v267
    %v364 = vpack.c.b16 %v300, %v268
    %v365 = vpack.c.b16 %v301, %v269
    %v366 = vpack.c.b16 %v302, %v270
    %vm431 = vcmask 261120
    %v433 = vsel %vm431, %v46, 0
    %435 = vmatpush.bf16.msra.mxu0 0
    %436 = vmatpush.bf16.msra.mxu0 0
    %437 = vmatpush.bf16.msra.mxu0 0
    %438 = vmatpush.bf16.msra.mxu0 0
    %439 = vmatpush.bf16.msra.mxu0 0
    %440 = vmatpush.bf16.msra.mxu0 0
    %441 = vmatpush.bf16.msra.mxu0 %v335
    %442 = vmatpush.bf16.msra.mxu0 %v303
    %443 = vmatmul.bf16.gmra.mxu0 %v433
    %v444 = vpop.f32.mrf.mxu0
    %v445 = vadd.f32 0.0, %v444
    %v446 = vpop.f32.mrf.mxu0
    %447 = vdwg.mxu0
    %448 = vmatpush.bf16.msra.mxu0 0
    %449 = vmatpush.bf16.msra.mxu0 0
    %450 = vmatpush.bf16.msra.mxu0 0
    %451 = vmatpush.bf16.msra.mxu0 0
    %452 = vmatpush.bf16.msra.mxu0 0
    %453 = vmatpush.bf16.msra.mxu0 0
    %454 = vmatpush.bf16.msra.mxu0 %v336
    %455 = vmatpush.bf16.msra.mxu0 %v304
    %456 = vmatmul.bf16.gmra.mxu0 %v433
    %v457 = vpop.f32.mrf.mxu0
    %v458 = vadd.f32 0.0, %v457
    %v459 = vpop.f32.mrf.mxu0
    %460 = vdwg.mxu0
    %461 = vmatpush.bf16.msra.mxu0 0
    %462 = vmatpush.bf16.msra.mxu0 0
    %463 = vmatpush.bf16.msra.mxu0 0
    %464 = vmatpush.bf16.msra.mxu0 0
    %465 = vmatpush.bf16.msra.mxu0 0
    %466 = vmatpush.bf16.msra.mxu0 0
    %467 = vmatpush.bf16.msra.mxu0 %v337
    %468 = vmatpush.bf16.msra.mxu0 %v305
    %469 = vmatmul.bf16.gmra.mxu0 %v433
    %v470 = vpop.f32.mrf.mxu0
    %v471 = vadd.f32 0.0, %v470
    %v472 = vpop.f32.mrf.mxu0
    %473 = vdwg.mxu0
    %474 = vmatpush.bf16.msra.mxu0 0
    %475 = vmatpush.bf16.msra.mxu0 0
    %476 = vmatpush.bf16.msra.mxu0 0
    %477 = vmatpush.bf16.msra.mxu0 0
    %478 = vmatpush.bf16.msra.mxu0 0
    %479 = vmatpush.bf16.msra.mxu0 0
    %480 = vmatpush.bf16.msra.mxu0 %v338
    %481 = vmatpush.bf16.msra.mxu0 %v306
    %482 = vmatmul.bf16.gmra.mxu0 %v433
    %v483 = vpop.f32.mrf.mxu0
    %v484 = vadd.f32 0.0, %v483
    %v485 = vpop.f32.mrf.mxu0
    %486 = vdwg.mxu0
    %487 = vmatpush.bf16.msra.mxu0 0
    %488 = vmatpush.bf16.msra.mxu0 0
    %489 = vmatpush.bf16.msra.mxu0 0
    %490 = vmatpush.bf16.msra.mxu0 0
    %491 = vmatpush.bf16.msra.mxu0 0
    %492 = vmatpush.bf16.msra.mxu0 0
    %493 = vmatpush.bf16.msra.mxu0 %v339
    %494 = vmatpush.bf16.msra.mxu0 %v307
    %495 = vmatmul.bf16.gmra.mxu0 %v433
    %v496 = vpop.f32.mrf.mxu0
    %v497 = vadd.f32 0.0, %v496
    %v498 = vpop.f32.mrf.mxu0
    %499 = vdwg.mxu0
    %500 = vmatpush.bf16.msra.mxu0 0
    %501 = vmatpush.bf16.msra.mxu0 0
    %502 = vmatpush.bf16.msra.mxu0 0
    %503 = vmatpush.bf16.msra.mxu0 0
    %504 = vmatpush.bf16.msra.mxu0 0
    %505 = vmatpush.bf16.msra.mxu0 0
    %506 = vmatpush.bf16.msra.mxu0 %v340
    %507 = vmatpush.bf16.msra.mxu0 %v308
    %508 = vmatmul.bf16.gmra.mxu0 %v433
    %v509 = vpop.f32.mrf.mxu0
    %v510 = vadd.f32 0.0, %v509
    %v511 = vpop.f32.mrf.mxu0
    %512 = vdwg.mxu0
    %513 = vmatpush.bf16.msra.mxu0 0
    %514 = vmatpush.bf16.msra.mxu0 0
    %515 = vmatpush.bf16.msra.mxu0 0
    %516 = vmatpush.bf16.msra.mxu0 0
    %517 = vmatpush.bf16.msra.mxu0 0
    %518 = vmatpush.bf16.msra.mxu0 0
    %519 = vmatpush.bf16.msra.mxu0 %v341
    %520 = vmatpush.bf16.msra.mxu0 %v309
    %521 = vmatmul.bf16.gmra.mxu0 %v433
    %v522 = vpop.f32.mrf.mxu0
    %v523 = vadd.f32 0.0, %v522
    %v524 = vpop.f32.mrf.mxu0
    %525 = vdwg.mxu0
    %526 = vmatpush.bf16.msra.mxu0 0
    %527 = vmatpush.bf16.msra.mxu0 0
    %528 = vmatpush.bf16.msra.mxu0 0
    %529 = vmatpush.bf16.msra.mxu0 0
    %530 = vmatpush.bf16.msra.mxu0 0
    %531 = vmatpush.bf16.msra.mxu0 0
    %532 = vmatpush.bf16.msra.mxu0 %v342
    %533 = vmatpush.bf16.msra.mxu0 %v310
    %534 = vmatmul.bf16.gmra.mxu0 %v433
    %v535 = vpop.f32.mrf.mxu0
    %v536 = vadd.f32 0.0, %v535
    %v537 = vpop.f32.mrf.mxu0
    %538 = vdwg.mxu0
    %539 = vmatpush.bf16.msra.mxu0 0
    %540 = vmatpush.bf16.msra.mxu0 0
    %541 = vmatpush.bf16.msra.mxu0 0
    %542 = vmatpush.bf16.msra.mxu0 0
    %543 = vmatpush.bf16.msra.mxu0 0
    %544 = vmatpush.bf16.msra.mxu0 0
    %545 = vmatpush.bf16.msra.mxu0 %v343
    %546 = vmatpush.bf16.msra.mxu0 %v311
    %547 = vmatmul.bf16.gmra.mxu0 %v433
    %v548 = vpop.f32.mrf.mxu0
    %v549 = vadd.f32 0.0, %v548
    %v550 = vpop.f32.mrf.mxu0
    %551 = vdwg.mxu0
    %552 = vmatpush.bf16.msra.mxu0 0
    %553 = vmatpush.bf16.msra.mxu0 0
    %554 = vmatpush.bf16.msra.mxu0 0
    %555 = vmatpush.bf16.msra.mxu0 0
    %556 = vmatpush.bf16.msra.mxu0 0
    %557 = vmatpush.bf16.msra.mxu0 0
    %558 = vmatpush.bf16.msra.mxu0 %v344
    %559 = vmatpush.bf16.msra.mxu0 %v312
    %560 = vmatmul.bf16.gmra.mxu0 %v433
    %v561 = vpop.f32.mrf.mxu0
    %v562 = vadd.f32 0.0, %v561
    %v563 = vpop.f32.mrf.mxu0
    %564 = vdwg.mxu0
    %565 = vmatpush.bf16.msra.mxu0 0
    %566 = vmatpush.bf16.msra.mxu0 0
    %567 = vmatpush.bf16.msra.mxu0 0
    %568 = vmatpush.bf16.msra.mxu0 0
    %569 = vmatpush.bf16.msra.mxu0 0
    %570 = vmatpush.bf16.msra.mxu0 0
    %571 = vmatpush.bf16.msra.mxu0 %v345
    %572 = vmatpush.bf16.msra.mxu0 %v313
    %573 = vmatmul.bf16.gmra.mxu0 %v433
    %v574 = vpop.f32.mrf.mxu0
    %v575 = vadd.f32 0.0, %v574
    %v576 = vpop.f32.mrf.mxu0
    %577 = vdwg.mxu0
    %578 = vmatpush.bf16.msra.mxu0 0
    %579 = vmatpush.bf16.msra.mxu0 0
    %580 = vmatpush.bf16.msra.mxu0 0
    %581 = vmatpush.bf16.msra.mxu0 0
    %582 = vmatpush.bf16.msra.mxu0 0
    %583 = vmatpush.bf16.msra.mxu0 0
    %584 = vmatpush.bf16.msra.mxu0 %v346
    %585 = vmatpush.bf16.msra.mxu0 %v314
    %586 = vmatmul.bf16.gmra.mxu0 %v433
    %v587 = vpop.f32.mrf.mxu0
    %v588 = vadd.f32 0.0, %v587
    %v589 = vpop.f32.mrf.mxu0
    %590 = vdwg.mxu0
    %591 = vmatpush.bf16.msra.mxu0 0
    %592 = vmatpush.bf16.msra.mxu0 0
    %593 = vmatpush.bf16.msra.mxu0 0
    %594 = vmatpush.bf16.msra.mxu0 0
    %595 = vmatpush.bf16.msra.mxu0 0
    %596 = vmatpush.bf16.msra.mxu0 0
    %597 = vmatpush.bf16.msra.mxu0 %v347
    %598 = vmatpush.bf16.msra.mxu0 %v315
    %599 = vmatmul.bf16.gmra.mxu0 %v433
    %v600 = vpop.f32.mrf.mxu0
    %v601 = vadd.f32 0.0, %v600
    %v602 = vpop.f32.mrf.mxu0
    %603 = vdwg.mxu0
    %604 = vmatpush.bf16.msra.mxu0 0
    %605 = vmatpush.bf16.msra.mxu0 0
    %606 = vmatpush.bf16.msra.mxu0 0
    %607 = vmatpush.bf16.msra.mxu0 0
    %608 = vmatpush.bf16.msra.mxu0 0
    %609 = vmatpush.bf16.msra.mxu0 0
    %610 = vmatpush.bf16.msra.mxu0 %v348
    %611 = vmatpush.bf16.msra.mxu0 %v316
    %612 = vmatmul.bf16.gmra.mxu0 %v433
    %v613 = vpop.f32.mrf.mxu0
    %v614 = vadd.f32 0.0, %v613
    %v615 = vpop.f32.mrf.mxu0
    %616 = vdwg.mxu0
    %617 = vmatpush.bf16.msra.mxu0 0
    %618 = vmatpush.bf16.msra.mxu0 0
    %619 = vmatpush.bf16.msra.mxu0 0
    %620 = vmatpush.bf16.msra.mxu0 0
    %621 = vmatpush.bf16.msra.mxu0 0
    %622 = vmatpush.bf16.msra.mxu0 0
    %623 = vmatpush.bf16.msra.mxu0 %v349
    %624 = vmatpush.bf16.msra.mxu0 %v317
    %625 = vmatmul.bf16.gmra.mxu0 %v433
    %v626 = vpop.f32.mrf.mxu0
    %v627 = vadd.f32 0.0, %v626
    %v628 = vpop.f32.mrf.mxu0
    %629 = vdwg.mxu0
    %630 = vmatpush.bf16.msra.mxu0 0
    %631 = vmatpush.bf16.msra.mxu0 0
    %632 = vmatpush.bf16.msra.mxu0 0
    %633 = vmatpush.bf16.msra.mxu0 0
    %634 = vmatpush.bf16.msra.mxu0 0
    %635 = vmatpush.bf16.msra.mxu0 0
    %636 = vmatpush.bf16.msra.mxu0 %v350
    %637 = vmatpush.bf16.msra.mxu0 %v318
    %638 = vmatmul.bf16.gmra.mxu0 %v433
    %v639 = vpop.f32.mrf.mxu0
    %v640 = vadd.f32 0.0, %v639
    %v641 = vpop.f32.mrf.mxu0
    %642 = vdwg.mxu0
    %643 = vmatpush.bf16.msra.mxu0 0
    %644 = vmatpush.bf16.msra.mxu0 0
    %645 = vmatpush.bf16.msra.mxu0 0
    %646 = vmatpush.bf16.msra.mxu0 0
    %647 = vmatpush.bf16.msra.mxu0 0
    %648 = vmatpush.bf16.msra.mxu0 0
    %649 = vmatpush.bf16.msra.mxu0 %v351
    %650 = vmatpush.bf16.msra.mxu0 %v319
    %651 = vmatmul.bf16.gmra.mxu0 %v433
    %v652 = vpop.f32.mrf.mxu0
    %v653 = vadd.f32 0.0, %v652
    %v654 = vpop.f32.mrf.mxu0
    %655 = vdwg.mxu0
    %656 = vmatpush.bf16.msra.mxu0 0
    %657 = vmatpush.bf16.msra.mxu0 0
    %658 = vmatpush.bf16.msra.mxu0 0
    %659 = vmatpush.bf16.msra.mxu0 0
    %660 = vmatpush.bf16.msra.mxu0 0
    %661 = vmatpush.bf16.msra.mxu0 0
    %662 = vmatpush.bf16.msra.mxu0 %v352
    %663 = vmatpush.bf16.msra.mxu0 %v320
    %664 = vmatmul.bf16.gmra.mxu0 %v433
    %v665 = vpop.f32.mrf.mxu0
    %v666 = vadd.f32 0.0, %v665
    %v667 = vpop.f32.mrf.mxu0
    %668 = vdwg.mxu0
    %669 = vmatpush.bf16.msra.mxu0 0
    %670 = vmatpush.bf16.msra.mxu0 0
    %671 = vmatpush.bf16.msra.mxu0 0
    %672 = vmatpush.bf16.msra.mxu0 0
    %673 = vmatpush.bf16.msra.mxu0 0
    %674 = vmatpush.bf16.msra.mxu0 0
    %675 = vmatpush.bf16.msra.mxu0 %v353
    %676 = vmatpush.bf16.msra.mxu0 %v321
    %677 = vmatmul.bf16.gmra.mxu0 %v433
    %v678 = vpop.f32.mrf.mxu0
    %v679 = vadd.f32 0.0, %v678
    %v680 = vpop.f32.mrf.mxu0
    %681 = vdwg.mxu0
    %682 = vmatpush.bf16.msra.mxu0 0
    %683 = vmatpush.bf16.msra.mxu0 0
    %684 = vmatpush.bf16.msra.mxu0 0
    %685 = vmatpush.bf16.msra.mxu0 0
    %686 = vmatpush.bf16.msra.mxu0 0
    %687 = vmatpush.bf16.msra.mxu0 0
    %688 = vmatpush.bf16.msra.mxu0 %v354
    %689 = vmatpush.bf16.msra.mxu0 %v322
    %690 = vmatmul.bf16.gmra.mxu0 %v433
    %v691 = vpop.f32.mrf.mxu0
    %v692 = vadd.f32 0.0, %v691
    %v693 = vpop.f32.mrf.mxu0
    %694 = vdwg.mxu0
    %695 = vmatpush.bf16.msra.mxu0 0
    %696 = vmatpush.bf16.msra.mxu0 0
    %697 = vmatpush.bf16.msra.mxu0 0
    %698 = vmatpush.bf16.msra.mxu0 0
    %699 = vmatpush.bf16.msra.mxu0 0
    %700 = vmatpush.bf16.msra.mxu0 0
    %701 = vmatpush.bf16.msra.mxu0 %v355
    %702 = vmatpush.bf16.msra.mxu0 %v323
    %703 = vmatmul.bf16.gmra.mxu0 %v433
    %v704 = vpop.f32.mrf.mxu0
    %v705 = vadd.f32 0.0, %v704
    %v706 = vpop.f32.mrf.mxu0
    %707 = vdwg.mxu0
    %708 = vmatpush.bf16.msra.mxu0 0
    %709 = vmatpush.bf16.msra.mxu0 0
    %710 = vmatpush.bf16.msra.mxu0 0
    %711 = vmatpush.bf16.msra.mxu0 0
    %712 = vmatpush.bf16.msra.mxu0 0
    %713 = vmatpush.bf16.msra.mxu0 0
    %714 = vmatpush.bf16.msra.mxu0 %v356
    %715 = vmatpush.bf16.msra.mxu0 %v324
    %716 = vmatmul.bf16.gmra.mxu0 %v433
    %v717 = vpop.f32.mrf.mxu0
    %v718 = vadd.f32 0.0, %v717
    %v719 = vpop.f32.mrf.mxu0
    %720 = vdwg.mxu0
    %721 = vmatpush.bf16.msra.mxu0 0
    %722 = vmatpush.bf16.msra.mxu0 0
    %723 = vmatpush.bf16.msra.mxu0 0
    %724 = vmatpush.bf16.msra.mxu0 0
    %725 = vmatpush.bf16.msra.mxu0 0
    %726 = vmatpush.bf16.msra.mxu0 0
    %727 = vmatpush.bf16.msra.mxu0 %v357
    %728 = vmatpush.bf16.msra.mxu0 %v325
    %729 = vmatmul.bf16.gmra.mxu0 %v433
    %v730 = vpop.f32.mrf.mxu0
    %v731 = vadd.f32 0.0, %v730
    %v732 = vpop.f32.mrf.mxu0
    %733 = vdwg.mxu0
    %734 = vmatpush.bf16.msra.mxu0 0
    %735 = vmatpush.bf16.msra.mxu0 0
    %736 = vmatpush.bf16.msra.mxu0 0
    %737 = vmatpush.bf16.msra.mxu0 0
    %738 = vmatpush.bf16.msra.mxu0 0
    %739 = vmatpush.bf16.msra.mxu0 0
    %740 = vmatpush.bf16.msra.mxu0 %v358
    %741 = vmatpush.bf16.msra.mxu0 %v326
    %742 = vmatmul.bf16.gmra.mxu0 %v433
    %v743 = vpop.f32.mrf.mxu0
    %v744 = vadd.f32 0.0, %v743
    %v745 = vpop.f32.mrf.mxu0
    %746 = vdwg.mxu0
    %747 = vmatpush.bf16.msra.mxu0 0
    %748 = vmatpush.bf16.msra.mxu0 0
    %749 = vmatpush.bf16.msra.mxu0 0
    %750 = vmatpush.bf16.msra.mxu0 0
    %751 = vmatpush.bf16.msra.mxu0 0
    %752 = vmatpush.bf16.msra.mxu0 0
    %753 = vmatpush.bf16.msra.mxu0 %v359
    %754 = vmatpush.bf16.msra.mxu0 %v327
    %755 = vmatmul.bf16.gmra.mxu0 %v433
    %v756 = vpop.f32.mrf.mxu0
    %v757 = vadd.f32 0.0, %v756
    %v758 = vpop.f32.mrf.mxu0
    %759 = vdwg.mxu0
    %760 = vmatpush.bf16.msra.mxu0 0
    %761 = vmatpush.bf16.msra.mxu0 0
    %762 = vmatpush.bf16.msra.mxu0 0
    %763 = vmatpush.bf16.msra.mxu0 0
    %764 = vmatpush.bf16.msra.mxu0 0
    %765 = vmatpush.bf16.msra.mxu0 0
    %766 = vmatpush.bf16.msra.mxu0 %v360
    %767 = vmatpush.bf16.msra.mxu0 %v328
    %768 = vmatmul.bf16.gmra.mxu0 %v433
    %v769 = vpop.f32.mrf.mxu0
    %v770 = vadd.f32 0.0, %v769
    %v771 = vpop.f32.mrf.mxu0
    %772 = vdwg.mxu0
    %773 = vmatpush.bf16.msra.mxu0 0
    %774 = vmatpush.bf16.msra.mxu0 0
    %775 = vmatpush.bf16.msra.mxu0 0
    %776 = vmatpush.bf16.msra.mxu0 0
    %777 = vmatpush.bf16.msra.mxu0 0
    %778 = vmatpush.bf16.msra.mxu0 0
    %779 = vmatpush.bf16.msra.mxu0 %v361
    %780 = vmatpush.bf16.msra.mxu0 %v329
    %781 = vmatmul.bf16.gmra.mxu0 %v433
    %v782 = vpop.f32.mrf.mxu0
    %v783 = vadd.f32 0.0, %v782
    %v784 = vpop.f32.mrf.mxu0
    %785 = vdwg.mxu0
    %786 = vmatpush.bf16.msra.mxu0 0
    %787 = vmatpush.bf16.msra.mxu0 0
    %788 = vmatpush.bf16.msra.mxu0 0
    %789 = vmatpush.bf16.msra.mxu0 0
    %790 = vmatpush.bf16.msra.mxu0 0
    %791 = vmatpush.bf16.msra.mxu0 0
    %792 = vmatpush.bf16.msra.mxu0 %v362
    %793 = vmatpush.bf16.msra.mxu0 %v330
    %794 = vmatmul.bf16.gmra.mxu0 %v433
    %v795 = vpop.f32.mrf.mxu0
    %v796 = vadd.f32 0.0, %v795
    %v797 = vpop.f32.mrf.mxu0
    %798 = vdwg.mxu0
    %799 = vmatpush.bf16.msra.mxu0 0
    %800 = vmatpush.bf16.msra.mxu0 0
    %801 = vmatpush.bf16.msra.mxu0 0
    %802 = vmatpush.bf16.msra.mxu0 0
    %803 = vmatpush.bf16.msra.mxu0 0
    %804 = vmatpush.bf16.msra.mxu0 0
    %805 = vmatpush.bf16.msra.mxu0 %v363
    %806 = vmatpush.bf16.msra.mxu0 %v331
    %807 = vmatmul.bf16.gmra.mxu0 %v433
    %v808 = vpop.f32.mrf.mxu0
    %v809 = vadd.f32 0.0, %v808
    %v810 = vpop.f32.mrf.mxu0
    %811 = vdwg.mxu0
    %812 = vmatpush.bf16.msra.mxu0 0
    %813 = vmatpush.bf16.msra.mxu0 0
    %814 = vmatpush.bf16.msra.mxu0 0
    %815 = vmatpush.bf16.msra.mxu0 0
    %816 = vmatpush.bf16.msra.mxu0 0
    %817 = vmatpush.bf16.msra.mxu0 0
    %818 = vmatpush.bf16.msra.mxu0 %v364
    %819 = vmatpush.bf16.msra.mxu0 %v332
    %820 = vmatmul.bf16.gmra.mxu0 %v433
    %v821 = vpop.f32.mrf.mxu0
    %v822 = vadd.f32 0.0, %v821
    %v823 = vpop.f32.mrf.mxu0
    %824 = vdwg.mxu0
    %825 = vmatpush.bf16.msra.mxu0 0
    %826 = vmatpush.bf16.msra.mxu0 0
    %827 = vmatpush.bf16.msra.mxu0 0
    %828 = vmatpush.bf16.msra.mxu0 0
    %829 = vmatpush.bf16.msra.mxu0 0
    %830 = vmatpush.bf16.msra.mxu0 0
    %831 = vmatpush.bf16.msra.mxu0 %v365
    %832 = vmatpush.bf16.msra.mxu0 %v333
    %833 = vmatmul.bf16.gmra.mxu0 %v433
    %v834 = vpop.f32.mrf.mxu0
    %v835 = vadd.f32 0.0, %v834
    %v836 = vpop.f32.mrf.mxu0
    %837 = vdwg.mxu0
    %838 = vmatpush.bf16.msra.mxu0 0
    %839 = vmatpush.bf16.msra.mxu0 0
    %840 = vmatpush.bf16.msra.mxu0 0
    %841 = vmatpush.bf16.msra.mxu0 0
    %842 = vmatpush.bf16.msra.mxu0 0
    %843 = vmatpush.bf16.msra.mxu0 0
    %844 = vmatpush.bf16.msra.mxu0 %v366
    %845 = vmatpush.bf16.msra.mxu0 %v334
    %846 = vmatmul.bf16.gmra.mxu0 %v433
    %v847 = vpop.f32.mrf.mxu0
    %v848 = vadd.f32 0.0, %v847
    %v849 = vpop.f32.mrf.mxu0
    %850 = vdwg.mxu0
    %v851 = vadd.f32 %v445, %v471
    %v852 = vadd.f32 %v458, %v484
    %v853 = vadd.f32 %v851, %v497
    %v854 = vadd.f32 %v852, %v510
    %v855 = vadd.f32 %v853, %v523
    %v856 = vadd.f32 %v854, %v536
    %v857 = vadd.f32 %v855, %v549
    %v858 = vadd.f32 %v856, %v562
    %v859 = vadd.f32 %v857, %v575
    %v860 = vadd.f32 %v858, %v588
    %v861 = vadd.f32 %v859, %v601
    %v862 = vadd.f32 %v860, %v614
    %v863 = vadd.f32 %v861, %v627
    %v864 = vadd.f32 %v862, %v640
    %v865 = vadd.f32 %v863, %v653
    %v866 = vadd.f32 %v864, %v666
    %v867 = vadd.f32 %v865, %v679
    %v868 = vadd.f32 %v866, %v692
    %v869 = vadd.f32 %v867, %v705
    %v870 = vadd.f32 %v868, %v718
    %v871 = vadd.f32 %v869, %v731
    %v872 = vadd.f32 %v870, %v744
    %v873 = vadd.f32 %v871, %v757
    %v874 = vadd.f32 %v872, %v770
    %v875 = vadd.f32 %v873, %v783
    %v876 = vadd.f32 %v874, %v796
    %v877 = vadd.f32 %v875, %v809
    %v878 = vadd.f32 %v876, %v822
    %v879 = vadd.f32 %v877, %v835
    %v880 = vadd.f32 %v878, %v848
    %vm881 = vcmask 1041408
    %v882 = vsel %vm881, %v879, 0.0
    %v883 = vrot.slane %v882, 4
    %v884 = vadd.f32 %v882, %v883
    %v885 = vrot.slane %v884, 2
    %v886 = vadd.f32 %v884, %v885
    %v887 = vrot.slane %v886, 1
    %v888 = vadd.f32 %v886, %v887
    %v889 = vsel %vm881, %v880, 0.0
    %v890 = vrot.slane %v889, 4
    %v891 = vadd.f32 %v889, %v890
    %v892 = vrot.slane %v891, 2
    %v893 = vadd.f32 %v891, %v892
    %v894 = vrot.slane %v893, 1
    %v895 = vadd.f32 %v893, %v894
    %v896 = vrcp.pop 32.0
    %v897 = vmul.f32 32.0, %v896
    %v898 = vsub.f32 1.0, %v897
    %v899 = vmul.f32 %v896, %v898
    %v900 = vadd.f32 %v896, %v899
    %vm901 = vweird.f32 %v896
    %v902 = vsel %vm901, %v896, %v900
    %v903 = vmul.f32 %v888, %v902
    %v904 = vmul.f32 %v895, %v902
    %v905 = vsub.f32 %v445, %v903
    %v906 = vsub.f32 %v458, %v904
    %v907 = vmul.f32 %v905, %v905
    %v908 = vmul.f32 %v906, %v906
    %v909 = vsel %vm881, %v907, 0.0
    %v910 = vrot.slane %v909, 4
    %v911 = vadd.f32 %v909, %v910
    %v912 = vrot.slane %v911, 2
    %v913 = vadd.f32 %v911, %v912
    %v914 = vrot.slane %v913, 1
    %v915 = vadd.f32 %v913, %v914
    %v916 = vsel %vm881, %v908, 0.0
    %v917 = vrot.slane %v916, 4
    %v918 = vadd.f32 %v916, %v917
    %v919 = vrot.slane %v918, 2
    %v920 = vadd.f32 %v918, %v919
    %v921 = vrot.slane %v920, 1
    %v922 = vadd.f32 %v920, %v921
    %v923 = vadd.f32 %v915, 0.0
    %v924 = vadd.f32 %v922, 0.0
    %v925 = vsub.f32 %v471, %v903
    %v926 = vsub.f32 %v484, %v904
    %v927 = vmul.f32 %v925, %v925
    %v928 = vmul.f32 %v926, %v926
    %v929 = vsel %vm881, %v927, 0.0
    %v930 = vrot.slane %v929, 4
    %v931 = vadd.f32 %v929, %v930
    %v932 = vrot.slane %v931, 2
    %v933 = vadd.f32 %v931, %v932
    %v934 = vrot.slane %v933, 1
    %v935 = vadd.f32 %v933, %v934
    %v936 = vsel %vm881, %v928, 0.0
    %v937 = vrot.slane %v936, 4
    %v938 = vadd.f32 %v936, %v937
    %v939 = vrot.slane %v938, 2
    %v940 = vadd.f32 %v938, %v939
    %v941 = vrot.slane %v940, 1
    %v942 = vadd.f32 %v940, %v941
    %v943 = vadd.f32 %v923, %v935
    %v944 = vadd.f32 %v924, %v942
    %v945 = vsub.f32 %v497, %v903
    %v946 = vsub.f32 %v510, %v904
    %v947 = vmul.f32 %v945, %v945
    %v948 = vmul.f32 %v946, %v946
    %v949 = vsel %vm881, %v947, 0.0
    %v950 = vrot.slane %v949, 4
    %v951 = vadd.f32 %v949, %v950
    %v952 = vrot.slane %v951, 2
    %v953 = vadd.f32 %v951, %v952
    %v954 = vrot.slane %v953, 1
    %v955 = vadd.f32 %v953, %v954
    %v956 = vsel %vm881, %v948, 0.0
    %v957 = vrot.slane %v956, 4
    %v958 = vadd.f32 %v956, %v957
    %v959 = vrot.slane %v958, 2
    %v960 = vadd.f32 %v958, %v959
    %v961 = vrot.slane %v960, 1
    %v962 = vadd.f32 %v960, %v961
    %v963 = vadd.f32 %v943, %v955
    %v964 = vadd.f32 %v944, %v962
    %v965 = vsub.f32 %v523, %v903
    %v966 = vsub.f32 %v536, %v904
    %v967 = vmul.f32 %v965, %v965
    %v968 = vmul.f32 %v966, %v966
    %v969 = vsel %vm881, %v967, 0.0
    %v970 = vrot.slane %v969, 4
    %v971 = vadd.f32 %v969, %v970
    %v972 = vrot.slane %v971, 2
    %v973 = vadd.f32 %v971, %v972
    %v974 = vrot.slane %v973, 1
    %v975 = vadd.f32 %v973, %v974
    %v976 = vsel %vm881, %v968, 0.0
    %v977 = vrot.slane %v976, 4
    %v978 = vadd.f32 %v976, %v977
    %v979 = vrot.slane %v978, 2
    %v980 = vadd.f32 %v978, %v979
    %v981 = vrot.slane %v980, 1
    %v982 = vadd.f32 %v980, %v981
    %v983 = vadd.f32 %v963, %v975
    %v984 = vadd.f32 %v964, %v982
    %v985 = vsub.f32 %v549, %v903
    %v986 = vsub.f32 %v562, %v904
    %v987 = vmul.f32 %v985, %v985
    %v988 = vmul.f32 %v986, %v986
    %v989 = vsel %vm881, %v987, 0.0
    %v990 = vrot.slane %v989, 4
    %v991 = vadd.f32 %v989, %v990
    %v992 = vrot.slane %v991, 2
    %v993 = vadd.f32 %v991, %v992
    %v994 = vrot.slane %v993, 1
    %v995 = vadd.f32 %v993, %v994
    %v996 = vsel %vm881, %v988, 0.0
    %v997 = vrot.slane %v996, 4
    %v998 = vadd.f32 %v996, %v997
    %v999 = vrot.slane %v998, 2
    %v1000 = vadd.f32 %v998, %v999
    %v1001 = vrot.slane %v1000, 1
    %v1002 = vadd.f32 %v1000, %v1001
    %v1003 = vadd.f32 %v983, %v995
    %v1004 = vadd.f32 %v984, %v1002
    %v1005 = vsub.f32 %v575, %v903
    %v1006 = vsub.f32 %v588, %v904
    %v1007 = vmul.f32 %v1005, %v1005
    %v1008 = vmul.f32 %v1006, %v1006
    %v1009 = vsel %vm881, %v1007, 0.0
    %v1010 = vrot.slane %v1009, 4
    %v1011 = vadd.f32 %v1009, %v1010
    %v1012 = vrot.slane %v1011, 2
    %v1013 = vadd.f32 %v1011, %v1012
    %v1014 = vrot.slane %v1013, 1
    %v1015 = vadd.f32 %v1013, %v1014
    %v1016 = vsel %vm881, %v1008, 0.0
    %v1017 = vrot.slane %v1016, 4
    %v1018 = vadd.f32 %v1016, %v1017
    %v1019 = vrot.slane %v1018, 2
    %v1020 = vadd.f32 %v1018, %v1019
    %v1021 = vrot.slane %v1020, 1
    %v1022 = vadd.f32 %v1020, %v1021
    %v1023 = vadd.f32 %v1003, %v1015
    %v1024 = vadd.f32 %v1004, %v1022
    %v1025 = vsub.f32 %v601, %v903
    %v1026 = vsub.f32 %v614, %v904
    %v1027 = vmul.f32 %v1025, %v1025
    %v1028 = vmul.f32 %v1026, %v1026
    %v1029 = vsel %vm881, %v1027, 0.0
    %v1030 = vrot.slane %v1029, 4
    %v1031 = vadd.f32 %v1029, %v1030
    %v1032 = vrot.slane %v1031, 2
    %v1033 = vadd.f32 %v1031, %v1032
    %v1034 = vrot.slane %v1033, 1
    %v1035 = vadd.f32 %v1033, %v1034
    %v1036 = vsel %vm881, %v1028, 0.0
    %v1037 = vrot.slane %v1036, 4
    %v1038 = vadd.f32 %v1036, %v1037
    %v1039 = vrot.slane %v1038, 2
    %v1040 = vadd.f32 %v1038, %v1039
    %v1041 = vrot.slane %v1040, 1
    %v1042 = vadd.f32 %v1040, %v1041
    %v1043 = vadd.f32 %v1023, %v1035
    %v1044 = vadd.f32 %v1024, %v1042
    %v1045 = vsub.f32 %v627, %v903
    %v1046 = vsub.f32 %v640, %v904
    %v1047 = vmul.f32 %v1045, %v1045
    %v1048 = vmul.f32 %v1046, %v1046
    %v1049 = vsel %vm881, %v1047, 0.0
    %v1050 = vrot.slane %v1049, 4
    %v1051 = vadd.f32 %v1049, %v1050
    %v1052 = vrot.slane %v1051, 2
    %v1053 = vadd.f32 %v1051, %v1052
    %v1054 = vrot.slane %v1053, 1
    %v1055 = vadd.f32 %v1053, %v1054
    %v1056 = vsel %vm881, %v1048, 0.0
    %v1057 = vrot.slane %v1056, 4
    %v1058 = vadd.f32 %v1056, %v1057
    %v1059 = vrot.slane %v1058, 2
    %v1060 = vadd.f32 %v1058, %v1059
    %v1061 = vrot.slane %v1060, 1
    %v1062 = vadd.f32 %v1060, %v1061
    %v1063 = vadd.f32 %v1043, %v1055
    %v1064 = vadd.f32 %v1044, %v1062
    %v1065 = vsub.f32 %v653, %v903
    %v1066 = vsub.f32 %v666, %v904
    %v1067 = vmul.f32 %v1065, %v1065
    %v1068 = vmul.f32 %v1066, %v1066
    %v1069 = vsel %vm881, %v1067, 0.0
    %v1070 = vrot.slane %v1069, 4
    %v1071 = vadd.f32 %v1069, %v1070
    %v1072 = vrot.slane %v1071, 2
    %v1073 = vadd.f32 %v1071, %v1072
    %v1074 = vrot.slane %v1073, 1
    %v1075 = vadd.f32 %v1073, %v1074
    %v1076 = vsel %vm881, %v1068, 0.0
    %v1077 = vrot.slane %v1076, 4
    %v1078 = vadd.f32 %v1076, %v1077
    %v1079 = vrot.slane %v1078, 2
    %v1080 = vadd.f32 %v1078, %v1079
    %v1081 = vrot.slane %v1080, 1
    %v1082 = vadd.f32 %v1080, %v1081
    %v1083 = vadd.f32 %v1063, %v1075
    %v1084 = vadd.f32 %v1064, %v1082
    %v1085 = vsub.f32 %v679, %v903
    %v1086 = vsub.f32 %v692, %v904
    %v1087 = vmul.f32 %v1085, %v1085
    %v1088 = vmul.f32 %v1086, %v1086
    %v1089 = vsel %vm881, %v1087, 0.0
    %v1090 = vrot.slane %v1089, 4
    %v1091 = vadd.f32 %v1089, %v1090
    %v1092 = vrot.slane %v1091, 2
    %v1093 = vadd.f32 %v1091, %v1092
    %v1094 = vrot.slane %v1093, 1
    %v1095 = vadd.f32 %v1093, %v1094
    %v1096 = vsel %vm881, %v1088, 0.0
    %v1097 = vrot.slane %v1096, 4
    %v1098 = vadd.f32 %v1096, %v1097
    %v1099 = vrot.slane %v1098, 2
    %v1100 = vadd.f32 %v1098, %v1099
    %v1101 = vrot.slane %v1100, 1
    %v1102 = vadd.f32 %v1100, %v1101
    %v1103 = vadd.f32 %v1083, %v1095
    %v1104 = vadd.f32 %v1084, %v1102
    %v1105 = vsub.f32 %v705, %v903
    %v1106 = vsub.f32 %v718, %v904
    %v1107 = vmul.f32 %v1105, %v1105
    %v1108 = vmul.f32 %v1106, %v1106
    %v1109 = vsel %vm881, %v1107, 0.0
    %v1110 = vrot.slane %v1109, 4
    %v1111 = vadd.f32 %v1109, %v1110
    %v1112 = vrot.slane %v1111, 2
    %v1113 = vadd.f32 %v1111, %v1112
    %v1114 = vrot.slane %v1113, 1
    %v1115 = vadd.f32 %v1113, %v1114
    %v1116 = vsel %vm881, %v1108, 0.0
    %v1117 = vrot.slane %v1116, 4
    %v1118 = vadd.f32 %v1116, %v1117
    %v1119 = vrot.slane %v1118, 2
    %v1120 = vadd.f32 %v1118, %v1119
    %v1121 = vrot.slane %v1120, 1
    %v1122 = vadd.f32 %v1120, %v1121
    %v1123 = vadd.f32 %v1103, %v1115
    %v1124 = vadd.f32 %v1104, %v1122
    %v1125 = vsub.f32 %v731, %v903
    %v1126 = vsub.f32 %v744, %v904
    %v1127 = vmul.f32 %v1125, %v1125
    %v1128 = vmul.f32 %v1126, %v1126
    %v1129 = vsel %vm881, %v1127, 0.0
    %v1130 = vrot.slane %v1129, 4
    %v1131 = vadd.f32 %v1129, %v1130
    %v1132 = vrot.slane %v1131, 2
    %v1133 = vadd.f32 %v1131, %v1132
    %v1134 = vrot.slane %v1133, 1
    %v1135 = vadd.f32 %v1133, %v1134
    %v1136 = vsel %vm881, %v1128, 0.0
    %v1137 = vrot.slane %v1136, 4
    %v1138 = vadd.f32 %v1136, %v1137
    %v1139 = vrot.slane %v1138, 2
    %v1140 = vadd.f32 %v1138, %v1139
    %v1141 = vrot.slane %v1140, 1
    %v1142 = vadd.f32 %v1140, %v1141
    %v1143 = vadd.f32 %v1123, %v1135
    %v1144 = vadd.f32 %v1124, %v1142
    %v1145 = vsub.f32 %v757, %v903
    %v1146 = vsub.f32 %v770, %v904
    %v1147 = vmul.f32 %v1145, %v1145
    %v1148 = vmul.f32 %v1146, %v1146
    %v1149 = vsel %vm881, %v1147, 0.0
    %v1150 = vrot.slane %v1149, 4
    %v1151 = vadd.f32 %v1149, %v1150
    %v1152 = vrot.slane %v1151, 2
    %v1153 = vadd.f32 %v1151, %v1152
    %v1154 = vrot.slane %v1153, 1
    %v1155 = vadd.f32 %v1153, %v1154
    %v1156 = vsel %vm881, %v1148, 0.0
    %v1157 = vrot.slane %v1156, 4
    %v1158 = vadd.f32 %v1156, %v1157
    %v1159 = vrot.slane %v1158, 2
    %v1160 = vadd.f32 %v1158, %v1159
    %v1161 = vrot.slane %v1160, 1
    %v1162 = vadd.f32 %v1160, %v1161
    %v1163 = vadd.f32 %v1143, %v1155
    %v1164 = vadd.f32 %v1144, %v1162
    %v1165 = vsub.f32 %v783, %v903
    %v1166 = vsub.f32 %v796, %v904
    %v1167 = vmul.f32 %v1165, %v1165
    %v1168 = vmul.f32 %v1166, %v1166
    %v1169 = vsel %vm881, %v1167, 0.0
    %v1170 = vrot.slane %v1169, 4
    %v1171 = vadd.f32 %v1169, %v1170
    %v1172 = vrot.slane %v1171, 2
    %v1173 = vadd.f32 %v1171, %v1172
    %v1174 = vrot.slane %v1173, 1
    %v1175 = vadd.f32 %v1173, %v1174
    %v1176 = vsel %vm881, %v1168, 0.0
    %v1177 = vrot.slane %v1176, 4
    %v1178 = vadd.f32 %v1176, %v1177
    %v1179 = vrot.slane %v1178, 2
    %v1180 = vadd.f32 %v1178, %v1179
    %v1181 = vrot.slane %v1180, 1
    %v1182 = vadd.f32 %v1180, %v1181
    %v1183 = vadd.f32 %v1163, %v1175
    %v1184 = vadd.f32 %v1164, %v1182
    %v1185 = vsub.f32 %v809, %v903
    %v1186 = vsub.f32 %v822, %v904
    %v1187 = vmul.f32 %v1185, %v1185
    %v1188 = vmul.f32 %v1186, %v1186
    %v1189 = vsel %vm881, %v1187, 0.0
    %v1190 = vrot.slane %v1189, 4
    %v1191 = vadd.f32 %v1189, %v1190
    %v1192 = vrot.slane %v1191, 2
    %v1193 = vadd.f32 %v1191, %v1192
    %v1194 = vrot.slane %v1193, 1
    %v1195 = vadd.f32 %v1193, %v1194
    %v1196 = vsel %vm881, %v1188, 0.0
    %v1197 = vrot.slane %v1196, 4
    %v1198 = vadd.f32 %v1196, %v1197
    %v1199 = vrot.slane %v1198, 2
    %v1200 = vadd.f32 %v1198, %v1199
    %v1201 = vrot.slane %v1200, 1
    %v1202 = vadd.f32 %v1200, %v1201
    %v1203 = vadd.f32 %v1183, %v1195
    %v1204 = vadd.f32 %v1184, %v1202
    %v1205 = vsub.f32 %v835, %v903
    %v1206 = vsub.f32 %v848, %v904
    %v1207 = vmul.f32 %v1205, %v1205
    %v1208 = vmul.f32 %v1206, %v1206
    %v1209 = vsel %vm881, %v1207, 0.0
    %v1210 = vrot.slane %v1209, 4
    %v1211 = vadd.f32 %v1209, %v1210
    %v1212 = vrot.slane %v1211, 2
    %v1213 = vadd.f32 %v1211, %v1212
    %v1214 = vrot.slane %v1213, 1
    %v1215 = vadd.f32 %v1213, %v1214
    %v1216 = vsel %vm881, %v1208, 0.0
    %v1217 = vrot.slane %v1216, 4
    %v1218 = vadd.f32 %v1216, %v1217
    %v1219 = vrot.slane %v1218, 2
    %v1220 = vadd.f32 %v1218, %v1219
    %v1221 = vrot.slane %v1220, 1
    %v1222 = vadd.f32 %v1220, %v1221
    %v1223 = vadd.f32 %v1203, %v1215
    %v1224 = vadd.f32 %v1204, %v1222
    %v1225 = vmul.f32 %v1223, %v902
    %v1226 = vmul.f32 %v1224, %v902
    %v1227 = vadd.f32 %v1225, 1e-05
    %v1228 = vadd.f32 %v1226, 1e-05
    %v1229 = vrsqrt.pop %v1227
    %v1230 = vmul.f32 %v1229, %v1227
    %v1231 = vmul.f32 %v1230, %v1229
    %v1232 = vmul.f32 0.5, %v1231
    %v1233 = vsub.f32 1.5, %v1232
    %v1234 = vmul.f32 %v1229, %v1233
    %vm1235 = vweird.f32 %v1227
    %vm1236 = vweird.f32 %v1229
    %vm1237 = vmor %vm1235, %vm1236
    %v1238 = vsel %vm1237, %v1229, %v1234
    %v1239 = vrsqrt.pop %v1228
    %v1240 = vmul.f32 %v1239, %v1228
    %v1241 = vmul.f32 %v1240, %v1239
    %v1242 = vmul.f32 0.5, %v1241
    %v1243 = vsub.f32 1.5, %v1242
    %v1244 = vmul.f32 %v1239, %v1243
    %vm1245 = vweird.f32 %v1228
    %vm1246 = vweird.f32 %v1239
    %vm1247 = vmor %vm1245, %vm1246
    %v1248 = vsel %vm1247, %v1239, %v1244
    %v1249 = vld [vmem:[#allocation2] sm:$0x3]
    %v1250 = vld [vmem:[#allocation4] sm:$0x3]
    %v1251 = vmul.f32 %v905, %v1238
    %v1252 = vmul.f32 %v906, %v1248
    %v1254 = vperm.slane %v1249, 0
    %v1255 = vperm.slane %v1249, 1
    %v1258 = vmul.f32 %v1251, %v1254
    %v1259 = vmul.f32 %v1252, %v1255
    %v1261 = vperm.slane %v1250, 0
    %v1262 = vperm.slane %v1250, 1
    %v1265 = vadd.f32 %v1258, %v1261
    %v1266 = vadd.f32 %v1259, %v1262
    %v1267 = vmax.f32 %v1265, 0.0
    %v1268 = vmax.f32 %v1266, 0.0
    %v1269 = vpack.c.bf16 %v1268, %v1267
    %v1271 = vrot.slane %v1269, 3
    %vm1272 = vcmask 1040384
    %v1275 = vsel %vm1272, %v1269, %v1271
    %1277 = vst [vmem:[%s4] sm:$0x3] %v1275
    %v1278 = vmul.f32 %v925, %v1238
    %v1279 = vmul.f32 %v926, %v1248
    %v1280 = vmul.f32 %v1278, %v1254
    %v1281 = vmul.f32 %v1279, %v1255
    %v1282 = vadd.f32 %v1280, %v1261
    %v1283 = vadd.f32 %v1281, %v1262
    %v1284 = vmax.f32 %v1282, 0.0
    %v1285 = vmax.f32 %v1283, 0.0
    %v1286 = vpack.c.bf16 %v1285, %v1284
    %v1288 = vrot.slane %v1286, 3
    %v1291 = vsel %vm1272, %v1286, %v1288
    %1293 = vst [vmem:[%s4 + $0x2] sm:$0x3] %v1291
    %v1294 = vmul.f32 %v945, %v1238
    %v1295 = vmul.f32 %v946, %v1248
    %v1296 = vmul.f32 %v1294, %v1254
    %v1297 = vmul.f32 %v1295, %v1255
    %v1298 = vadd.f32 %v1296, %v1261
    %v1299 = vadd.f32 %v1297, %v1262
    %v1300 = vmax.f32 %v1298, 0.0
    %v1301 = vmax.f32 %v1299, 0.0
    %v1302 = vpack.c.bf16 %v1301, %v1300
    %v1304 = vrot.slane %v1302, 3
    %v1307 = vsel %vm1272, %v1302, %v1304
    %1309 = vst [vmem:[%s4 + $0x4] sm:$0x3] %v1307
    %v1310 = vmul.f32 %v965, %v1238
    %v1311 = vmul.f32 %v966, %v1248
    %v1312 = vmul.f32 %v1310, %v1254
    %v1313 = vmul.f32 %v1311, %v1255
    %v1314 = vadd.f32 %v1312, %v1261
    %v1315 = vadd.f32 %v1313, %v1262
    %v1316 = vmax.f32 %v1314, 0.0
    %v1317 = vmax.f32 %v1315, 0.0
    %v1318 = vpack.c.bf16 %v1317, %v1316
    %v1320 = vrot.slane %v1318, 3
    %v1323 = vsel %vm1272, %v1318, %v1320
    %1325 = vst [vmem:[%s4 + $0x6] sm:$0x3] %v1323
    %v1326 = vmul.f32 %v985, %v1238
    %v1327 = vmul.f32 %v986, %v1248
    %v1328 = vmul.f32 %v1326, %v1254
    %v1329 = vmul.f32 %v1327, %v1255
    %v1330 = vadd.f32 %v1328, %v1261
    %v1331 = vadd.f32 %v1329, %v1262
    %v1332 = vmax.f32 %v1330, 0.0
    %v1333 = vmax.f32 %v1331, 0.0
    %v1334 = vpack.c.bf16 %v1333, %v1332
    %v1336 = vrot.slane %v1334, 3
    %v1339 = vsel %vm1272, %v1334, %v1336
    %1341 = vst [vmem:[%s4 + $0x8] sm:$0x3] %v1339
    %v1342 = vmul.f32 %v1005, %v1238
    %v1343 = vmul.f32 %v1006, %v1248
    %v1344 = vmul.f32 %v1342, %v1254
    %v1345 = vmul.f32 %v1343, %v1255
    %v1346 = vadd.f32 %v1344, %v1261
    %v1347 = vadd.f32 %v1345, %v1262
    %v1348 = vmax.f32 %v1346, 0.0
    %v1349 = vmax.f32 %v1347, 0.0
    %v1350 = vpack.c.bf16 %v1349, %v1348
    %v1352 = vrot.slane %v1350, 3
    %v1355 = vsel %vm1272, %v1350, %v1352
    %1357 = vst [vmem:[%s4 + $0xa] sm:$0x3] %v1355
    %v1358 = vmul.f32 %v1025, %v1238
    %v1359 = vmul.f32 %v1026, %v1248
    %v1360 = vmul.f32 %v1358, %v1254
    %v1361 = vmul.f32 %v1359, %v1255
    %v1362 = vadd.f32 %v1360, %v1261
    %v1363 = vadd.f32 %v1361, %v1262
    %v1364 = vmax.f32 %v1362, 0.0
    %v1365 = vmax.f32 %v1363, 0.0
    %v1366 = vpack.c.bf16 %v1365, %v1364
    %v1368 = vrot.slane %v1366, 3
    %v1371 = vsel %vm1272, %v1366, %v1368
    %1373 = vst [vmem:[%s4 + $0xc] sm:$0x3] %v1371
    %v1374 = vmul.f32 %v1045, %v1238
    %v1375 = vmul.f32 %v1046, %v1248
    %v1376 = vmul.f32 %v1374, %v1254
    %v1377 = vmul.f32 %v1375, %v1255
    %v1378 = vadd.f32 %v1376, %v1261
    %v1379 = vadd.f32 %v1377, %v1262
    %v1380 = vmax.f32 %v1378, 0.0
    %v1381 = vmax.f32 %v1379, 0.0
    %v1382 = vpack.c.bf16 %v1381, %v1380
    %v1384 = vrot.slane %v1382, 3
    %v1387 = vsel %vm1272, %v1382, %v1384
    %1389 = vst [vmem:[%s4 + $0xe] sm:$0x3] %v1387
    %v1390 = vmul.f32 %v1065, %v1238
    %v1391 = vmul.f32 %v1066, %v1248
    %v1392 = vmul.f32 %v1390, %v1254
    %v1393 = vmul.f32 %v1391, %v1255
    %v1394 = vadd.f32 %v1392, %v1261
    %v1395 = vadd.f32 %v1393, %v1262
    %v1396 = vmax.f32 %v1394, 0.0
    %v1397 = vmax.f32 %v1395, 0.0
    %v1398 = vpack.c.bf16 %v1397, %v1396
    %v1400 = vrot.slane %v1398, 3
    %v1403 = vsel %vm1272, %v1398, %v1400
    %1405 = vst [vmem:[%s4 + $0x10] sm:$0x3] %v1403
    %v1406 = vmul.f32 %v1085, %v1238
    %v1407 = vmul.f32 %v1086, %v1248
    %v1408 = vmul.f32 %v1406, %v1254
    %v1409 = vmul.f32 %v1407, %v1255
    %v1410 = vadd.f32 %v1408, %v1261
    %v1411 = vadd.f32 %v1409, %v1262
    %v1412 = vmax.f32 %v1410, 0.0
    %v1413 = vmax.f32 %v1411, 0.0
    %v1414 = vpack.c.bf16 %v1413, %v1412
    %v1416 = vrot.slane %v1414, 3
    %v1419 = vsel %vm1272, %v1414, %v1416
    %1421 = vst [vmem:[%s4 + $0x12] sm:$0x3] %v1419
    %v1422 = vmul.f32 %v1105, %v1238
    %v1423 = vmul.f32 %v1106, %v1248
    %v1424 = vmul.f32 %v1422, %v1254
    %v1425 = vmul.f32 %v1423, %v1255
    %v1426 = vadd.f32 %v1424, %v1261
    %v1427 = vadd.f32 %v1425, %v1262
    %v1428 = vmax.f32 %v1426, 0.0
    %v1429 = vmax.f32 %v1427, 0.0
    %v1430 = vpack.c.bf16 %v1429, %v1428
    %v1432 = vrot.slane %v1430, 3
    %v1435 = vsel %vm1272, %v1430, %v1432
    %1437 = vst [vmem:[%s4 + $0x14] sm:$0x3] %v1435
    %v1438 = vmul.f32 %v1125, %v1238
    %v1439 = vmul.f32 %v1126, %v1248
    %v1440 = vmul.f32 %v1438, %v1254
    %v1441 = vmul.f32 %v1439, %v1255
    %v1442 = vadd.f32 %v1440, %v1261
    %v1443 = vadd.f32 %v1441, %v1262
    %v1444 = vmax.f32 %v1442, 0.0
    %v1445 = vmax.f32 %v1443, 0.0
    %v1446 = vpack.c.bf16 %v1445, %v1444
    %v1448 = vrot.slane %v1446, 3
    %v1451 = vsel %vm1272, %v1446, %v1448
    %1453 = vst [vmem:[%s4 + $0x16] sm:$0x3] %v1451
    %v1454 = vmul.f32 %v1145, %v1238
    %v1455 = vmul.f32 %v1146, %v1248
    %v1456 = vmul.f32 %v1454, %v1254
    %v1457 = vmul.f32 %v1455, %v1255
    %v1458 = vadd.f32 %v1456, %v1261
    %v1459 = vadd.f32 %v1457, %v1262
    %v1460 = vmax.f32 %v1458, 0.0
    %v1461 = vmax.f32 %v1459, 0.0
    %v1462 = vpack.c.bf16 %v1461, %v1460
    %v1464 = vrot.slane %v1462, 3
    %v1467 = vsel %vm1272, %v1462, %v1464
    %1469 = vst [vmem:[%s4 + $0x18] sm:$0x3] %v1467
    %v1470 = vmul.f32 %v1165, %v1238
    %v1471 = vmul.f32 %v1166, %v1248
    %v1472 = vmul.f32 %v1470, %v1254
    %v1473 = vmul.f32 %v1471, %v1255
    %v1474 = vadd.f32 %v1472, %v1261
    %v1475 = vadd.f32 %v1473, %v1262
    %v1476 = vmax.f32 %v1474, 0.0
    %v1477 = vmax.f32 %v1475, 0.0
    %v1478 = vpack.c.bf16 %v1477, %v1476
    %v1480 = vrot.slane %v1478, 3
    %v1483 = vsel %vm1272, %v1478, %v1480
    %1485 = vst [vmem:[%s4 + $0x1a] sm:$0x3] %v1483
    %v1486 = vmul.f32 %v1185, %v1238
    %v1487 = vmul.f32 %v1186, %v1248
    %v1488 = vmul.f32 %v1486, %v1254
    %v1489 = vmul.f32 %v1487, %v1255
    %v1490 = vadd.f32 %v1488, %v1261
    %v1491 = vadd.f32 %v1489, %v1262
    %v1492 = vmax.f32 %v1490, 0.0
    %v1493 = vmax.f32 %v1491, 0.0
    %v1494 = vpack.c.bf16 %v1493, %v1492
    %v1496 = vrot.slane %v1494, 3
    %v1499 = vsel %vm1272, %v1494, %v1496
    %1501 = vst [vmem:[%s4 + $0x1c] sm:$0x3] %v1499
    %v1502 = vmul.f32 %v1205, %v1238
    %v1503 = vmul.f32 %v1206, %v1248
    %v1504 = vmul.f32 %v1502, %v1254
    %v1505 = vmul.f32 %v1503, %v1255
    %v1506 = vadd.f32 %v1504, %v1261
    %v1507 = vadd.f32 %v1505, %v1262
    %v1508 = vmax.f32 %v1506, 0.0
    %v1509 = vmax.f32 %v1507, 0.0
    %v1510 = vpack.c.bf16 %v1509, %v1508
    %v1512 = vrot.slane %v1510, 3
    %v1515 = vsel %vm1272, %v1510, %v1512
    %1517 = vst [vmem:[%s4 + $0x1e] sm:$0x3] %v1515
    // Predicated region
    $region26: #{generator_forward.4} parent=1 // pred_check
      _
    $region27: #{generator_forward.4} parent=1 // pred_check_branch
      %1519 = sbr.rel (0) target = $region29
    $region28: #{generator_forward.4} parent=1 // pred_region
      _
    $region29: #{generator_forward.4} parent=1 // pred_fallthru
      _
    // Predicated region
    $region30: #{generator_forward.4} parent=1 // pred_check
      _
    $region31: #{generator_forward.4} parent=1 // pred_check_branch
      %1521 = sbr.rel (0) target = $region33
    $region32: #{generator_forward.4} parent=1 // pred_region
      _
    $region33: #{generator_forward.4} parent=1 // pred_fallthru
      _
    %1522 = vsyncpa [#allocation3], 1
    %1523 = vsyncpa [#allocation5], 1

// kernel: generator_forward.5
$region0: #{generator_forward.5}
  #allocation0 [shape = 'u32[]', space=smem, size = 0x4, offset = 0x4, fixed_abs, tag = 'smem constant byte address 0x4 - core index']
  #allocation1 [shape = 'u32[72,128]{1,0:T(1,128)}', space=vmem, size = 0x9000, scoped, tag = 'internal scratch']
  #allocation2 [shape = 'f32[4,32,128]{2,1,0:T(8,128)}', space=vmem, size = 0x10000, scoped, tag = 'scratch operand']
  %s0 = inlined_call_operand.vmem [shape: bf16[4,32,1024], index: 0, kind: input, shape index: {}]
  %s1 = inlined_call_operand.vmem [shape: bf16[4,1024,128], index: 1, kind: input, shape index: {}]
  %s2 = inlined_call_operand.vmem [shape: f32[1,128], index: 2, kind: input, shape index: {}]
  %s3 = inlined_call_operand.vmem [shape: f32[1,128], index: 3, kind: input, shape index: {}]
  %s4 = inlined_call_operand.vmem [shape: bf16[4,32,128], index: 4, kind: output, shape index: {}]
  %s5 = sld [smem:[#allocation0]]
  $region53: #{generator_forward.5} parent=0
    _
  %s7 = ssub.s32 1, %s5
  %s8 = scalar_select 0, %s7, %s5
  loop: start=0, step=1, limit=6
  $region2: #{generator_forward.5} parent=0 // loop_pre_header
    _
  $region3: #{generator_forward.5} parent=0 // loop_header
    %s10 = sphi 0, %s14
    %p11 = scmp.ge.s32.totalorder %s10, 6
    %s20 = sphi 0, %s22
    %s23 = sphi 0, %s20
    %s24 = sphi 0, %s23
    %s40 = sphi 0, %s24
    %s46 = sphi 0, %s48
    %s49 = sphi 0, %s46
    %s50 = sphi 0, %s49
    %s66 = sphi 0, %s50
    %s70 = sphi 0, %s70
    %s72 = sphi 0, %s70
    %s73 = sphi 0, %s72
    %s87 = sphi 0, %s73
    %s91 = sphi 0, %s91
    %s93 = sphi 0, %s91
    %s94 = sphi 0, %s93
    %s108 = sphi 0, %s94
    %s112 = sphi 0, %s112
    %s114 = sphi 0, %s112
    %s115 = sphi 0, %s114
    %s129 = sphi 0, %s115
  $region4: #{generator_forward.5} parent=0 // loop_header_branch
    %13 = sbr.rel (%p11) target = $region8
  $region5: #{generator_forward.5} parent=0 // loop_body
    %s15 = ssub.s32 %s10, 1
    %s16 = ssub.s32 %s10, 2
    %s17 = sadd.s32 %s10, 1
    %s18 = ssub.s32 %s10, %s17
    %p19 = scmp.eq.s32.totalorder %s18, 0
    %s21 = sadd.s32 %s20, 1
    %s22 = scalar_select %p19, %s20, %s21
    %p25 = pneg %p19
    %p26 = scmp.eq.s32.totalorder %s10, 3
    %p27 = por %p25, %p26
    %p28 = scmp.ne.s32.totalorder %s20, %s23
    %p29 = scmp.eq.s32.totalorder %s10, 0
    %p30 = por %p28, %p29
    %p31 = scmp.ne.s32.totalorder %s20, %s23
    %p32 = scmp.eq.s32.totalorder %s15, 3
    %p33 = por %p31, %p32
    %p34 = scmp.ne.s32.totalorder %s23, %s24
    %p35 = scmp.eq.s32.totalorder %s15, 0
    %p36 = por %p34, %p35
    %p37 = scmp.ne.s32.totalorder %s23, %s24
    %p38 = scmp.eq.s32.totalorder %s16, 3
    %p39 = por %p37, %p38
    %p41 = scmp.ne.s32.totalorder %s24, %s40
    %p42 = scmp.eq.s32.totalorder %s16, 0
    %p43 = por %p41, %p42
    %s44 = ssub.s32 %s10, %s17
    %p45 = scmp.eq.s32.totalorder %s44, 0
    %s47 = sadd.s32 %s46, 1
    %s48 = scalar_select %p45, %s46, %s47
    %p51 = pneg %p45
    %p52 = scmp.eq.s32.totalorder %s10, 3
    %p53 = por %p51, %p52
    %p54 = scmp.ne.s32.totalorder %s46, %s49
    %p55 = scmp.eq.s32.totalorder %s10, 0
    %p56 = por %p54, %p55
    %p57 = scmp.ne.s32.totalorder %s46, %s49
    %p58 = scmp.eq.s32.totalorder %s15, 3
    %p59 = por %p57, %p58
    %p60 = scmp.ne.s32.totalorder %s49, %s50
    %p61 = scmp.eq.s32.totalorder %s15, 0
    %p62 = por %p60, %p61
    %p63 = scmp.ne.s32.totalorder %s49, %s50
    %p64 = scmp.eq.s32.totalorder %s16, 3
    %p65 = por %p63, %p64
    %p67 = scmp.ne.s32.totalorder %s50, %s66
    %p68 = scmp.eq.s32.totalorder %s16, 0
    %p69 = por %p67, %p68
    %s71 = sadd.s32 %s70, 1
    %p74 = scmp.eq.s32.totalorder %s10, 3
    %p75 = scmp.ne.s32.totalorder %s70, %s72
    %p76 = scmp.eq.s32.totalorder %s10, 0
    %p77 = por %p75, %p76
    %p78 = scmp.ne.s32.totalorder %s70, %s72
    %p79 = scmp.eq.s32.totalorder %s15, 3
    %p80 = por %p78, %p79
    %p81 = scmp.ne.s32.totalorder %s72, %s73
    %p82 = scmp.eq.s32.totalorder %s15, 0
    %p83 = por %p81, %p82
    %p84 = scmp.ne.s32.totalorder %s72, %s73
    %p85 = scmp.eq.s32.totalorder %s16, 3
    %p86 = por %p84, %p85
    %p88 = scmp.ne.s32.totalorder %s73, %s87
    %p89 = scmp.eq.s32.totalorder %s16, 0
    %p90 = por %p88, %p89
    %s92 = sadd.s32 %s91, 1
    %p95 = scmp.eq.s32.totalorder %s10, 3
    %p96 = scmp.ne.s32.totalorder %s91, %s93
    %p97 = scmp.eq.s32.totalorder %s10, 0
    %p98 = por %p96, %p97
    %p99 = scmp.ne.s32.totalorder %s91, %s93
    %p100 = scmp.eq.s32.totalorder %s15, 3
    %p101 = por %p99, %p100
    %p102 = scmp.ne.s32.totalorder %s93, %s94
    %p103 = scmp.eq.s32.totalorder %s15, 0
    %p104 = por %p102, %p103
    %p105 = scmp.ne.s32.totalorder %s93, %s94
    %p106 = scmp.eq.s32.totalorder %s16, 3
    %p107 = por %p105, %p106
    %p109 = scmp.ne.s32.totalorder %s94, %s108
    %p110 = scmp.eq.s32.totalorder %s16, 0
    %p111 = por %p109, %p110
    %s113 = sadd.s32 %s112, 1
    %p116 = scmp.eq.s32.totalorder %s10, 3
    %p117 = scmp.ne.s32.totalorder %s112, %s114
    %p118 = scmp.eq.s32.totalorder %s10, 0
    %p119 = por %p117, %p118
    %p120 = scmp.ne.s32.totalorder %s112, %s114
    %p121 = scmp.eq.s32.totalorder %s15, 3
    %p122 = por %p120, %p121
    %p123 = scmp.ne.s32.totalorder %s114, %s115
    %p124 = scmp.eq.s32.totalorder %s15, 0
    %p125 = por %p123, %p124
    %p126 = scmp.ne.s32.totalorder %s114, %s115
    %p127 = scmp.eq.s32.totalorder %s16, 3
    %p128 = por %p126, %p127
    %p130 = scmp.ne.s32.totalorder %s115, %s129
    %p131 = scmp.eq.s32.totalorder %s16, 0
    %p132 = por %p130, %p131
    %p133 = scmp.le.s32.totalorder 1, %s10
    %p134 = scmp.lt.s32.totalorder %s10, 5
    %p135 = pnand %p133, %p134
    %p136 = pneg %p135
    // Predicated region
    $region9: #{generator_forward.5} parent=5 // pred_check
      _
    $region10: #{generator_forward.5} parent=5 // pred_check_branch
      %138 = sbr.rel (%p135) target = $region12
    $region11: #{generator_forward.5} parent=5 // pred_region
      %s139 = ssub.s32 %s10, 1
      // Predicated region
      $region13: #{generator_forward.5} parent=11 // pred_check
        %p140 = pneg %p83
      $region14: #{generator_forward.5} parent=11 // pred_check_branch
        %142 = sbr.rel (%p140) target = $region16
      $region15: #{generator_forward.5} parent=11 // pred_region
        _
      $region16: #{generator_forward.5} parent=11 // pred_fallthru
        _
      // Predicated region
      $region17: #{generator_forward.5} parent=11 // pred_check
        %p143 = pneg %p104
      $region18: #{generator_forward.5} parent=11 // pred_check_branch
        %145 = sbr.rel (%p143) target = $region20
      $region19: #{generator_forward.5} parent=11 // pred_region
        _
      $region20: #{generator_forward.5} parent=11 // pred_fallthru
        _
    $region12: #{generator_forward.5} parent=5 // pred_fallthru
      _
    %p146 = scmp.lt.s32.totalorder %s10, 4
    // Predicated region
    $region21: #{generator_forward.5} parent=5 // pred_check
      %p147 = pneg %p146
    $region22: #{generator_forward.5} parent=5 // pred_check_branch
      %149 = sbr.rel (%p147) target = $region24
    $region23: #{generator_forward.5} parent=5 // pred_region
      // Predicated region
      $region25: #{generator_forward.5} parent=23 // pred_check
        %p150 = pneg %p30
      $region26: #{generator_forward.5} parent=23 // pred_check_branch
        %152 = sbr.rel (%p150) target = $region28
      $region27: #{generator_forward.5} parent=23 // pred_region
        %p153 = scmp.lt.s32.totalorder %s10, 3
        %s154 = scalar_select %p153, %s10, 3
        %s155 = smul.addr %s154, 32
        %s156 = smul.addr %s155, 4
        %s157 = scalar_lea.vmem %s0, %s156
      $region28: #{generator_forward.5} parent=23 // pred_fallthru
        _
      // Predicated region
      $region29: #{generator_forward.5} parent=23 // pred_check
        %p158 = pneg %p56
      $region30: #{generator_forward.5} parent=23 // pred_check_branch
        %160 = sbr.rel (%p158) target = $region32
      $region31: #{generator_forward.5} parent=23 // pred_region
        %p161 = scmp.lt.s32.totalorder %s10, 3
        %s162 = scalar_select %p161, %s10, 3
        %s163 = smul.addr %s162, 128
        %s164 = smul.addr %s163, 4
        %s165 = scalar_lea.vmem %s1, %s164
      $region32: #{generator_forward.5} parent=23 // pred_fallthru
        _
    $region24: #{generator_forward.5} parent=5 // pred_fallthru
      _
    %p166 = scmp.le.s32.totalorder 1, %s10
    %p167 = scmp.lt.s32.totalorder %s10, 5
    %p168 = pnand %p166, %p167
    %p169 = pneg %p168
    // Predicated region
    $region33: #{generator_forward.5} parent=5 // pred_check
      _
    $region34: #{generator_forward.5} parent=5 // pred_check_branch
      %171 = sbr.rel (%p168) target = $region36
    $region35: #{generator_forward.5} parent=5 // pred_region
      %s172 = ssub.s32 %s10, 1
      %p173 = scmp.lt.s32.totalorder %s15, 3
      %s174 = scalar_select %p173, %s15, 3
      %s175 = smul.addr %s174, 32
      %s176 = smul.addr %s175, 4
      %s177 = scalar_lea.vmem %s0, %s176
      %p178 = pneg %p36
      %p179 = pneg %p33
      %p180 = scmp.lt.s32.totalorder %s15, 3
      %s181 = scalar_select %p180, %s15, 3
      %s182 = smul.addr %s181, 128
      %s183 = smul.addr %s182, 4
      %s184 = scalar_lea.vmem %s1, %s183
      %p185 = pneg %p62
      %p186 = pneg %p59
      %p187 = pneg %p83
      %p188 = pneg %p80
      %p189 = pneg %p104
      %p190 = pneg %p101
      %p191 = pneg %p125
      %p192 = pneg %p122
      %p193 = scmp.lt.s32.totalorder %s15, 3
      %s194 = scalar_select %p193, %s15, 3
      %s195 = smul.addr %s194, 32
      %s196 = smul.addr %s195, 4
      %s197 = scalar_lea.vmem %s0, %s196
      %p198 = scmp.lt.s32.totalorder %s15, 3
      %s199 = scalar_select %p198, %s15, 3
      %s200 = smul.addr %s199, 128
      %s201 = smul.addr %s200, 4
      %s202 = scalar_lea.vmem %s1, %s201
      %v203 = vld [vmem:[%s197] sm:$0xff]
      %v204 = vld [vmem:[%s197 + $0x8] sm:$0xff]
      %v205 = vld [vmem:[%s197 + $0x10] sm:$0xff]
      %v206 = vld [vmem:[%s197 + $0x18] sm:$0xff]
      %v207 = vld [vmem:[%s197 + $0x20] sm:$0xff]
      %v208 = vld [vmem:[%s197 + $0x28] sm:$0xff]
      %v209 = vld [vmem:[%s197 + $0x30] sm:$0xff]
      %v210 = vld [vmem:[%s197 + $0x38] sm:$0xff]
      %v211 = vld [vmem:[%s197 + $0x40] sm:$0xff]
      %v212 = vld [vmem:[%s197 + $0x48] sm:$0xff]
      %v213 = vld [vmem:[%s197 + $0x50] sm:$0xff]
      %v214 = vld [vmem:[%s197 + $0x58] sm:$0xff]
      %v215 = vld [vmem:[%s197 + $0x60] sm:$0xff]
      %v216 = vld [vmem:[%s197 + $0x68] sm:$0xff]
      %v217 = vld [vmem:[%s197 + $0x70] sm:$0xff]
      %v218 = vld [vmem:[%s197 + $0x78] sm:$0xff]
      %v219 = vld [vmem:[%s202] sm:$0xf]
      %v220 = vld [vmem:[%s202 + $0x4] sm:$0xf]
      %v221 = vld [vmem:[%s202 + $0x8] sm:$0xf]
      %v222 = vld [vmem:[%s202 + $0xc] sm:$0xf]
      %v223 = vld [vmem:[%s202 + $0x10] sm:$0xf]
      %v224 = vld [vmem:[%s202 + $0x14] sm:$0xf]
      %v225 = vld [vmem:[%s202 + $0x18] sm:$0xf]
      %v226 = vld [vmem:[%s202 + $0x1c] sm:$0xf]
      %v227 = vld [vmem:[%s202 + $0x20] sm:$0xf]
      %v228 = vld [vmem:[%s202 + $0x24] sm:$0xf]
      %v229 = vld [vmem:[%s202 + $0x28] sm:$0xf]
      %v230 = vld [vmem:[%s202 + $0x2c] sm:$0xf]
      %v231 = vld [vmem:[%s202 + $0x30] sm:$0xf]
      %v232 = vld [vmem:[%s202 + $0x34] sm:$0xf]
      %v233 = vld [vmem:[%s202 + $0x38] sm:$0xf]
      %v234 = vld [vmem:[%s202 + $0x3c] sm:$0xf]
      %v235 = vld [vmem:[%s202 + $0x40] sm:$0xf]
      %v236 = vld [vmem:[%s202 + $0x44] sm:$0xf]
      %v237 = vld [vmem:[%s202 + $0x48] sm:$0xf]
      %v238 = vld [vmem:[%s202 + $0x4c] sm:$0xf]
      %v239 = vld [vmem:[%s202 + $0x50] sm:$0xf]
      %v240 = vld [vmem:[%s202 + $0x54] sm:$0xf]
      %v241 = vld [vmem:[%s202 + $0x58] sm:$0xf]
      %v242 = vld [vmem:[%s202 + $0x5c] sm:$0xf]
      %v243 = vld [vmem:[%s202 + $0x60] sm:$0xf]
      %v244 = vld [vmem:[%s202 + $0x64] sm:$0xf]
      %v245 = vld [vmem:[%s202 + $0x68] sm:$0xf]
      %v246 = vld [vmem:[%s202 + $0x6c] sm:$0xf]
      %v247 = vld [vmem:[%s202 + $0x70] sm:$0xf]
      %v248 = vld [vmem:[%s202 + $0x74] sm:$0xf]
      %v249 = vld [vmem:[%s202 + $0x78] sm:$0xf]
      %v250 = vld [vmem:[%s202 + $0x7c] sm:$0xf]
      %v251 = vld [vmem:[%s202 + $0x80] sm:$0xf]
      %v252 = vld [vmem:[%s202 + $0x84] sm:$0xf]
      %v253 = vld [vmem:[%s202 + $0x88] sm:$0xf]
      %v254 = vld [vmem:[%s202 + $0x8c] sm:$0xf]
      %v255 = vld [vmem:[%s202 + $0x90] sm:$0xf]
      %v256 = vld [vmem:[%s202 + $0x94] sm:$0xf]
      %v257 = vld [vmem:[%s202 + $0x98] sm:$0xf]
      %v258 = vld [vmem:[%s202 + $0x9c] sm:$0xf]
      %v259 = vld [vmem:[%s202 + $0xa0] sm:$0xf]
      %v260 = vld [vmem:[%s202 + $0xa4] sm:$0xf]
      %v261 = vld [vmem:[%s202 + $0xa8] sm:$0xf]
      %v262 = vld [vmem:[%s202 + $0xac] sm:$0xf]
      %v263 = vld [vmem:[%s202 + $0xb0] sm:$0xf]
      %v264 = vld [vmem:[%s202 + $0xb4] sm:$0xf]
      %v265 = vld [vmem:[%s202 + $0xb8] sm:$0xf]
      %v266 = vld [vmem:[%s202 + $0xbc] sm:$0xf]
      %v267 = vld [vmem:[%s202 + $0xc0] sm:$0xf]
      %v268 = vld [vmem:[%s202 + $0xc4] sm:$0xf]
      %v269 = vld [vmem:[%s202 + $0xc8] sm:$0xf]
      %v270 = vld [vmem:[%s202 + $0xcc] sm:$0xf]
      %v271 = vld [vmem:[%s202 + $0xd0] sm:$0xf]
      %v272 = vld [vmem:[%s202 + $0xd4] sm:$0xf]
      %v273 = vld [vmem:[%s202 + $0xd8] sm:$0xf]
      %v274 = vld [vmem:[%s202 + $0xdc] sm:$0xf]
      %v275 = vld [vmem:[%s202 + $0xe0] sm:$0xf]
      %v276 = vld [vmem:[%s202 + $0xe4] sm:$0xf]
      %v277 = vld [vmem:[%s202 + $0xe8] sm:$0xf]
      %v278 = vld [vmem:[%s202 + $0xec] sm:$0xf]
      %v279 = vld [vmem:[%s202 + $0xf0] sm:$0xf]
      %v280 = vld [vmem:[%s202 + $0xf4] sm:$0xf]
      %v281 = vld [vmem:[%s202 + $0xf8] sm:$0xf]
      %v282 = vld [vmem:[%s202 + $0xfc] sm:$0xf]
      %v283 = vld [vmem:[%s202 + $0x100] sm:$0xf]
      %v284 = vld [vmem:[%s202 + $0x104] sm:$0xf]
      %v285 = vld [vmem:[%s202 + $0x108] sm:$0xf]
      %v286 = vld [vmem:[%s202 + $0x10c] sm:$0xf]
      %v287 = vld [vmem:[%s202 + $0x110] sm:$0xf]
      %v288 = vld [vmem:[%s202 + $0x114] sm:$0xf]
      %v289 = vld [vmem:[%s202 + $0x118] sm:$0xf]
      %v290 = vld [vmem:[%s202 + $0x11c] sm:$0xf]
      %v291 = vld [vmem:[%s202 + $0x120] sm:$0xf]
      %v292 = vld [vmem:[%s202 + $0x124] sm:$0xf]
      %v293 = vld [vmem:[%s202 + $0x128] sm:$0xf]
      %v294 = vld [vmem:[%s202 + $0x12c] sm:$0xf]
      %v295 = vld [vmem:[%s202 + $0x130] sm:$0xf]
      %v296 = vld [vmem:[%s202 + $0x134] sm:$0xf]
      %v297 = vld [vmem:[%s202 + $0x138] sm:$0xf]
      %v298 = vld [vmem:[%s202 + $0x13c] sm:$0xf]
      %v299 = vld [vmem:[%s202 + $0x140] sm:$0xf]
      %v300 = vld [vmem:[%s202 + $0x144] sm:$0xf]
      %v301 = vld [vmem:[%s202 + $0x148] sm:$0xf]
      %v302 = vld [vmem:[%s202 + $0x14c] sm:$0xf]
      %v303 = vld [vmem:[%s202 + $0x150] sm:$0xf]
      %v304 = vld [vmem:[%s202 + $0x154] sm:$0xf]
      %v305 = vld [vmem:[%s202 + $0x158] sm:$0xf]
      %v306 = vld [vmem:[%s202 + $0x15c] sm:$0xf]
      %v307 = vld [vmem:[%s202 + $0x160] sm:$0xf]
      %v308 = vld [vmem:[%s202 + $0x164] sm:$0xf]
      %v309 = vld [vmem:[%s202 + $0x168] sm:$0xf]
      %v310 = vld [vmem:[%s202 + $0x16c] sm:$0xf]
      %v311 = vld [vmem:[%s202 + $0x170] sm:$0xf]
      %v312 = vld [vmem:[%s202 + $0x174] sm:$0xf]
      %v313 = vld [vmem:[%s202 + $0x178] sm:$0xf]
      %v314 = vld [vmem:[%s202 + $0x17c] sm:$0xf]
      %v315 = vld [vmem:[%s202 + $0x180] sm:$0xf]
      %v316 = vld [vmem:[%s202 + $0x184] sm:$0xf]
      %v317 = vld [vmem:[%s202 + $0x188] sm:$0xf]
      %v318 = vld [vmem:[%s202 + $0x18c] sm:$0xf]
      %v319 = vld [vmem:[%s202 + $0x190] sm:$0xf]
      %v320 = vld [vmem:[%s202 + $0x194] sm:$0xf]
      %v321 = vld [vmem:[%s202 + $0x198] sm:$0xf]
      %v322 = vld [vmem:[%s202 + $0x19c] sm:$0xf]
      %v323 = vld [vmem:[%s202 + $0x1a0] sm:$0xf]
      %v324 = vld [vmem:[%s202 + $0x1a4] sm:$0xf]
      %v325 = vld [vmem:[%s202 + $0x1a8] sm:$0xf]
      %v326 = vld [vmem:[%s202 + $0x1ac] sm:$0xf]
      %v327 = vld [vmem:[%s202 + $0x1b0] sm:$0xf]
      %v328 = vld [vmem:[%s202 + $0x1b4] sm:$0xf]
      %v329 = vld [vmem:[%s202 + $0x1b8] sm:$0xf]
      %v330 = vld [vmem:[%s202 + $0x1bc] sm:$0xf]
      %v331 = vld [vmem:[%s202 + $0x1c0] sm:$0xf]
      %v332 = vld [vmem:[%s202 + $0x1c4] sm:$0xf]
      %v333 = vld [vmem:[%s202 + $0x1c8] sm:$0xf]
      %v334 = vld [vmem:[%s202 + $0x1cc] sm:$0xf]
      %v335 = vld [vmem:[%s202 + $0x1d0] sm:$0xf]
      %v336 = vld [vmem:[%s202 + $0x1d4] sm:$0xf]
      %v337 = vld [vmem:[%s202 + $0x1d8] sm:$0xf]
      %v338 = vld [vmem:[%s202 + $0x1dc] sm:$0xf]
      %v339 = vld [vmem:[%s202 + $0x1e0] sm:$0xf]
      %v340 = vld [vmem:[%s202 + $0x1e4] sm:$0xf]
      %v341 = vld [vmem:[%s202 + $0x1e8] sm:$0xf]
      %v342 = vld [vmem:[%s202 + $0x1ec] sm:$0xf]
      %v343 = vld [vmem:[%s202 + $0x1f0] sm:$0xf]
      %v344 = vld [vmem:[%s202 + $0x1f4] sm:$0xf]
      %v345 = vld [vmem:[%s202 + $0x1f8] sm:$0xf]
      %v346 = vld [vmem:[%s202 + $0x1fc] sm:$0xf]
      %v363 = vunpack.c.l.b16 %v203
      %v364 = vunpack.c.h.b16 %v203
      %v365 = vunpack.c.l.b16 %v204
      %v366 = vunpack.c.h.b16 %v204
      %v367 = vunpack.c.l.b16 %v205
      %v368 = vunpack.c.h.b16 %v205
      %v369 = vunpack.c.l.b16 %v206
      %v370 = vunpack.c.h.b16 %v206
      %v371 = vunpack.c.l.b16 %v207
      %v372 = vunpack.c.h.b16 %v207
      %v373 = vunpack.c.l.b16 %v208
      %v374 = vunpack.c.h.b16 %v208
      %v375 = vunpack.c.l.b16 %v209
      %v376 = vunpack.c.h.b16 %v209
      %v377 = vunpack.c.l.b16 %v210
      %v378 = vunpack.c.h.b16 %v210
      %v379 = vunpack.c.l.b16 %v211
      %v380 = vunpack.c.h.b16 %v211
      %v381 = vunpack.c.l.b16 %v212
      %v382 = vunpack.c.h.b16 %v212
      %v383 = vunpack.c.l.b16 %v213
      %v384 = vunpack.c.h.b16 %v213
      %v385 = vunpack.c.l.b16 %v214
      %v386 = vunpack.c.h.b16 %v214
      %v387 = vunpack.c.l.b16 %v215
      %v388 = vunpack.c.h.b16 %v215
      %v389 = vunpack.c.l.b16 %v216
      %v390 = vunpack.c.h.b16 %v216
      %v391 = vunpack.c.l.b16 %v217
      %v392 = vunpack.c.h.b16 %v217
      %v393 = vunpack.c.l.b16 %v218
      %v394 = vunpack.c.h.b16 %v218
      %v395 = vpack.c.b16 %v371, %v363
      %v396 = vpack.c.b16 %v372, %v364
      %v397 = vpack.c.b16 %v373, %v365
      %v398 = vpack.c.b16 %v374, %v366
      %v399 = vpack.c.b16 %v375, %v367
      %v400 = vpack.c.b16 %v376, %v368
      %v401 = vpack.c.b16 %v377, %v369
      %v402 = vpack.c.b16 %v378, %v370
      %v403 = vpack.c.b16 %v387, %v379
      %v404 = vpack.c.b16 %v388, %v380
      %v405 = vpack.c.b16 %v389, %v381
      %v406 = vpack.c.b16 %v390, %v382
      %v407 = vpack.c.b16 %v391, %v383
      %v408 = vpack.c.b16 %v392, %v384
      %v409 = vpack.c.b16 %v393, %v385
      %v410 = vpack.c.b16 %v394, %v386
      %v555 = vunpack.c.l.b16 %v219
      %v556 = vunpack.c.l.b16 %v220
      %v557 = vunpack.c.l.b16 %v221
      %v558 = vunpack.c.l.b16 %v222
      %v559 = vunpack.c.l.b16 %v223
      %v560 = vunpack.c.l.b16 %v224
      %v561 = vunpack.c.l.b16 %v225
      %v562 = vunpack.c.l.b16 %v226
      %v563 = vunpack.c.l.b16 %v227
      %v564 = vunpack.c.l.b16 %v228
      %v565 = vunpack.c.l.b16 %v229
      %v566 = vunpack.c.l.b16 %v230
      %v567 = vunpack.c.l.b16 %v231
      %v568 = vunpack.c.l.b16 %v232
      %v569 = vunpack.c.l.b16 %v233
      %v570 = vunpack.c.l.b16 %v234
      %v571 = vunpack.c.l.b16 %v235
      %v572 = vunpack.c.l.b16 %v236
      %v573 = vunpack.c.l.b16 %v237
      %v574 = vunpack.c.l.b16 %v238
      %v575 = vunpack.c.l.b16 %v239
      %v576 = vunpack.c.l.b16 %v240
      %v577 = vunpack.c.l.b16 %v241
      %v578 = vunpack.c.l.b16 %v242
      %v579 = vunpack.c.l.b16 %v243
      %v580 = vunpack.c.l.b16 %v244
      %v581 = vunpack.c.l.b16 %v245
      %v582 = vunpack.c.l.b16 %v246
      %v583 = vunpack.c.l.b16 %v247
      %v584 = vunpack.c.l.b16 %v248
      %v585 = vunpack.c.l.b16 %v249
      %v586 = vunpack.c.l.b16 %v250
      %v587 = vunpack.c.l.b16 %v251
      %v588 = vunpack.c.l.b16 %v252
      %v589 = vunpack.c.l.b16 %v253
      %v590 = vunpack.c.l.b16 %v254
      %v591 = vunpack.c.l.b16 %v255
      %v592 = vunpack.c.l.b16 %v256
      %v593 = vunpack.c.l.b16 %v257
      %v594 = vunpack.c.l.b16 %v258
      %v595 = vunpack.c.l.b16 %v259
      %v596 = vunpack.c.l.b16 %v260
      %v597 = vunpack.c.l.b16 %v261
      %v598 = vunpack.c.l.b16 %v262
      %v599 = vunpack.c.l.b16 %v263
      %v600 = vunpack.c.l.b16 %v264
      %v601 = vunpack.c.l.b16 %v265
      %v602 = vunpack.c.l.b16 %v266
      %v603 = vunpack.c.l.b16 %v267
      %v604 = vunpack.c.l.b16 %v268
      %v605 = vunpack.c.l.b16 %v269
      %v606 = vunpack.c.l.b16 %v270
      %v607 = vunpack.c.l.b16 %v271
      %v608 = vunpack.c.l.b16 %v272
      %v609 = vunpack.c.l.b16 %v273
      %v610 = vunpack.c.l.b16 %v274
      %v611 = vunpack.c.l.b16 %v275
      %v612 = vunpack.c.l.b16 %v276
      %v613 = vunpack.c.l.b16 %v277
      %v614 = vunpack.c.l.b16 %v278
      %v615 = vunpack.c.l.b16 %v279
      %v616 = vunpack.c.l.b16 %v280
      %v617 = vunpack.c.l.b16 %v281
      %v618 = vunpack.c.l.b16 %v282
      %v619 = vunpack.c.l.b16 %v283
      %v620 = vunpack.c.l.b16 %v284
      %v621 = vunpack.c.l.b16 %v285
      %v622 = vunpack.c.l.b16 %v286
      %v623 = vunpack.c.l.b16 %v287
      %v624 = vunpack.c.l.b16 %v288
      %v625 = vunpack.c.l.b16 %v289
      %v626 = vunpack.c.l.b16 %v290
      %v627 = vunpack.c.l.b16 %v291
      %v628 = vunpack.c.l.b16 %v292
      %v629 = vunpack.c.l.b16 %v293
      %v630 = vunpack.c.l.b16 %v294
      %v631 = vunpack.c.l.b16 %v295
      %v632 = vunpack.c.l.b16 %v296
      %v633 = vunpack.c.l.b16 %v297
      %v634 = vunpack.c.l.b16 %v298
      %v635 = vunpack.c.l.b16 %v299
      %v636 = vunpack.c.l.b16 %v300
      %v637 = vunpack.c.l.b16 %v301
      %v638 = vunpack.c.l.b16 %v302
      %v639 = vunpack.c.l.b16 %v303
      %v640 = vunpack.c.l.b16 %v304
      %v641 = vunpack.c.l.b16 %v305
      %v642 = vunpack.c.l.b16 %v306
      %v643 = vunpack.c.l.b16 %v307
      %v644 = vunpack.c.l.b16 %v308
      %v645 = vunpack.c.l.b16 %v309
      %v646 = vunpack.c.l.b16 %v310
      %v647 = vunpack.c.l.b16 %v311
      %v648 = vunpack.c.l.b16 %v312
      %v649 = vunpack.c.l.b16 %v313
      %v650 = vunpack.c.l.b16 %v314
      %v651 = vunpack.c.l.b16 %v315
      %v652 = vunpack.c.l.b16 %v316
      %v653 = vunpack.c.l.b16 %v317
      %v654 = vunpack.c.l.b16 %v318
      %v655 = vunpack.c.l.b16 %v319
      %v656 = vunpack.c.l.b16 %v320
      %v657 = vunpack.c.l.b16 %v321
      %v658 = vunpack.c.l.b16 %v322
      %v659 = vunpack.c.l.b16 %v323
      %v660 = vunpack.c.l.b16 %v324
      %v661 = vunpack.c.l.b16 %v325
      %v662 = vunpack.c.l.b16 %v326
      %v663 = vunpack.c.l.b16 %v327
      %v664 = vunpack.c.l.b16 %v328
      %v665 = vunpack.c.l.b16 %v329
      %v666 = vunpack.c.l.b16 %v330
      %v667 = vunpack.c.l.b16 %v331
      %v668 = vunpack.c.l.b16 %v332
      %v669 = vunpack.c.l.b16 %v333
      %v670 = vunpack.c.l.b16 %v334
      %v671 = vunpack.c.l.b16 %v335
      %v672 = vunpack.c.l.b16 %v336
      %v673 = vunpack.c.l.b16 %v337
      %v674 = vunpack.c.l.b16 %v338
      %v675 = vunpack.c.l.b16 %v339
      %v676 = vunpack.c.l.b16 %v340
      %v677 = vunpack.c.l.b16 %v341
      %v678 = vunpack.c.l.b16 %v342
      %v679 = vunpack.c.l.b16 %v343
      %v680 = vunpack.c.l.b16 %v344
      %v681 = vunpack.c.l.b16 %v345
      %v682 = vunpack.c.l.b16 %v346
      %v683 = vpack.c.b16 %v556, %v555
      %v684 = vpack.c.b16 %v558, %v557
      %v685 = vpack.c.b16 %v560, %v559
      %v686 = vpack.c.b16 %v562, %v561
      %v687 = vpack.c.b16 %v564, %v563
      %v688 = vpack.c.b16 %v566, %v565
      %v689 = vpack.c.b16 %v568, %v567
      %v690 = vpack.c.b16 %v570, %v569
      %v691 = vpack.c.b16 %v572, %v571
      %v692 = vpack.c.b16 %v574, %v573
      %v693 = vpack.c.b16 %v576, %v575
      %v694 = vpack.c.b16 %v578, %v577
      %v695 = vpack.c.b16 %v580, %v579
      %v696 = vpack.c.b16 %v582, %v581
      %v697 = vpack.c.b16 %v584, %v583
      %v698 = vpack.c.b16 %v586, %v585
      %v699 = vpack.c.b16 %v588, %v587
      %v700 = vpack.c.b16 %v590, %v589
      %v701 = vpack.c.b16 %v592, %v591
      %v702 = vpack.c.b16 %v594, %v593
      %v703 = vpack.c.b16 %v596, %v595
      %v704 = vpack.c.b16 %v598, %v597
      %v705 = vpack.c.b16 %v600, %v599
      %v706 = vpack.c.b16 %v602, %v601
      %v707 = vpack.c.b16 %v604, %v603
      %v708 = vpack.c.b16 %v606, %v605
      %v709 = vpack.c.b16 %v608, %v607
      %v710 = vpack.c.b16 %v610, %v609
      %v711 = vpack.c.b16 %v612, %v611
      %v712 = vpack.c.b16 %v614, %v613
      %v713 = vpack.c.b16 %v616, %v615
      %v714 = vpack.c.b16 %v618, %v617
      %v715 = vpack.c.b16 %v620, %v619
      %v716 = vpack.c.b16 %v622, %v621
      %v717 = vpack.c.b16 %v624, %v623
      %v718 = vpack.c.b16 %v626, %v625
      %v719 = vpack.c.b16 %v628, %v627
      %v720 = vpack.c.b16 %v630, %v629
      %v721 = vpack.c.b16 %v632, %v631
      %v722 = vpack.c.b16 %v634, %v633
      %v723 = vpack.c.b16 %v636, %v635
      %v724 = vpack.c.b16 %v638, %v637
      %v725 = vpack.c.b16 %v640, %v639
      %v726 = vpack.c.b16 %v642, %v641
      %v727 = vpack.c.b16 %v644, %v643
      %v728 = vpack.c.b16 %v646, %v645
      %v729 = vpack.c.b16 %v648, %v647
      %v730 = vpack.c.b16 %v650, %v649
      %v731 = vpack.c.b16 %v652, %v651
      %v732 = vpack.c.b16 %v654, %v653
      %v733 = vpack.c.b16 %v656, %v655
      %v734 = vpack.c.b16 %v658, %v657
      %v735 = vpack.c.b16 %v660, %v659
      %v736 = vpack.c.b16 %v662, %v661
      %v737 = vpack.c.b16 %v664, %v663
      %v738 = vpack.c.b16 %v666, %v665
      %v739 = vpack.c.b16 %v668, %v667
      %v740 = vpack.c.b16 %v670, %v669
      %v741 = vpack.c.b16 %v672, %v671
      %v742 = vpack.c.b16 %v674, %v673
      %v743 = vpack.c.b16 %v676, %v675
      %v744 = vpack.c.b16 %v678, %v677
      %v745 = vpack.c.b16 %v680, %v679
      %v746 = vpack.c.b16 %v682, %v681
      %811 = vmatpush.bf16.msra.mxu0 %v690
      %812 = vmatpush.bf16.msra.mxu0 %v689
      %813 = vmatpush.bf16.msra.mxu0 %v688
      %814 = vmatpush.bf16.msra.mxu0 %v687
      %815 = vmatpush.bf16.msra.mxu0 %v686
      %816 = vmatpush.bf16.msra.mxu0 %v685
      %817 = vmatpush.bf16.msra.mxu0 %v684
      %818 = vmatpush.bf16.msra.mxu0 %v683
      %819 = vmatmul.bf16.gmra.mxu0 %v395
      %v820 = vpop.f32.mrf.mxu0
      %v821 = vadd.f32 0.0, %v820
      %v822 = vpop.f32.mrf.mxu0
      %v823 = vadd.f32 0.0, %v822
      %824 = vmatmul.bf16.gmra.mxu0 %v403
      %v825 = vpop.f32.mrf.mxu0
      %v826 = vadd.f32 0.0, %v825
      %v827 = vpop.f32.mrf.mxu0
      %v828 = vadd.f32 0.0, %v827
      %829 = vdwg.mxu0
      %830 = vmatpush.bf16.msra.mxu0 %v698
      %831 = vmatpush.bf16.msra.mxu0 %v697
      %832 = vmatpush.bf16.msra.mxu0 %v696
      %833 = vmatpush.bf16.msra.mxu0 %v695
      %834 = vmatpush.bf16.msra.mxu0 %v694
      %835 = vmatpush.bf16.msra.mxu0 %v693
      %836 = vmatpush.bf16.msra.mxu0 %v692
      %837 = vmatpush.bf16.msra.mxu0 %v691
      %838 = vmatmul.bf16.gmra.mxu0 %v396
      %v839 = vpop.f32.mrf.mxu0
      %v840 = vadd.f32 %v821, %v839
      %v841 = vpop.f32.mrf.mxu0
      %v842 = vadd.f32 %v823, %v841
      %843 = vmatmul.bf16.gmra.mxu0 %v404
      %v844 = vpop.f32.mrf.mxu0
      %v845 = vadd.f32 %v826, %v844
      %v846 = vpop.f32.mrf.mxu0
      %v847 = vadd.f32 %v828, %v846
      %848 = vdwg.mxu0
      %849 = vmatpush.bf16.msra.mxu0 %v706
      %850 = vmatpush.bf16.msra.mxu0 %v705
      %851 = vmatpush.bf16.msra.mxu0 %v704
      %852 = vmatpush.bf16.msra.mxu0 %v703
      %853 = vmatpush.bf16.msra.mxu0 %v702
      %854 = vmatpush.bf16.msra.mxu0 %v701
      %855 = vmatpush.bf16.msra.mxu0 %v700
      %856 = vmatpush.bf16.msra.mxu0 %v699
      %857 = vmatmul.bf16.gmra.mxu0 %v397
      %v858 = vpop.f32.mrf.mxu0
      %v859 = vadd.f32 %v840, %v858
      %v860 = vpop.f32.mrf.mxu0
      %v861 = vadd.f32 %v842, %v860
      %862 = vmatmul.bf16.gmra.mxu0 %v405
      %v863 = vpop.f32.mrf.mxu0
      %v864 = vadd.f32 %v845, %v863
      %v865 = vpop.f32.mrf.mxu0
      %v866 = vadd.f32 %v847, %v865
      %867 = vdwg.mxu0
      %868 = vmatpush.bf16.msra.mxu0 %v714
      %869 = vmatpush.bf16.msra.mxu0 %v713
      %870 = vmatpush.bf16.msra.mxu0 %v712
      %871 = vmatpush.bf16.msra.mxu0 %v711
      %872 = vmatpush.bf16.msra.mxu0 %v710
      %873 = vmatpush.bf16.msra.mxu0 %v709
      %874 = vmatpush.bf16.msra.mxu0 %v708
      %875 = vmatpush.bf16.msra.mxu0 %v707
      %876 = vmatmul.bf16.gmra.mxu0 %v398
      %v877 = vpop.f32.mrf.mxu0
      %v878 = vadd.f32 %v859, %v877
      %v879 = vpop.f32.mrf.mxu0
      %v880 = vadd.f32 %v861, %v879
      %881 = vmatmul.bf16.gmra.mxu0 %v406
      %v882 = vpop.f32.mrf.mxu0
      %v883 = vadd.f32 %v864, %v882
      %v884 = vpop.f32.mrf.mxu0
      %v885 = vadd.f32 %v866, %v884
      %886 = vdwg.mxu0
      %887 = vmatpush.bf16.msra.mxu0 %v722
      %888 = vmatpush.bf16.msra.mxu0 %v721
      %889 = vmatpush.bf16.msra.mxu0 %v720
      %890 = vmatpush.bf16.msra.mxu0 %v719
      %891 = vmatpush.bf16.msra.mxu0 %v718
      %892 = vmatpush.bf16.msra.mxu0 %v717
      %893 = vmatpush.bf16.msra.mxu0 %v716
      %894 = vmatpush.bf16.msra.mxu0 %v715
      %895 = vmatmul.bf16.gmra.mxu0 %v399
      %v896 = vpop.f32.mrf.mxu0
      %v897 = vadd.f32 %v878, %v896
      %v898 = vpop.f32.mrf.mxu0
      %v899 = vadd.f32 %v880, %v898
      %900 = vmatmul.bf16.gmra.mxu0 %v407
      %v901 = vpop.f32.mrf.mxu0
      %v902 = vadd.f32 %v883, %v901
      %v903 = vpop.f32.mrf.mxu0
      %v904 = vadd.f32 %v885, %v903
      %905 = vdwg.mxu0
      %906 = vmatpush.bf16.msra.mxu0 %v730
      %907 = vmatpush.bf16.msra.mxu0 %v729
      %908 = vmatpush.bf16.msra.mxu0 %v728
      %909 = vmatpush.bf16.msra.mxu0 %v727
      %910 = vmatpush.bf16.msra.mxu0 %v726
      %911 = vmatpush.bf16.msra.mxu0 %v725
      %912 = vmatpush.bf16.msra.mxu0 %v724
      %913 = vmatpush.bf16.msra.mxu0 %v723
      %914 = vmatmul.bf16.gmra.mxu0 %v400
      %v915 = vpop.f32.mrf.mxu0
      %v916 = vadd.f32 %v897, %v915
      %v917 = vpop.f32.mrf.mxu0
      %v918 = vadd.f32 %v899, %v917
      %919 = vmatmul.bf16.gmra.mxu0 %v408
      %v920 = vpop.f32.mrf.mxu0
      %v921 = vadd.f32 %v902, %v920
      %v922 = vpop.f32.mrf.mxu0
      %v923 = vadd.f32 %v904, %v922
      %924 = vdwg.mxu0
      %925 = vmatpush.bf16.msra.mxu0 %v738
      %926 = vmatpush.bf16.msra.mxu0 %v737
      %927 = vmatpush.bf16.msra.mxu0 %v736
      %928 = vmatpush.bf16.msra.mxu0 %v735
      %929 = vmatpush.bf16.msra.mxu0 %v734
      %930 = vmatpush.bf16.msra.mxu0 %v733
      %931 = vmatpush.bf16.msra.mxu0 %v732
      %932 = vmatpush.bf16.msra.mxu0 %v731
      %933 = vmatmul.bf16.gmra.mxu0 %v401
      %v934 = vpop.f32.mrf.mxu0
      %v935 = vadd.f32 %v916, %v934
      %v936 = vpop.f32.mrf.mxu0
      %v937 = vadd.f32 %v918, %v936
      %938 = vmatmul.bf16.gmra.mxu0 %v409
      %v939 = vpop.f32.mrf.mxu0
      %v940 = vadd.f32 %v921, %v939
      %v941 = vpop.f32.mrf.mxu0
      %v942 = vadd.f32 %v923, %v941
      %943 = vdwg.mxu0
      %944 = vmatpush.bf16.msra.mxu0 %v746
      %945 = vmatpush.bf16.msra.mxu0 %v745
      %946 = vmatpush.bf16.msra.mxu0 %v744
      %947 = vmatpush.bf16.msra.mxu0 %v743
      %948 = vmatpush.bf16.msra.mxu0 %v742
      %949 = vmatpush.bf16.msra.mxu0 %v741
      %950 = vmatpush.bf16.msra.mxu0 %v740
      %951 = vmatpush.bf16.msra.mxu0 %v739
      %952 = vmatmul.bf16.gmra.mxu0 %v402
      %v953 = vpop.f32.mrf.mxu0
      %v954 = vadd.f32 %v935, %v953
      %v955 = vpop.f32.mrf.mxu0
      %v956 = vadd.f32 %v937, %v955
      %957 = vmatmul.bf16.gmra.mxu0 %v410
      %v958 = vpop.f32.mrf.mxu0
      %v959 = vadd.f32 %v940, %v958
      %v960 = vpop.f32.mrf.mxu0
      %v961 = vadd.f32 %v942, %v960
      %962 = vdwg.mxu0
      %s963 = smul.u32 %s15, 32
      %s964 = scalar_lea.vmem [#allocation2], %s963
      %965 = vst [vmem:[%s964] sm:$0xff] %v954
      %966 = vst [vmem:[%s964 + $0x8] sm:$0xff] %v956
      %967 = vst [vmem:[%s964 + $0x10] sm:$0xff] %v959
      %968 = vst [vmem:[%s964 + $0x18] sm:$0xff] %v961
      %p969 = scmp.eq.s32.totalorder %s15, 3
      // Predicated region
      $region37: #{generator_forward.5} parent=35 // pred_check
        %p970 = pneg %p969
      $region38: #{generator_forward.5} parent=35 // pred_check_branch
        %972 = sbr.rel (%p970) target = $region40
      $region39: #{generator_forward.5} parent=35 // pred_region
        %v973 = vld [vmem:[#allocation2] sm:$0xff]
        %v974 = vld [vmem:[#allocation2 + $0x8] sm:$0xff]
        %v975 = vld [vmem:[#allocation2 + $0x10] sm:$0xff]
        %v976 = vld [vmem:[#allocation2 + $0x18] sm:$0xff]
        %v977 = vadd.f32 %v973, %v974
        %v978 = vadd.f32 %v977, %v975
        %v979 = vadd.f32 %v978, %v976
        %v980 = vrot.slane %v979, 4
        %v981 = vadd.f32 %v979, %v980
        %v982 = vrot.slane %v981, 2
        %v983 = vadd.f32 %v981, %v982
        %v984 = vrot.slane %v983, 1
        %v985 = vadd.f32 %v983, %v984
        %v986 = vadd.f32 %v985, 0.0
        %s987 = scalar_lea.vmem [#allocation2], 32
        %v988 = vld [vmem:[%s987] sm:$0xff]
        %v989 = vld [vmem:[%s987 + $0x8] sm:$0xff]
        %v990 = vld [vmem:[%s987 + $0x10] sm:$0xff]
        %v991 = vld [vmem:[%s987 + $0x18] sm:$0xff]
        %v992 = vadd.f32 %v988, %v989
        %v993 = vadd.f32 %v992, %v990
        %v994 = vadd.f32 %v993, %v991
        %v995 = vrot.slane %v994, 4
        %v996 = vadd.f32 %v994, %v995
        %v997 = vrot.slane %v996, 2
        %v998 = vadd.f32 %v996, %v997
        %v999 = vrot.slane %v998, 1
        %v1000 = vadd.f32 %v998, %v999
        %v1001 = vadd.f32 %v986, %v1000
        %s1002 = scalar_lea.vmem [#allocation2], 64
        %v1003 = vld [vmem:[%s1002] sm:$0xff]
        %v1004 = vld [vmem:[%s1002 + $0x8] sm:$0xff]
        %v1005 = vld [vmem:[%s1002 + $0x10] sm:$0xff]
        %v1006 = vld [vmem:[%s1002 + $0x18] sm:$0xff]
        %v1007 = vadd.f32 %v1003, %v1004
        %v1008 = vadd.f32 %v1007, %v1005
        %v1009 = vadd.f32 %v1008, %v1006
        %v1010 = vrot.slane %v1009, 4
        %v1011 = vadd.f32 %v1009, %v1010
        %v1012 = vrot.slane %v1011, 2
        %v1013 = vadd.f32 %v1011, %v1012
        %v1014 = vrot.slane %v1013, 1
        %v1015 = vadd.f32 %v1013, %v1014
        %v1016 = vadd.f32 %v1001, %v1015
        %s1017 = scalar_lea.vmem [#allocation2], 96
        %v1018 = vld [vmem:[%s1017] sm:$0xff]
        %v1019 = vld [vmem:[%s1017 + $0x8] sm:$0xff]
        %v1020 = vld [vmem:[%s1017 + $0x10] sm:$0xff]
        %v1021 = vld [vmem:[%s1017 + $0x18] sm:$0xff]
        %v1022 = vadd.f32 %v1018, %v1019
        %v1023 = vadd.f32 %v1022, %v1020
        %v1024 = vadd.f32 %v1023, %v1021
        %v1025 = vrot.slane %v1024, 4
        %v1026 = vadd.f32 %v1024, %v1025
        %v1027 = vrot.slane %v1026, 2
        %v1028 = vadd.f32 %v1026, %v1027
        %v1029 = vrot.slane %v1028, 1
        %v1030 = vadd.f32 %v1028, %v1029
        %v1031 = vadd.f32 %v1016, %v1030
        %v1032 = vrcp.pop 128.0
        %v1033 = vmul.f32 128.0, %v1032
        %v1034 = vsub.f32 1.0, %v1033
        %v1035 = vmul.f32 %v1032, %v1034
        %v1036 = vadd.f32 %v1032, %v1035
        %vm1037 = vweird.f32 %v1032
        %v1038 = vsel %vm1037, %v1032, %v1036
        %v1039 = vmul.f32 %v1031, %v1038
        %v1040 = vsub.f32 %v973, %v1039
        %v1041 = vsub.f32 %v974, %v1039
        %v1042 = vsub.f32 %v975, %v1039
        %v1043 = vsub.f32 %v976, %v1039
        %v1044 = vmul.f32 %v1040, %v1040
        %v1045 = vmul.f32 %v1041, %v1041
        %v1046 = vmul.f32 %v1042, %v1042
        %v1047 = vmul.f32 %v1043, %v1043
        %v1048 = vadd.f32 %v1044, %v1045
        %v1049 = vadd.f32 %v1048, %v1046
        %v1050 = vadd.f32 %v1049, %v1047
        %v1051 = vrot.slane %v1050, 4
        %v1052 = vadd.f32 %v1050, %v1051
        %v1053 = vrot.slane %v1052, 2
        %v1054 = vadd.f32 %v1052, %v1053
        %v1055 = vrot.slane %v1054, 1
        %v1056 = vadd.f32 %v1054, %v1055
        %v1057 = vadd.f32 %v1056, 0.0
        %v1058 = vsub.f32 %v988, %v1039
        %v1059 = vsub.f32 %v989, %v1039
        %v1060 = vsub.f32 %v990, %v1039
        %v1061 = vsub.f32 %v991, %v1039
        %v1062 = vmul.f32 %v1058, %v1058
        %v1063 = vmul.f32 %v1059, %v1059
        %v1064 = vmul.f32 %v1060, %v1060
        %v1065 = vmul.f32 %v1061, %v1061
        %v1066 = vadd.f32 %v1062, %v1063
        %v1067 = vadd.f32 %v1066, %v1064
        %v1068 = vadd.f32 %v1067, %v1065
        %v1069 = vrot.slane %v1068, 4
        %v1070 = vadd.f32 %v1068, %v1069
        %v1071 = vrot.slane %v1070, 2
        %v1072 = vadd.f32 %v1070, %v1071
        %v1073 = vrot.slane %v1072, 1
        %v1074 = vadd.f32 %v1072, %v1073
        %v1075 = vadd.f32 %v1057, %v1074
        %v1076 = vsub.f32 %v1003, %v1039
        %v1077 = vsub.f32 %v1004, %v1039
        %v1078 = vsub.f32 %v1005, %v1039
        %v1079 = vsub.f32 %v1006, %v1039
        %v1080 = vmul.f32 %v1076, %v1076
        %v1081 = vmul.f32 %v1077, %v1077
        %v1082 = vmul.f32 %v1078, %v1078
        %v1083 = vmul.f32 %v1079, %v1079
        %v1084 = vadd.f32 %v1080, %v1081
        %v1085 = vadd.f32 %v1084, %v1082
        %v1086 = vadd.f32 %v1085, %v1083
        %v1087 = vrot.slane %v1086, 4
        %v1088 = vadd.f32 %v1086, %v1087
        %v1089 = vrot.slane %v1088, 2
        %v1090 = vadd.f32 %v1088, %v1089
        %v1091 = vrot.slane %v1090, 1
        %v1092 = vadd.f32 %v1090, %v1091
        %v1093 = vadd.f32 %v1075, %v1092
        %v1094 = vsub.f32 %v1018, %v1039
        %v1095 = vsub.f32 %v1019, %v1039
        %v1096 = vsub.f32 %v1020, %v1039
        %v1097 = vsub.f32 %v1021, %v1039
        %v1098 = vmul.f32 %v1094, %v1094
        %v1099 = vmul.f32 %v1095, %v1095
        %v1100 = vmul.f32 %v1096, %v1096
        %v1101 = vmul.f32 %v1097, %v1097
        %v1102 = vadd.f32 %v1098, %v1099
        %v1103 = vadd.f32 %v1102, %v1100
        %v1104 = vadd.f32 %v1103, %v1101
        %v1105 = vrot.slane %v1104, 4
        %v1106 = vadd.f32 %v1104, %v1105
        %v1107 = vrot.slane %v1106, 2
        %v1108 = vadd.f32 %v1106, %v1107
        %v1109 = vrot.slane %v1108, 1
        %v1110 = vadd.f32 %v1108, %v1109
        %v1111 = vadd.f32 %v1093, %v1110
        %v1112 = vmul.f32 %v1111, %v1038
        %v1113 = vadd.f32 %v1112, 1e-05
        %v1114 = vrsqrt.pop %v1113
        %v1115 = vmul.f32 %v1114, %v1113
        %v1116 = vmul.f32 %v1115, %v1114
        %v1117 = vmul.f32 0.5, %v1116
        %v1118 = vsub.f32 1.5, %v1117
        %v1119 = vmul.f32 %v1114, %v1118
        %vm1120 = vweird.f32 %v1113
        %vm1121 = vweird.f32 %v1114
        %vm1122 = vmor %vm1120, %vm1121
        %v1123 = vsel %vm1122, %v1114, %v1119
        %v1124 = vld [vmem:[%s2] sm:$0x1]
        %v1125 = vld [vmem:[%s3] sm:$0x1]
        %v1126 = vmul.f32 %v1040, %v1123
        %v1127 = vmul.f32 %v1041, %v1123
        %v1128 = vmul.f32 %v1042, %v1123
        %v1129 = vmul.f32 %v1043, %v1123
        %v1131 = vperm.slane %v1124, 0
        %v1133 = vmul.f32 %v1126, %v1131
        %v1134 = vmul.f32 %v1127, %v1131
        %v1135 = vmul.f32 %v1128, %v1131
        %v1136 = vmul.f32 %v1129, %v1131
        %v1138 = vperm.slane %v1125, 0
        %v1140 = vadd.f32 %v1133, %v1138
        %v1141 = vadd.f32 %v1134, %v1138
        %v1142 = vadd.f32 %v1135, %v1138
        %v1143 = vadd.f32 %v1136, %v1138
        %v1144 = vmax.f32 %v1140, 0.0
        %v1145 = vmax.f32 %v1141, 0.0
        %v1146 = vmax.f32 %v1142, 0.0
        %v1147 = vmax.f32 %v1143, 0.0
        %v1148 = vpack.c.bf16 %v1144, %v1144
        %v1149 = vpack.c.bf16 %v1145, %v1145
        %v1150 = vpack.c.bf16 %v1146, %v1146
        %v1151 = vpack.c.bf16 %v1147, %v1147
        %1152 = vst [vmem:[%s4] sm:$0xf] %v1148
        %1153 = vst [vmem:[%s4 + $0x4] sm:$0xf] %v1149
        %1154 = vst [vmem:[%s4 + $0x8] sm:$0xf] %v1150
        %1155 = vst [vmem:[%s4 + $0xc] sm:$0xf] %v1151
        %v1156 = vld [vmem:[%s987] sm:$0xff]
        %v1157 = vld [vmem:[%s987 + $0x8] sm:$0xff]
        %v1158 = vld [vmem:[%s987 + $0x10] sm:$0xff]
        %v1159 = vld [vmem:[%s987 + $0x18] sm:$0xff]
        %v1160 = vsub.f32 %v1156, %v1039
        %v1161 = vsub.f32 %v1157, %v1039
        %v1162 = vsub.f32 %v1158, %v1039
        %v1163 = vsub.f32 %v1159, %v1039
        %v1164 = vmul.f32 %v1160, %v1123
        %v1165 = vmul.f32 %v1161, %v1123
        %v1166 = vmul.f32 %v1162, %v1123
        %v1167 = vmul.f32 %v1163, %v1123
        %v1168 = vmul.f32 %v1164, %v1131
        %v1169 = vmul.f32 %v1165, %v1131
        %v1170 = vmul.f32 %v1166, %v1131
        %v1171 = vmul.f32 %v1167, %v1131
        %v1172 = vadd.f32 %v1168, %v1138
        %v1173 = vadd.f32 %v1169, %v1138
        %v1174 = vadd.f32 %v1170, %v1138
        %v1175 = vadd.f32 %v1171, %v1138
        %v1176 = vmax.f32 %v1172, 0.0
        %v1177 = vmax.f32 %v1173, 0.0
        %v1178 = vmax.f32 %v1174, 0.0
        %v1179 = vmax.f32 %v1175, 0.0
        %v1180 = vpack.c.bf16 %v1176, %v1176
        %v1181 = vpack.c.bf16 %v1177, %v1177
        %v1182 = vpack.c.bf16 %v1178, %v1178
        %v1183 = vpack.c.bf16 %v1179, %v1179
        %s1184 = scalar_lea.vmem %s4, 16
        %1185 = vst [vmem:[%s1184] sm:$0xf] %v1180
        %1186 = vst [vmem:[%s1184 + $0x4] sm:$0xf] %v1181
        %1187 = vst [vmem:[%s1184 + $0x8] sm:$0xf] %v1182
        %1188 = vst [vmem:[%s1184 + $0xc] sm:$0xf] %v1183
        %v1189 = vld [vmem:[%s1002] sm:$0xff]
        %v1190 = vld [vmem:[%s1002 + $0x8] sm:$0xff]
        %v1191 = vld [vmem:[%s1002 + $0x10] sm:$0xff]
        %v1192 = vld [vmem:[%s1002 + $0x18] sm:$0xff]
        %v1193 = vsub.f32 %v1189, %v1039
        %v1194 = vsub.f32 %v1190, %v1039
        %v1195 = vsub.f32 %v1191, %v1039
        %v1196 = vsub.f32 %v1192, %v1039
        %v1197 = vmul.f32 %v1193, %v1123
        %v1198 = vmul.f32 %v1194, %v1123
        %v1199 = vmul.f32 %v1195, %v1123
        %v1200 = vmul.f32 %v1196, %v1123
        %v1201 = vmul.f32 %v1197, %v1131
        %v1202 = vmul.f32 %v1198, %v1131
        %v1203 = vmul.f32 %v1199, %v1131
        %v1204 = vmul.f32 %v1200, %v1131
        %v1205 = vadd.f32 %v1201, %v1138
        %v1206 = vadd.f32 %v1202, %v1138
        %v1207 = vadd.f32 %v1203, %v1138
        %v1208 = vadd.f32 %v1204, %v1138
        %v1209 = vmax.f32 %v1205, 0.0
        %v1210 = vmax.f32 %v1206, 0.0
        %v1211 = vmax.f32 %v1207, 0.0
        %v1212 = vmax.f32 %v1208, 0.0
        %v1213 = vpack.c.bf16 %v1209, %v1209
        %v1214 = vpack.c.bf16 %v1210, %v1210
        %v1215 = vpack.c.bf16 %v1211, %v1211
        %v1216 = vpack.c.bf16 %v1212, %v1212
        %s1217 = scalar_lea.vmem %s4, 32
        %1218 = vst [vmem:[%s1217] sm:$0xf] %v1213
        %1219 = vst [vmem:[%s1217 + $0x4] sm:$0xf] %v1214
        %1220 = vst [vmem:[%s1217 + $0x8] sm:$0xf] %v1215
        %1221 = vst [vmem:[%s1217 + $0xc] sm:$0xf] %v1216
        %v1222 = vld [vmem:[%s1017] sm:$0xff]
        %v1223 = vld [vmem:[%s1017 + $0x8] sm:$0xff]
        %v1224 = vld [vmem:[%s1017 + $0x10] sm:$0xff]
        %v1225 = vld [vmem:[%s1017 + $0x18] sm:$0xff]
        %v1226 = vsub.f32 %v1222, %v1039
        %v1227 = vsub.f32 %v1223, %v1039
        %v1228 = vsub.f32 %v1224, %v1039
        %v1229 = vsub.f32 %v1225, %v1039
        %v1230 = vmul.f32 %v1226, %v1123
        %v1231 = vmul.f32 %v1227, %v1123
        %v1232 = vmul.f32 %v1228, %v1123
        %v1233 = vmul.f32 %v1229, %v1123
        %v1234 = vmul.f32 %v1230, %v1131
        %v1235 = vmul.f32 %v1231, %v1131
        %v1236 = vmul.f32 %v1232, %v1131
        %v1237 = vmul.f32 %v1233, %v1131
        %v1238 = vadd.f32 %v1234, %v1138
        %v1239 = vadd.f32 %v1235, %v1138
        %v1240 = vadd.f32 %v1236, %v1138
        %v1241 = vadd.f32 %v1237, %v1138
        %v1242 = vmax.f32 %v1238, 0.0
        %v1243 = vmax.f32 %v1239, 0.0
        %v1244 = vmax.f32 %v1240, 0.0
        %v1245 = vmax.f32 %v1241, 0.0
        %v1246 = vpack.c.bf16 %v1242, %v1242
        %v1247 = vpack.c.bf16 %v1243, %v1243
        %v1248 = vpack.c.bf16 %v1244, %v1244
        %v1249 = vpack.c.bf16 %v1245, %v1245
        %s1250 = scalar_lea.vmem %s4, 48
        %1251 = vst [vmem:[%s1250] sm:$0xf] %v1246
        %1252 = vst [vmem:[%s1250 + $0x4] sm:$0xf] %v1247
        %1253 = vst [vmem:[%s1250 + $0x8] sm:$0xf] %v1248
        %1254 = vst [vmem:[%s1250 + $0xc] sm:$0xf] %v1249
      $region40: #{generator_forward.5} parent=35 // pred_fallthru
        _
      // Predicated region
      $region41: #{generator_forward.5} parent=35 // pred_check
        %p1255 = pneg %p122
      $region42: #{generator_forward.5} parent=35 // pred_check_branch
        %1257 = sbr.rel (%p1255) target = $region44
      $region43: #{generator_forward.5} parent=35 // pred_region
        _
      $region44: #{generator_forward.5} parent=35 // pred_fallthru
        _
      // Predicated region
      $region45: #{generator_forward.5} parent=35 // pred_check
        %p1258 = pneg %p122
      $region46: #{generator_forward.5} parent=35 // pred_check_branch
        %1260 = sbr.rel (%p1258) target = $region48
      $region47: #{generator_forward.5} parent=35 // pred_region
        _
      $region48: #{generator_forward.5} parent=35 // pred_fallthru
        _
    $region36: #{generator_forward.5} parent=5 // pred_fallthru
      _
    %p1261 = scmp.le.s32.totalorder 2, %s10
    // Predicated region
    $region49: #{generator_forward.5} parent=5 // pred_check
      %p1262 = pneg %p1261
    $region50: #{generator_forward.5} parent=5 // pred_check_branch
      %1264 = sbr.rel (%p1262) target = $region52
    $region51: #{generator_forward.5} parent=5 // pred_region
      %s1265 = ssub.s32 %s10, 2
    $region52: #{generator_forward.5} parent=5 // pred_fallthru
      _
  $region6: #{generator_forward.5} parent=0 // loop_footer
    %s14 = sadd.s32 1, %s10
  $region7: #{generator_forward.5} parent=0 // loop_footer_branch
    %9 = sbr.rel target = $region3
  $region8: #{generator_forward.5} parent=0 // loop_exit
    _

// kernel: generator_forward.6
$region0: #{generator_forward.6}
  #allocation0 [shape = 'u32[]', space=smem, size = 0x4, offset = 0x4, fixed_abs, tag = 'smem constant byte address 0x4 - core index']
  #allocation1 [shape = 'u32[72,128]{1,0:T(1,128)}', space=vmem, size = 0x9000, scoped, tag = 'internal scratch']
  #allocation2 [shape = 'f32[4,128,64]{2,1,0:T(8,128)}', space=vmem, size = 0x40000, scoped, tag = 'scratch operand']
  %s0 = inlined_call_operand.vmem [shape: bf16[4,128,512], index: 0, kind: input, shape index: {}]
  %s1 = inlined_call_operand.vmem [shape: bf16[4,512,64], index: 1, kind: input, shape index: {}]
  %s2 = inlined_call_operand.vmem [shape: f32[1,64], index: 2, kind: input, shape index: {}]
  %s3 = inlined_call_operand.vmem [shape: f32[1,64], index: 3, kind: input, shape index: {}]
  %s4 = inlined_call_operand.vmem [shape: bf16[4,128,64], index: 4, kind: output, shape index: {}]
  %s5 = sld [smem:[#allocation0]]
  $region53: #{generator_forward.6} parent=0
    _
  %s7 = ssub.s32 1, %s5
  %s8 = scalar_select 0, %s7, %s5
  loop: start=0, step=1, limit=6
  $region2: #{generator_forward.6} parent=0 // loop_pre_header
    _
  $region3: #{generator_forward.6} parent=0 // loop_header
    %s10 = sphi 0, %s14
    %p11 = scmp.ge.s32.totalorder %s10, 6
    %s20 = sphi 0, %s22
    %s23 = sphi 0, %s20
    %s24 = sphi 0, %s23
    %s40 = sphi 0, %s24
    %s46 = sphi 0, %s48
    %s49 = sphi 0, %s46
    %s50 = sphi 0, %s49
    %s66 = sphi 0, %s50
    %s70 = sphi 0, %s70
    %s72 = sphi 0, %s70
    %s73 = sphi 0, %s72
    %s87 = sphi 0, %s73
    %s91 = sphi 0, %s91
    %s93 = sphi 0, %s91
    %s94 = sphi 0, %s93
    %s108 = sphi 0, %s94
    %s112 = sphi 0, %s112
    %s114 = sphi 0, %s112
    %s115 = sphi 0, %s114
    %s129 = sphi 0, %s115
  $region4: #{generator_forward.6} parent=0 // loop_header_branch
    %13 = sbr.rel (%p11) target = $region8
  $region5: #{generator_forward.6} parent=0 // loop_body
    %s15 = ssub.s32 %s10, 1
    %s16 = ssub.s32 %s10, 2
    %s17 = sadd.s32 %s10, 1
    %s18 = ssub.s32 %s10, %s17
    %p19 = scmp.eq.s32.totalorder %s18, 0
    %s21 = sadd.s32 %s20, 1
    %s22 = scalar_select %p19, %s20, %s21
    %p25 = pneg %p19
    %p26 = scmp.eq.s32.totalorder %s10, 3
    %p27 = por %p25, %p26
    %p28 = scmp.ne.s32.totalorder %s20, %s23
    %p29 = scmp.eq.s32.totalorder %s10, 0
    %p30 = por %p28, %p29
    %p31 = scmp.ne.s32.totalorder %s20, %s23
    %p32 = scmp.eq.s32.totalorder %s15, 3
    %p33 = por %p31, %p32
    %p34 = scmp.ne.s32.totalorder %s23, %s24
    %p35 = scmp.eq.s32.totalorder %s15, 0
    %p36 = por %p34, %p35
    %p37 = scmp.ne.s32.totalorder %s23, %s24
    %p38 = scmp.eq.s32.totalorder %s16, 3
    %p39 = por %p37, %p38
    %p41 = scmp.ne.s32.totalorder %s24, %s40
    %p42 = scmp.eq.s32.totalorder %s16, 0
    %p43 = por %p41, %p42
    %s44 = ssub.s32 %s10, %s17
    %p45 = scmp.eq.s32.totalorder %s44, 0
    %s47 = sadd.s32 %s46, 1
    %s48 = scalar_select %p45, %s46, %s47
    %p51 = pneg %p45
    %p52 = scmp.eq.s32.totalorder %s10, 3
    %p53 = por %p51, %p52
    %p54 = scmp.ne.s32.totalorder %s46, %s49
    %p55 = scmp.eq.s32.totalorder %s10, 0
    %p56 = por %p54, %p55
    %p57 = scmp.ne.s32.totalorder %s46, %s49
    %p58 = scmp.eq.s32.totalorder %s15, 3
    %p59 = por %p57, %p58
    %p60 = scmp.ne.s32.totalorder %s49, %s50
    %p61 = scmp.eq.s32.totalorder %s15, 0
    %p62 = por %p60, %p61
    %p63 = scmp.ne.s32.totalorder %s49, %s50
    %p64 = scmp.eq.s32.totalorder %s16, 3
    %p65 = por %p63, %p64
    %p67 = scmp.ne.s32.totalorder %s50, %s66
    %p68 = scmp.eq.s32.totalorder %s16, 0
    %p69 = por %p67, %p68
    %s71 = sadd.s32 %s70, 1
    %p74 = scmp.eq.s32.totalorder %s10, 3
    %p75 = scmp.ne.s32.totalorder %s70, %s72
    %p76 = scmp.eq.s32.totalorder %s10, 0
    %p77 = por %p75, %p76
    %p78 = scmp.ne.s32.totalorder %s70, %s72
    %p79 = scmp.eq.s32.totalorder %s15, 3
    %p80 = por %p78, %p79
    %p81 = scmp.ne.s32.totalorder %s72, %s73
    %p82 = scmp.eq.s32.totalorder %s15, 0
    %p83 = por %p81, %p82
    %p84 = scmp.ne.s32.totalorder %s72, %s73
    %p85 = scmp.eq.s32.totalorder %s16, 3
    %p86 = por %p84, %p85
    %p88 = scmp.ne.s32.totalorder %s73, %s87
    %p89 = scmp.eq.s32.totalorder %s16, 0
    %p90 = por %p88, %p89
    %s92 = sadd.s32 %s91, 1
    %p95 = scmp.eq.s32.totalorder %s10, 3
    %p96 = scmp.ne.s32.totalorder %s91, %s93
    %p97 = scmp.eq.s32.totalorder %s10, 0
    %p98 = por %p96, %p97
    %p99 = scmp.ne.s32.totalorder %s91, %s93
    %p100 = scmp.eq.s32.totalorder %s15, 3
    %p101 = por %p99, %p100
    %p102 = scmp.ne.s32.totalorder %s93, %s94
    %p103 = scmp.eq.s32.totalorder %s15, 0
    %p104 = por %p102, %p103
    %p105 = scmp.ne.s32.totalorder %s93, %s94
    %p106 = scmp.eq.s32.totalorder %s16, 3
    %p107 = por %p105, %p106
    %p109 = scmp.ne.s32.totalorder %s94, %s108
    %p110 = scmp.eq.s32.totalorder %s16, 0
    %p111 = por %p109, %p110
    %s113 = sadd.s32 %s112, 1
    %p116 = scmp.eq.s32.totalorder %s10, 3
    %p117 = scmp.ne.s32.totalorder %s112, %s114
    %p118 = scmp.eq.s32.totalorder %s10, 0
    %p119 = por %p117, %p118
    %p120 = scmp.ne.s32.totalorder %s112, %s114
    %p121 = scmp.eq.s32.totalorder %s15, 3
    %p122 = por %p120, %p121
    %p123 = scmp.ne.s32.totalorder %s114, %s115
    %p124 = scmp.eq.s32.totalorder %s15, 0
    %p125 = por %p123, %p124
    %p126 = scmp.ne.s32.totalorder %s114, %s115
    %p127 = scmp.eq.s32.totalorder %s16, 3
    %p128 = por %p126, %p127
    %p130 = scmp.ne.s32.totalorder %s115, %s129
    %p131 = scmp.eq.s32.totalorder %s16, 0
    %p132 = por %p130, %p131
    %p133 = scmp.le.s32.totalorder 1, %s10
    %p134 = scmp.lt.s32.totalorder %s10, 5
    %p135 = pnand %p133, %p134
    %p136 = pneg %p135
    // Predicated region
    $region9: #{generator_forward.6} parent=5 // pred_check
      _
    $region10: #{generator_forward.6} parent=5 // pred_check_branch
      %138 = sbr.rel (%p135) target = $region12
    $region11: #{generator_forward.6} parent=5 // pred_region
      %s139 = ssub.s32 %s10, 1
      // Predicated region
      $region13: #{generator_forward.6} parent=11 // pred_check
        %p140 = pneg %p83
      $region14: #{generator_forward.6} parent=11 // pred_check_branch
        %142 = sbr.rel (%p140) target = $region16
      $region15: #{generator_forward.6} parent=11 // pred_region
        _
      $region16: #{generator_forward.6} parent=11 // pred_fallthru
        _
      // Predicated region
      $region17: #{generator_forward.6} parent=11 // pred_check
        %p143 = pneg %p104
      $region18: #{generator_forward.6} parent=11 // pred_check_branch
        %145 = sbr.rel (%p143) target = $region20
      $region19: #{generator_forward.6} parent=11 // pred_region
        _
      $region20: #{generator_forward.6} parent=11 // pred_fallthru
        _
    $region12: #{generator_forward.6} parent=5 // pred_fallthru
      _
    %p146 = scmp.lt.s32.totalorder %s10, 4
    // Predicated region
    $region21: #{generator_forward.6} parent=5 // pred_check
      %p147 = pneg %p146
    $region22: #{generator_forward.6} parent=5 // pred_check_branch
      %149 = sbr.rel (%p147) target = $region24
    $region23: #{generator_forward.6} parent=5 // pred_region
      // Predicated region
      $region25: #{generator_forward.6} parent=23 // pred_check
        %p150 = pneg %p30
      $region26: #{generator_forward.6} parent=23 // pred_check_branch
        %152 = sbr.rel (%p150) target = $region28
      $region27: #{generator_forward.6} parent=23 // pred_region
        %p153 = scmp.lt.s32.totalorder %s10, 3
        %s154 = scalar_select %p153, %s10, 3
        %s155 = smul.addr %s154, 64
        %s156 = smul.addr %s155, 4
        %s157 = scalar_lea.vmem %s0, %s156
      $region28: #{generator_forward.6} parent=23 // pred_fallthru
        _
      // Predicated region
      $region29: #{generator_forward.6} parent=23 // pred_check
        %p158 = pneg %p56
      $region30: #{generator_forward.6} parent=23 // pred_check_branch
        %160 = sbr.rel (%p158) target = $region32
      $region31: #{generator_forward.6} parent=23 // pred_region
        %p161 = scmp.lt.s32.totalorder %s10, 3
        %s162 = scalar_select %p161, %s10, 3
        %s163 = smul.addr %s162, 64
        %s164 = smul.addr %s163, 4
        %s165 = scalar_lea.vmem %s1, %s164
      $region32: #{generator_forward.6} parent=23 // pred_fallthru
        _
    $region24: #{generator_forward.6} parent=5 // pred_fallthru
      _
    %p166 = scmp.le.s32.totalorder 1, %s10
    %p167 = scmp.lt.s32.totalorder %s10, 5
    %p168 = pnand %p166, %p167
    %p169 = pneg %p168
    // Predicated region
    $region33: #{generator_forward.6} parent=5 // pred_check
      _
    $region34: #{generator_forward.6} parent=5 // pred_check_branch
      %171 = sbr.rel (%p168) target = $region36
    $region35: #{generator_forward.6} parent=5 // pred_region
      %s172 = ssub.s32 %s10, 1
      %p173 = scmp.lt.s32.totalorder %s15, 3
      %s174 = scalar_select %p173, %s15, 3
      %s175 = smul.addr %s174, 64
      %s176 = smul.addr %s175, 4
      %s177 = scalar_lea.vmem %s0, %s176
      %p178 = pneg %p36
      %p179 = pneg %p33
      %p180 = scmp.lt.s32.totalorder %s15, 3
      %s181 = scalar_select %p180, %s15, 3
      %s182 = smul.addr %s181, 64
      %s183 = smul.addr %s182, 4
      %s184 = scalar_lea.vmem %s1, %s183
      %p185 = pneg %p62
      %p186 = pneg %p59
      %p187 = pneg %p83
      %p188 = pneg %p80
      %p189 = pneg %p104
      %p190 = pneg %p101
      %p191 = pneg %p125
      %p192 = pneg %p122
      %p193 = scmp.lt.s32.totalorder %s15, 3
      %s194 = scalar_select %p193, %s15, 3
      %s195 = smul.addr %s194, 64
      %s196 = smul.addr %s195, 4
      %s197 = scalar_lea.vmem %s0, %s196
      %p198 = scmp.lt.s32.totalorder %s15, 3
      %s199 = scalar_select %p198, %s15, 3
      %s200 = smul.addr %s199, 64
      %s201 = smul.addr %s200, 4
      %s202 = scalar_lea.vmem %s1, %s201
      %v203 = vld [vmem:[%s197] sm:$0xff]
      %v204 = vld [vmem:[%s197 + $0x8] sm:$0xff]
      %v205 = vld [vmem:[%s197 + $0x10] sm:$0xff]
      %v206 = vld [vmem:[%s197 + $0x18] sm:$0xff]
      %v207 = vld [vmem:[%s197 + $0x20] sm:$0xff]
      %v208 = vld [vmem:[%s197 + $0x28] sm:$0xff]
      %v209 = vld [vmem:[%s197 + $0x30] sm:$0xff]
      %v210 = vld [vmem:[%s197 + $0x38] sm:$0xff]
      %v211 = vld [vmem:[%s197 + $0x40] sm:$0xff]
      %v212 = vld [vmem:[%s197 + $0x48] sm:$0xff]
      %v213 = vld [vmem:[%s197 + $0x50] sm:$0xff]
      %v214 = vld [vmem:[%s197 + $0x58] sm:$0xff]
      %v215 = vld [vmem:[%s197 + $0x60] sm:$0xff]
      %v216 = vld [vmem:[%s197 + $0x68] sm:$0xff]
      %v217 = vld [vmem:[%s197 + $0x70] sm:$0xff]
      %v218 = vld [vmem:[%s197 + $0x78] sm:$0xff]
      %v219 = vld [vmem:[%s197 + $0x80] sm:$0xff]
      %v220 = vld [vmem:[%s197 + $0x88] sm:$0xff]
      %v221 = vld [vmem:[%s197 + $0x90] sm:$0xff]
      %v222 = vld [vmem:[%s197 + $0x98] sm:$0xff]
      %v223 = vld [vmem:[%s197 + $0xa0] sm:$0xff]
      %v224 = vld [vmem:[%s197 + $0xa8] sm:$0xff]
      %v225 = vld [vmem:[%s197 + $0xb0] sm:$0xff]
      %v226 = vld [vmem:[%s197 + $0xb8] sm:$0xff]
      %v227 = vld [vmem:[%s197 + $0xc0] sm:$0xff]
      %v228 = vld [vmem:[%s197 + $0xc8] sm:$0xff]
      %v229 = vld [vmem:[%s197 + $0xd0] sm:$0xff]
      %v230 = vld [vmem:[%s197 + $0xd8] sm:$0xff]
      %v231 = vld [vmem:[%s197 + $0xe0] sm:$0xff]
      %v232 = vld [vmem:[%s197 + $0xe8] sm:$0xff]
      %v233 = vld [vmem:[%s197 + $0xf0] sm:$0xff]
      %v234 = vld [vmem:[%s197 + $0xf8] sm:$0xff]
      %v235 = vld [vmem:[%s202] sm:$0xf]
      %v236 = vld [vmem:[%s202 + $0x4] sm:$0xf]
      %v237 = vld [vmem:[%s202 + $0x8] sm:$0xf]
      %v238 = vld [vmem:[%s202 + $0xc] sm:$0xf]
      %v239 = vld [vmem:[%s202 + $0x10] sm:$0xf]
      %v240 = vld [vmem:[%s202 + $0x14] sm:$0xf]
      %v241 = vld [vmem:[%s202 + $0x18] sm:$0xf]
      %v242 = vld [vmem:[%s202 + $0x1c] sm:$0xf]
      %v243 = vld [vmem:[%s202 + $0x20] sm:$0xf]
      %v244 = vld [vmem:[%s202 + $0x24] sm:$0xf]
      %v245 = vld [vmem:[%s202 + $0x28] sm:$0xf]
      %v246 = vld [vmem:[%s202 + $0x2c] sm:$0xf]
      %v247 = vld [vmem:[%s202 + $0x30] sm:$0xf]
      %v248 = vld [vmem:[%s202 + $0x34] sm:$0xf]
      %v249 = vld [vmem:[%s202 + $0x38] sm:$0xf]
      %v250 = vld [vmem:[%s202 + $0x3c] sm:$0xf]
      %v251 = vld [vmem:[%s202 + $0x40] sm:$0xf]
      %v252 = vld [vmem:[%s202 + $0x44] sm:$0xf]
      %v253 = vld [vmem:[%s202 + $0x48] sm:$0xf]
      %v254 = vld [vmem:[%s202 + $0x4c] sm:$0xf]
      %v255 = vld [vmem:[%s202 + $0x50] sm:$0xf]
      %v256 = vld [vmem:[%s202 + $0x54] sm:$0xf]
      %v257 = vld [vmem:[%s202 + $0x58] sm:$0xf]
      %v258 = vld [vmem:[%s202 + $0x5c] sm:$0xf]
      %v259 = vld [vmem:[%s202 + $0x60] sm:$0xf]
      %v260 = vld [vmem:[%s202 + $0x64] sm:$0xf]
      %v261 = vld [vmem:[%s202 + $0x68] sm:$0xf]
      %v262 = vld [vmem:[%s202 + $0x6c] sm:$0xf]
      %v263 = vld [vmem:[%s202 + $0x70] sm:$0xf]
      %v264 = vld [vmem:[%s202 + $0x74] sm:$0xf]
      %v265 = vld [vmem:[%s202 + $0x78] sm:$0xf]
      %v266 = vld [vmem:[%s202 + $0x7c] sm:$0xf]
      %v267 = vld [vmem:[%s202 + $0x80] sm:$0xf]
      %v268 = vld [vmem:[%s202 + $0x84] sm:$0xf]
      %v269 = vld [vmem:[%s202 + $0x88] sm:$0xf]
      %v270 = vld [vmem:[%s202 + $0x8c] sm:$0xf]
      %v271 = vld [vmem:[%s202 + $0x90] sm:$0xf]
      %v272 = vld [vmem:[%s202 + $0x94] sm:$0xf]
      %v273 = vld [vmem:[%s202 + $0x98] sm:$0xf]
      %v274 = vld [vmem:[%s202 + $0x9c] sm:$0xf]
      %v275 = vld [vmem:[%s202 + $0xa0] sm:$0xf]
      %v276 = vld [vmem:[%s202 + $0xa4] sm:$0xf]
      %v277 = vld [vmem:[%s202 + $0xa8] sm:$0xf]
      %v278 = vld [vmem:[%s202 + $0xac] sm:$0xf]
      %v279 = vld [vmem:[%s202 + $0xb0] sm:$0xf]
      %v280 = vld [vmem:[%s202 + $0xb4] sm:$0xf]
      %v281 = vld [vmem:[%s202 + $0xb8] sm:$0xf]
      %v282 = vld [vmem:[%s202 + $0xbc] sm:$0xf]
      %v283 = vld [vmem:[%s202 + $0xc0] sm:$0xf]
      %v284 = vld [vmem:[%s202 + $0xc4] sm:$0xf]
      %v285 = vld [vmem:[%s202 + $0xc8] sm:$0xf]
      %v286 = vld [vmem:[%s202 + $0xcc] sm:$0xf]
      %v287 = vld [vmem:[%s202 + $0xd0] sm:$0xf]
      %v288 = vld [vmem:[%s202 + $0xd4] sm:$0xf]
      %v289 = vld [vmem:[%s202 + $0xd8] sm:$0xf]
      %v290 = vld [vmem:[%s202 + $0xdc] sm:$0xf]
      %v291 = vld [vmem:[%s202 + $0xe0] sm:$0xf]
      %v292 = vld [vmem:[%s202 + $0xe4] sm:$0xf]
      %v293 = vld [vmem:[%s202 + $0xe8] sm:$0xf]
      %v294 = vld [vmem:[%s202 + $0xec] sm:$0xf]
      %v295 = vld [vmem:[%s202 + $0xf0] sm:$0xf]
      %v296 = vld [vmem:[%s202 + $0xf4] sm:$0xf]
      %v297 = vld [vmem:[%s202 + $0xf8] sm:$0xf]
      %v298 = vld [vmem:[%s202 + $0xfc] sm:$0xf]
      %v331 = vunpack.c.l.b16 %v203
      %v332 = vunpack.c.h.b16 %v203
      %v333 = vunpack.c.l.b16 %v204
      %v334 = vunpack.c.h.b16 %v204
      %v335 = vunpack.c.l.b16 %v205
      %v336 = vunpack.c.h.b16 %v205
      %v337 = vunpack.c.l.b16 %v206
      %v338 = vunpack.c.h.b16 %v206
      %v339 = vunpack.c.l.b16 %v207
      %v340 = vunpack.c.h.b16 %v207
      %v341 = vunpack.c.l.b16 %v208
      %v342 = vunpack.c.h.b16 %v208
      %v343 = vunpack.c.l.b16 %v209
      %v344 = vunpack.c.h.b16 %v209
      %v345 = vunpack.c.l.b16 %v210
      %v346 = vunpack.c.h.b16 %v210
      %v347 = vunpack.c.l.b16 %v211
      %v348 = vunpack.c.h.b16 %v211
      %v349 = vunpack.c.l.b16 %v212
      %v350 = vunpack.c.h.b16 %v212
      %v351 = vunpack.c.l.b16 %v213
      %v352 = vunpack.c.h.b16 %v213
      %v353 = vunpack.c.l.b16 %v214
      %v354 = vunpack.c.h.b16 %v214
      %v355 = vunpack.c.l.b16 %v215
      %v356 = vunpack.c.h.b16 %v215
      %v357 = vunpack.c.l.b16 %v216
      %v358 = vunpack.c.h.b16 %v216
      %v359 = vunpack.c.l.b16 %v217
      %v360 = vunpack.c.h.b16 %v217
      %v361 = vunpack.c.l.b16 %v218
      %v362 = vunpack.c.h.b16 %v218
      %v363 = vunpack.c.l.b16 %v219
      %v364 = vunpack.c.h.b16 %v219
      %v365 = vunpack.c.l.b16 %v220
      %v366 = vunpack.c.h.b16 %v220
      %v367 = vunpack.c.l.b16 %v221
      %v368 = vunpack.c.h.b16 %v221
      %v369 = vunpack.c.l.b16 %v222
      %v370 = vunpack.c.h.b16 %v222
      %v371 = vunpack.c.l.b16 %v223
      %v372 = vunpack.c.h.b16 %v223
      %v373 = vunpack.c.l.b16 %v224
      %v374 = vunpack.c.h.b16 %v224
      %v375 = vunpack.c.l.b16 %v225
      %v376 = vunpack.c.h.b16 %v225
      %v377 = vunpack.c.l.b16 %v226
      %v378 = vunpack.c.h.b16 %v226
      %v379 = vunpack.c.l.b16 %v227
      %v380 = vunpack.c.h.b16 %v227
      %v381 = vunpack.c.l.b16 %v228
      %v382 = vunpack.c.h.b16 %v228
      %v383 = vunpack.c.l.b16 %v229
      %v384 = vunpack.c.h.b16 %v229
      %v385 = vunpack.c.l.b16 %v230
      %v386 = vunpack.c.h.b16 %v230
      %v387 = vunpack.c.l.b16 %v231
      %v388 = vunpack.c.h.b16 %v231
      %v389 = vunpack.c.l.b16 %v232
      %v390 = vunpack.c.h.b16 %v232
      %v391 = vunpack.c.l.b16 %v233
      %v392 = vunpack.c.h.b16 %v233
      %v393 = vunpack.c.l.b16 %v234
      %v394 = vunpack.c.h.b16 %v234
      %v395 = vpack.c.b16 %v335, %v331
      %v396 = vpack.c.b16 %v336, %v332
      %v397 = vpack.c.b16 %v337, %v333
      %v398 = vpack.c.b16 %v338, %v334
      %v399 = vpack.c.b16 %v343, %v339
      %v400 = vpack.c.b16 %v344, %v340
      %v401 = vpack.c.b16 %v345, %v341
      %v402 = vpack.c.b16 %v346, %v342
      %v403 = vpack.c.b16 %v351, %v347
      %v404 = vpack.c.b16 %v352, %v348
      %v405 = vpack.c.b16 %v353, %v349
      %v406 = vpack.c.b16 %v354, %v350
      %v407 = vpack.c.b16 %v359, %v355
      %v408 = vpack.c.b16 %v360, %v356
      %v409 = vpack.c.b16 %v361, %v357
      %v410 = vpack.c.b16 %v362, %v358
      %v411 = vpack.c.b16 %v367, %v363
      %v412 = vpack.c.b16 %v368, %v364
      %v413 = vpack.c.b16 %v369, %v365
      %v414 = vpack.c.b16 %v370, %v366
      %v415 = vpack.c.b16 %v375, %v371
      %v416 = vpack.c.b16 %v376, %v372
      %v417 = vpack.c.b16 %v377, %v373
      %v418 = vpack.c.b16 %v378, %v374
      %v419 = vpack.c.b16 %v383, %v379
      %v420 = vpack.c.b16 %v384, %v380
      %v421 = vpack.c.b16 %v385, %v381
      %v422 = vpack.c.b16 %v386, %v382
      %v423 = vpack.c.b16 %v391, %v387
      %v424 = vpack.c.b16 %v392, %v388
      %v425 = vpack.c.b16 %v393, %v389
      %v426 = vpack.c.b16 %v394, %v390
      %v523 = vunpack.c.l.b16 %v235
      %v524 = vunpack.c.l.b16 %v236
      %v525 = vunpack.c.l.b16 %v237
      %v526 = vunpack.c.l.b16 %v238
      %v527 = vunpack.c.l.b16 %v239
      %v528 = vunpack.c.l.b16 %v240
      %v529 = vunpack.c.l.b16 %v241
      %v530 = vunpack.c.l.b16 %v242
      %v531 = vunpack.c.l.b16 %v243
      %v532 = vunpack.c.l.b16 %v244
      %v533 = vunpack.c.l.b16 %v245
      %v534 = vunpack.c.l.b16 %v246
      %v535 = vunpack.c.l.b16 %v247
      %v536 = vunpack.c.l.b16 %v248
      %v537 = vunpack.c.l.b16 %v249
      %v538 = vunpack.c.l.b16 %v250
      %v539 = vunpack.c.l.b16 %v251
      %v540 = vunpack.c.l.b16 %v252
      %v541 = vunpack.c.l.b16 %v253
      %v542 = vunpack.c.l.b16 %v254
      %v543 = vunpack.c.l.b16 %v255
      %v544 = vunpack.c.l.b16 %v256
      %v545 = vunpack.c.l.b16 %v257
      %v546 = vunpack.c.l.b16 %v258
      %v547 = vunpack.c.l.b16 %v259
      %v548 = vunpack.c.l.b16 %v260
      %v549 = vunpack.c.l.b16 %v261
      %v550 = vunpack.c.l.b16 %v262
      %v551 = vunpack.c.l.b16 %v263
      %v552 = vunpack.c.l.b16 %v264
      %v553 = vunpack.c.l.b16 %v265
      %v554 = vunpack.c.l.b16 %v266
      %v555 = vunpack.c.l.b16 %v267
      %v556 = vunpack.c.l.b16 %v268
      %v557 = vunpack.c.l.b16 %v269
      %v558 = vunpack.c.l.b16 %v270
      %v559 = vunpack.c.l.b16 %v271
      %v560 = vunpack.c.l.b16 %v272
      %v561 = vunpack.c.l.b16 %v273
      %v562 = vunpack.c.l.b16 %v274
      %v563 = vunpack.c.l.b16 %v275
      %v564 = vunpack.c.l.b16 %v276
      %v565 = vunpack.c.l.b16 %v277
      %v566 = vunpack.c.l.b16 %v278
      %v567 = vunpack.c.l.b16 %v279
      %v568 = vunpack.c.l.b16 %v280
      %v569 = vunpack.c.l.b16 %v281
      %v570 = vunpack.c.l.b16 %v282
      %v571 = vunpack.c.l.b16 %v283
      %v572 = vunpack.c.l.b16 %v284
      %v573 = vunpack.c.l.b16 %v285
      %v574 = vunpack.c.l.b16 %v286
      %v575 = vunpack.c.l.b16 %v287
      %v576 = vunpack.c.l.b16 %v288
      %v577 = vunpack.c.l.b16 %v289
      %v578 = vunpack.c.l.b16 %v290
      %v579 = vunpack.c.l.b16 %v291
      %v580 = vunpack.c.l.b16 %v292
      %v581 = vunpack.c.l.b16 %v293
      %v582 = vunpack.c.l.b16 %v294
      %v583 = vunpack.c.l.b16 %v295
      %v584 = vunpack.c.l.b16 %v296
      %v585 = vunpack.c.l.b16 %v297
      %v586 = vunpack.c.l.b16 %v298
      %v587 = vpack.c.b16 %v524, %v523
      %v588 = vpack.c.b16 %v526, %v525
      %v589 = vpack.c.b16 %v528, %v527
      %v590 = vpack.c.b16 %v530, %v529
      %v591 = vpack.c.b16 %v532, %v531
      %v592 = vpack.c.b16 %v534, %v533
      %v593 = vpack.c.b16 %v536, %v535
      %v594 = vpack.c.b16 %v538, %v537
      %v595 = vpack.c.b16 %v540, %v539
      %v596 = vpack.c.b16 %v542, %v541
      %v597 = vpack.c.b16 %v544, %v543
      %v598 = vpack.c.b16 %v546, %v545
      %v599 = vpack.c.b16 %v548, %v547
      %v600 = vpack.c.b16 %v550, %v549
      %v601 = vpack.c.b16 %v552, %v551
      %v602 = vpack.c.b16 %v554, %v553
      %v603 = vpack.c.b16 %v556, %v555
      %v604 = vpack.c.b16 %v558, %v557
      %v605 = vpack.c.b16 %v560, %v559
      %v606 = vpack.c.b16 %v562, %v561
      %v607 = vpack.c.b16 %v564, %v563
      %v608 = vpack.c.b16 %v566, %v565
      %v609 = vpack.c.b16 %v568, %v567
      %v610 = vpack.c.b16 %v570, %v569
      %v611 = vpack.c.b16 %v572, %v571
      %v612 = vpack.c.b16 %v574, %v573
      %v613 = vpack.c.b16 %v576, %v575
      %v614 = vpack.c.b16 %v578, %v577
      %v615 = vpack.c.b16 %v580, %v579
      %v616 = vpack.c.b16 %v582, %v581
      %v617 = vpack.c.b16 %v584, %v583
      %v618 = vpack.c.b16 %v586, %v585
      %651 = vmatpush.bf16.msra.mxu0 %v594
      %652 = vmatpush.bf16.msra.mxu0 %v593
      %653 = vmatpush.bf16.msra.mxu0 %v592
      %654 = vmatpush.bf16.msra.mxu0 %v591
      %655 = vmatpush.bf16.msra.mxu0 %v590
      %656 = vmatpush.bf16.msra.mxu0 %v589
      %657 = vmatpush.bf16.msra.mxu0 %v588
      %658 = vmatpush.bf16.msra.mxu0 %v587
      %659 = vmatmul.bf16.gmra.mxu0 %v395
      %v660 = vpop.f32.mrf.mxu0
      %v661 = vadd.f32 0.0, %v660
      %v662 = vpop.f32.mrf.mxu0
      %v663 = vadd.f32 0.0, %v662
      %664 = vmatmul.bf16.gmra.mxu0 %v399
      %v665 = vpop.f32.mrf.mxu0
      %v666 = vadd.f32 0.0, %v665
      %v667 = vpop.f32.mrf.mxu0
      %v668 = vadd.f32 0.0, %v667
      %669 = vmatmul.bf16.gmra.mxu0 %v403
      %v670 = vpop.f32.mrf.mxu0
      %v671 = vadd.f32 0.0, %v670
      %v672 = vpop.f32.mrf.mxu0
      %v673 = vadd.f32 0.0, %v672
      %674 = vmatmul.bf16.gmra.mxu0 %v407
      %v675 = vpop.f32.mrf.mxu0
      %v676 = vadd.f32 0.0, %v675
      %v677 = vpop.f32.mrf.mxu0
      %v678 = vadd.f32 0.0, %v677
      %679 = vmatmul.bf16.gmra.mxu0 %v411
      %v680 = vpop.f32.mrf.mxu0
      %v681 = vadd.f32 0.0, %v680
      %v682 = vpop.f32.mrf.mxu0
      %v683 = vadd.f32 0.0, %v682
      %684 = vmatmul.bf16.gmra.mxu0 %v415
      %v685 = vpop.f32.mrf.mxu0
      %v686 = vadd.f32 0.0, %v685
      %v687 = vpop.f32.mrf.mxu0
      %v688 = vadd.f32 0.0, %v687
      %689 = vmatmul.bf16.gmra.mxu0 %v419
      %v690 = vpop.f32.mrf.mxu0
      %v691 = vadd.f32 0.0, %v690
      %v692 = vpop.f32.mrf.mxu0
      %v693 = vadd.f32 0.0, %v692
      %694 = vmatmul.bf16.gmra.mxu0 %v423
      %v695 = vpop.f32.mrf.mxu0
      %v696 = vadd.f32 0.0, %v695
      %v697 = vpop.f32.mrf.mxu0
      %v698 = vadd.f32 0.0, %v697
      %699 = vdwg.mxu0
      %700 = vmatpush.bf16.msra.mxu0 %v602
      %701 = vmatpush.bf16.msra.mxu0 %v601
      %702 = vmatpush.bf16.msra.mxu0 %v600
      %703 = vmatpush.bf16.msra.mxu0 %v599
      %704 = vmatpush.bf16.msra.mxu0 %v598
      %705 = vmatpush.bf16.msra.mxu0 %v597
      %706 = vmatpush.bf16.msra.mxu0 %v596
      %707 = vmatpush.bf16.msra.mxu0 %v595
      %708 = vmatmul.bf16.gmra.mxu0 %v396
      %v709 = vpop.f32.mrf.mxu0
      %v710 = vadd.f32 %v661, %v709
      %v711 = vpop.f32.mrf.mxu0
      %v712 = vadd.f32 %v663, %v711
      %713 = vmatmul.bf16.gmra.mxu0 %v400
      %v714 = vpop.f32.mrf.mxu0
      %v715 = vadd.f32 %v666, %v714
      %v716 = vpop.f32.mrf.mxu0
      %v717 = vadd.f32 %v668, %v716
      %718 = vmatmul.bf16.gmra.mxu0 %v404
      %v719 = vpop.f32.mrf.mxu0
      %v720 = vadd.f32 %v671, %v719
      %v721 = vpop.f32.mrf.mxu0
      %v722 = vadd.f32 %v673, %v721
      %723 = vmatmul.bf16.gmra.mxu0 %v408
      %v724 = vpop.f32.mrf.mxu0
      %v725 = vadd.f32 %v676, %v724
      %v726 = vpop.f32.mrf.mxu0
      %v727 = vadd.f32 %v678, %v726
      %728 = vmatmul.bf16.gmra.mxu0 %v412
      %v729 = vpop.f32.mrf.mxu0
      %v730 = vadd.f32 %v681, %v729
      %v731 = vpop.f32.mrf.mxu0
      %v732 = vadd.f32 %v683, %v731
      %733 = vmatmul.bf16.gmra.mxu0 %v416
      %v734 = vpop.f32.mrf.mxu0
      %v735 = vadd.f32 %v686, %v734
      %v736 = vpop.f32.mrf.mxu0
      %v737 = vadd.f32 %v688, %v736
      %738 = vmatmul.bf16.gmra.mxu0 %v420
      %v739 = vpop.f32.mrf.mxu0
      %v740 = vadd.f32 %v691, %v739
      %v741 = vpop.f32.mrf.mxu0
      %v742 = vadd.f32 %v693, %v741
      %743 = vmatmul.bf16.gmra.mxu0 %v424
      %v744 = vpop.f32.mrf.mxu0
      %v745 = vadd.f32 %v696, %v744
      %v746 = vpop.f32.mrf.mxu0
      %v747 = vadd.f32 %v698, %v746
      %748 = vdwg.mxu0
      %749 = vmatpush.bf16.msra.mxu0 %v610
      %750 = vmatpush.bf16.msra.mxu0 %v609
      %751 = vmatpush.bf16.msra.mxu0 %v608
      %752 = vmatpush.bf16.msra.mxu0 %v607
      %753 = vmatpush.bf16.msra.mxu0 %v606
      %754 = vmatpush.bf16.msra.mxu0 %v605
      %755 = vmatpush.bf16.msra.mxu0 %v604
      %756 = vmatpush.bf16.msra.mxu0 %v603
      %757 = vmatmul.bf16.gmra.mxu0 %v397
      %v758 = vpop.f32.mrf.mxu0
      %v759 = vadd.f32 %v710, %v758
      %v760 = vpop.f32.mrf.mxu0
      %v761 = vadd.f32 %v712, %v760
      %762 = vmatmul.bf16.gmra.mxu0 %v401
      %v763 = vpop.f32.mrf.mxu0
      %v764 = vadd.f32 %v715, %v763
      %v765 = vpop.f32.mrf.mxu0
      %v766 = vadd.f32 %v717, %v765
      %767 = vmatmul.bf16.gmra.mxu0 %v405
      %v768 = vpop.f32.mrf.mxu0
      %v769 = vadd.f32 %v720, %v768
      %v770 = vpop.f32.mrf.mxu0
      %v771 = vadd.f32 %v722, %v770
      %772 = vmatmul.bf16.gmra.mxu0 %v409
      %v773 = vpop.f32.mrf.mxu0
      %v774 = vadd.f32 %v725, %v773
      %v775 = vpop.f32.mrf.mxu0
      %v776 = vadd.f32 %v727, %v775
      %777 = vmatmul.bf16.gmra.mxu0 %v413
      %v778 = vpop.f32.mrf.mxu0
      %v779 = vadd.f32 %v730, %v778
      %v780 = vpop.f32.mrf.mxu0
      %v781 = vadd.f32 %v732, %v780
      %782 = vmatmul.bf16.gmra.mxu0 %v417
      %v783 = vpop.f32.mrf.mxu0
      %v784 = vadd.f32 %v735, %v783
      %v785 = vpop.f32.mrf.mxu0
      %v786 = vadd.f32 %v737, %v785
      %787 = vmatmul.bf16.gmra.mxu0 %v421
      %v788 = vpop.f32.mrf.mxu0
      %v789 = vadd.f32 %v740, %v788
      %v790 = vpop.f32.mrf.mxu0
      %v791 = vadd.f32 %v742, %v790
      %792 = vmatmul.bf16.gmra.mxu0 %v425
      %v793 = vpop.f32.mrf.mxu0
      %v794 = vadd.f32 %v745, %v793
      %v795 = vpop.f32.mrf.mxu0
      %v796 = vadd.f32 %v747, %v795
      %797 = vdwg.mxu0
      %798 = vmatpush.bf16.msra.mxu0 %v618
      %799 = vmatpush.bf16.msra.mxu0 %v617
      %800 = vmatpush.bf16.msra.mxu0 %v616
      %801 = vmatpush.bf16.msra.mxu0 %v615
      %802 = vmatpush.bf16.msra.mxu0 %v614
      %803 = vmatpush.bf16.msra.mxu0 %v613
      %804 = vmatpush.bf16.msra.mxu0 %v612
      %805 = vmatpush.bf16.msra.mxu0 %v611
      %806 = vmatmul.bf16.gmra.mxu0 %v398
      %v807 = vpop.f32.mrf.mxu0
      %v808 = vadd.f32 %v759, %v807
      %v809 = vpop.f32.mrf.mxu0
      %v810 = vadd.f32 %v761, %v809
      %811 = vmatmul.bf16.gmra.mxu0 %v402
      %v812 = vpop.f32.mrf.mxu0
      %v813 = vadd.f32 %v764, %v812
      %v814 = vpop.f32.mrf.mxu0
      %v815 = vadd.f32 %v766, %v814
      %816 = vmatmul.bf16.gmra.mxu0 %v406
      %v817 = vpop.f32.mrf.mxu0
      %v818 = vadd.f32 %v769, %v817
      %v819 = vpop.f32.mrf.mxu0
      %v820 = vadd.f32 %v771, %v819
      %821 = vmatmul.bf16.gmra.mxu0 %v410
      %v822 = vpop.f32.mrf.mxu0
      %v823 = vadd.f32 %v774, %v822
      %v824 = vpop.f32.mrf.mxu0
      %v825 = vadd.f32 %v776, %v824
      %826 = vmatmul.bf16.gmra.mxu0 %v414
      %v827 = vpop.f32.mrf.mxu0
      %v828 = vadd.f32 %v779, %v827
      %v829 = vpop.f32.mrf.mxu0
      %v830 = vadd.f32 %v781, %v829
      %831 = vmatmul.bf16.gmra.mxu0 %v418
      %v832 = vpop.f32.mrf.mxu0
      %v833 = vadd.f32 %v784, %v832
      %v834 = vpop.f32.mrf.mxu0
      %v835 = vadd.f32 %v786, %v834
      %836 = vmatmul.bf16.gmra.mxu0 %v422
      %v837 = vpop.f32.mrf.mxu0
      %v838 = vadd.f32 %v789, %v837
      %v839 = vpop.f32.mrf.mxu0
      %v840 = vadd.f32 %v791, %v839
      %841 = vmatmul.bf16.gmra.mxu0 %v426
      %v842 = vpop.f32.mrf.mxu0
      %v843 = vadd.f32 %v794, %v842
      %v844 = vpop.f32.mrf.mxu0
      %v845 = vadd.f32 %v796, %v844
      %846 = vdwg.mxu0
      %s847 = smul.u32 %s15, 128
      %s848 = scalar_lea.vmem [#allocation2], %s847
      %vm849 = vcmask 523264
      %850 = vst.msk [vmem:[%s848] sm:$0xff] %vm849, %v808
      %851 = vst.msk [vmem:[%s848 + $0x8] sm:$0xff] %vm849, %v810
      %852 = vst.msk [vmem:[%s848 + $0x10] sm:$0xff] %vm849, %v813
      %853 = vst.msk [vmem:[%s848 + $0x18] sm:$0xff] %vm849, %v815
      %854 = vst.msk [vmem:[%s848 + $0x20] sm:$0xff] %vm849, %v818
      %855 = vst.msk [vmem:[%s848 + $0x28] sm:$0xff] %vm849, %v820
      %856 = vst.msk [vmem:[%s848 + $0x30] sm:$0xff] %vm849, %v823
      %857 = vst.msk [vmem:[%s848 + $0x38] sm:$0xff] %vm849, %v825
      %858 = vst.msk [vmem:[%s848 + $0x40] sm:$0xff] %vm849, %v828
      %859 = vst.msk [vmem:[%s848 + $0x48] sm:$0xff] %vm849, %v830
      %860 = vst.msk [vmem:[%s848 + $0x50] sm:$0xff] %vm849, %v833
      %861 = vst.msk [vmem:[%s848 + $0x58] sm:$0xff] %vm849, %v835
      %862 = vst.msk [vmem:[%s848 + $0x60] sm:$0xff] %vm849, %v838
      %863 = vst.msk [vmem:[%s848 + $0x68] sm:$0xff] %vm849, %v840
      %864 = vst.msk [vmem:[%s848 + $0x70] sm:$0xff] %vm849, %v843
      %865 = vst.msk [vmem:[%s848 + $0x78] sm:$0xff] %vm849, %v845
      %p866 = scmp.eq.s32.totalorder %s15, 3
      // Predicated region
      $region37: #{generator_forward.6} parent=35 // pred_check
        %p867 = pneg %p866
      $region38: #{generator_forward.6} parent=35 // pred_check_branch
        %869 = sbr.rel (%p867) target = $region40
      $region39: #{generator_forward.6} parent=35 // pred_region
        %v870 = vld [vmem:[#allocation2] sm:$0xff]
        %v871 = vld [vmem:[#allocation2 + $0x8] sm:$0xff]
        %v872 = vld [vmem:[#allocation2 + $0x10] sm:$0xff]
        %v873 = vld [vmem:[#allocation2 + $0x18] sm:$0xff]
        %v874 = vld [vmem:[#allocation2 + $0x20] sm:$0xff]
        %v875 = vld [vmem:[#allocation2 + $0x28] sm:$0xff]
        %v876 = vld [vmem:[#allocation2 + $0x30] sm:$0xff]
        %v877 = vld [vmem:[#allocation2 + $0x38] sm:$0xff]
        %v878 = vld [vmem:[#allocation2 + $0x40] sm:$0xff]
        %v879 = vld [vmem:[#allocation2 + $0x48] sm:$0xff]
        %v880 = vld [vmem:[#allocation2 + $0x50] sm:$0xff]
        %v881 = vld [vmem:[#allocation2 + $0x58] sm:$0xff]
        %v882 = vld [vmem:[#allocation2 + $0x60] sm:$0xff]
        %v883 = vld [vmem:[#allocation2 + $0x68] sm:$0xff]
        %v884 = vld [vmem:[#allocation2 + $0x70] sm:$0xff]
        %v885 = vld [vmem:[#allocation2 + $0x78] sm:$0xff]
        %v886 = vsel %vm849, %v870, 0.0
        %v887 = vsel %vm849, %v871, 0.0
        %v888 = vadd.f32 %v886, %v887
        %v889 = vsel %vm849, %v872, 0.0
        %v890 = vadd.f32 %v888, %v889
        %v891 = vsel %vm849, %v873, 0.0
        %v892 = vadd.f32 %v890, %v891
        %v893 = vsel %vm849, %v874, 0.0
        %v894 = vadd.f32 %v892, %v893
        %v895 = vsel %vm849, %v875, 0.0
        %v896 = vadd.f32 %v894, %v895
        %v897 = vsel %vm849, %v876, 0.0
        %v898 = vadd.f32 %v896, %v897
        %v899 = vsel %vm849, %v877, 0.0
        %v900 = vadd.f32 %v898, %v899
        %v901 = vsel %vm849, %v878, 0.0
        %v902 = vadd.f32 %v900, %v901
        %v903 = vsel %vm849, %v879, 0.0
        %v904 = vadd.f32 %v902, %v903
        %v905 = vsel %vm849, %v880, 0.0
        %v906 = vadd.f32 %v904, %v905
        %v907 = vsel %vm849, %v881, 0.0
        %v908 = vadd.f32 %v906, %v907
        %v909 = vsel %vm849, %v882, 0.0
        %v910 = vadd.f32 %v908, %v909
        %v911 = vsel %vm849, %v883, 0.0
        %v912 = vadd.f32 %v910, %v911
        %v913 = vsel %vm849, %v884, 0.0
        %v914 = vadd.f32 %v912, %v913
        %v915 = vsel %vm849, %v885, 0.0
        %v916 = vadd.f32 %v914, %v915
        %v917 = vrot.slane %v916, 4
        %v918 = vadd.f32 %v916, %v917
        %v919 = vrot.slane %v918, 2
        %v920 = vadd.f32 %v918, %v919
        %v921 = vrot.slane %v920, 1
        %v922 = vadd.f32 %v920, %v921
        %v923 = vadd.f32 %v922, 0.0
        %s924 = scalar_lea.vmem [#allocation2], 128
        %v925 = vld [vmem:[%s924] sm:$0xff]
        %v926 = vld [vmem:[%s924 + $0x8] sm:$0xff]
        %v927 = vld [vmem:[%s924 + $0x10] sm:$0xff]
        %v928 = vld [vmem:[%s924 + $0x18] sm:$0xff]
        %v929 = vld [vmem:[%s924 + $0x20] sm:$0xff]
        %v930 = vld [vmem:[%s924 + $0x28] sm:$0xff]
        %v931 = vld [vmem:[%s924 + $0x30] sm:$0xff]
        %v932 = vld [vmem:[%s924 + $0x38] sm:$0xff]
        %v933 = vld [vmem:[%s924 + $0x40] sm:$0xff]
        %v934 = vld [vmem:[%s924 + $0x48] sm:$0xff]
        %v935 = vld [vmem:[%s924 + $0x50] sm:$0xff]
        %v936 = vld [vmem:[%s924 + $0x58] sm:$0xff]
        %v937 = vld [vmem:[%s924 + $0x60] sm:$0xff]
        %v938 = vld [vmem:[%s924 + $0x68] sm:$0xff]
        %v939 = vld [vmem:[%s924 + $0x70] sm:$0xff]
        %v940 = vld [vmem:[%s924 + $0x78] sm:$0xff]
        %v941 = vsel %vm849, %v925, 0.0
        %v942 = vsel %vm849, %v926, 0.0
        %v943 = vadd.f32 %v941, %v942
        %v944 = vsel %vm849, %v927, 0.0
        %v945 = vadd.f32 %v943, %v944
        %v946 = vsel %vm849, %v928, 0.0
        %v947 = vadd.f32 %v945, %v946
        %v948 = vsel %vm849, %v929, 0.0
        %v949 = vadd.f32 %v947, %v948
        %v950 = vsel %vm849, %v930, 0.0
        %v951 = vadd.f32 %v949, %v950
        %v952 = vsel %vm849, %v931, 0.0
        %v953 = vadd.f32 %v951, %v952
        %v954 = vsel %vm849, %v932, 0.0
        %v955 = vadd.f32 %v953, %v954
        %v956 = vsel %vm849, %v933, 0.0
        %v957 = vadd.f32 %v955, %v956
        %v958 = vsel %vm849, %v934, 0.0
        %v959 = vadd.f32 %v957, %v958
        %v960 = vsel %vm849, %v935, 0.0
        %v961 = vadd.f32 %v959, %v960
        %v962 = vsel %vm849, %v936, 0.0
        %v963 = vadd.f32 %v961, %v962
        %v964 = vsel %vm849, %v937, 0.0
        %v965 = vadd.f32 %v963, %v964
        %v966 = vsel %vm849, %v938, 0.0
        %v967 = vadd.f32 %v965, %v966
        %v968 = vsel %vm849, %v939, 0.0
        %v969 = vadd.f32 %v967, %v968
        %v970 = vsel %vm849, %v940, 0.0
        %v971 = vadd.f32 %v969, %v970
        %v972 = vrot.slane %v971, 4
        %v973 = vadd.f32 %v971, %v972
        %v974 = vrot.slane %v973, 2
        %v975 = vadd.f32 %v973, %v974
        %v976 = vrot.slane %v975, 1
        %v977 = vadd.f32 %v975, %v976
        %v978 = vadd.f32 %v923, %v977
        %s979 = scalar_lea.vmem [#allocation2], 256
        %v980 = vld [vmem:[%s979] sm:$0xff]
        %v981 = vld [vmem:[%s979 + $0x8] sm:$0xff]
        %v982 = vld [vmem:[%s979 + $0x10] sm:$0xff]
        %v983 = vld [vmem:[%s979 + $0x18] sm:$0xff]
        %v984 = vld [vmem:[%s979 + $0x20] sm:$0xff]
        %v985 = vld [vmem:[%s979 + $0x28] sm:$0xff]
        %v986 = vld [vmem:[%s979 + $0x30] sm:$0xff]
        %v987 = vld [vmem:[%s979 + $0x38] sm:$0xff]
        %v988 = vld [vmem:[%s979 + $0x40] sm:$0xff]
        %v989 = vld [vmem:[%s979 + $0x48] sm:$0xff]
        %v990 = vld [vmem:[%s979 + $0x50] sm:$0xff]
        %v991 = vld [vmem:[%s979 + $0x58] sm:$0xff]
        %v992 = vld [vmem:[%s979 + $0x60] sm:$0xff]
        %v993 = vld [vmem:[%s979 + $0x68] sm:$0xff]
        %v994 = vld [vmem:[%s979 + $0x70] sm:$0xff]
        %v995 = vld [vmem:[%s979 + $0x78] sm:$0xff]
        %v996 = vsel %vm849, %v980, 0.0
        %v997 = vsel %vm849, %v981, 0.0
        %v998 = vadd.f32 %v996, %v997
        %v999 = vsel %vm849, %v982, 0.0
        %v1000 = vadd.f32 %v998, %v999
        %v1001 = vsel %vm849, %v983, 0.0
        %v1002 = vadd.f32 %v1000, %v1001
        %v1003 = vsel %vm849, %v984, 0.0
        %v1004 = vadd.f32 %v1002, %v1003
        %v1005 = vsel %vm849, %v985, 0.0
        %v1006 = vadd.f32 %v1004, %v1005
        %v1007 = vsel %vm849, %v986, 0.0
        %v1008 = vadd.f32 %v1006, %v1007
        %v1009 = vsel %vm849, %v987, 0.0
        %v1010 = vadd.f32 %v1008, %v1009
        %v1011 = vsel %vm849, %v988, 0.0
        %v1012 = vadd.f32 %v1010, %v1011
        %v1013 = vsel %vm849, %v989, 0.0
        %v1014 = vadd.f32 %v1012, %v1013
        %v1015 = vsel %vm849, %v990, 0.0
        %v1016 = vadd.f32 %v1014, %v1015
        %v1017 = vsel %vm849, %v991, 0.0
        %v1018 = vadd.f32 %v1016, %v1017
        %v1019 = vsel %vm849, %v992, 0.0
        %v1020 = vadd.f32 %v1018, %v1019
        %v1021 = vsel %vm849, %v993, 0.0
        %v1022 = vadd.f32 %v1020, %v1021
        %v1023 = vsel %vm849, %v994, 0.0
        %v1024 = vadd.f32 %v1022, %v1023
        %v1025 = vsel %vm849, %v995, 0.0
        %v1026 = vadd.f32 %v1024, %v1025
        %v1027 = vrot.slane %v1026, 4
        %v1028 = vadd.f32 %v1026, %v1027
        %v1029 = vrot.slane %v1028, 2
        %v1030 = vadd.f32 %v1028, %v1029
        %v1031 = vrot.slane %v1030, 1
        %v1032 = vadd.f32 %v1030, %v1031
        %v1033 = vadd.f32 %v978, %v1032
        %s1034 = scalar_lea.vmem [#allocation2], 384
        %v1035 = vld [vmem:[%s1034] sm:$0xff]
        %v1036 = vld [vmem:[%s1034 + $0x8] sm:$0xff]
        %v1037 = vld [vmem:[%s1034 + $0x10] sm:$0xff]
        %v1038 = vld [vmem:[%s1034 + $0x18] sm:$0xff]
        %v1039 = vld [vmem:[%s1034 + $0x20] sm:$0xff]
        %v1040 = vld [vmem:[%s1034 + $0x28] sm:$0xff]
        %v1041 = vld [vmem:[%s1034 + $0x30] sm:$0xff]
        %v1042 = vld [vmem:[%s1034 + $0x38] sm:$0xff]
        %v1043 = vld [vmem:[%s1034 + $0x40] sm:$0xff]
        %v1044 = vld [vmem:[%s1034 + $0x48] sm:$0xff]
        %v1045 = vld [vmem:[%s1034 + $0x50] sm:$0xff]
        %v1046 = vld [vmem:[%s1034 + $0x58] sm:$0xff]
        %v1047 = vld [vmem:[%s1034 + $0x60] sm:$0xff]
        %v1048 = vld [vmem:[%s1034 + $0x68] sm:$0xff]
        %v1049 = vld [vmem:[%s1034 + $0x70] sm:$0xff]
        %v1050 = vld [vmem:[%s1034 + $0x78] sm:$0xff]
        %v1051 = vsel %vm849, %v1035, 0.0
        %v1052 = vsel %vm849, %v1036, 0.0
        %v1053 = vadd.f32 %v1051, %v1052
        %v1054 = vsel %vm849, %v1037, 0.0
        %v1055 = vadd.f32 %v1053, %v1054
        %v1056 = vsel %vm849, %v1038, 0.0
        %v1057 = vadd.f32 %v1055, %v1056
        %v1058 = vsel %vm849, %v1039, 0.0
        %v1059 = vadd.f32 %v1057, %v1058
        %v1060 = vsel %vm849, %v1040, 0.0
        %v1061 = vadd.f32 %v1059, %v1060
        %v1062 = vsel %vm849, %v1041, 0.0
        %v1063 = vadd.f32 %v1061, %v1062
        %v1064 = vsel %vm849, %v1042, 0.0
        %v1065 = vadd.f32 %v1063, %v1064
        %v1066 = vsel %vm849, %v1043, 0.0
        %v1067 = vadd.f32 %v1065, %v1066
        %v1068 = vsel %vm849, %v1044, 0.0
        %v1069 = vadd.f32 %v1067, %v1068
        %v1070 = vsel %vm849, %v1045, 0.0
        %v1071 = vadd.f32 %v1069, %v1070
        %v1072 = vsel %vm849, %v1046, 0.0
        %v1073 = vadd.f32 %v1071, %v1072
        %v1074 = vsel %vm849, %v1047, 0.0
        %v1075 = vadd.f32 %v1073, %v1074
        %v1076 = vsel %vm849, %v1048, 0.0
        %v1077 = vadd.f32 %v1075, %v1076
        %v1078 = vsel %vm849, %v1049, 0.0
        %v1079 = vadd.f32 %v1077, %v1078
        %v1080 = vsel %vm849, %v1050, 0.0
        %v1081 = vadd.f32 %v1079, %v1080
        %v1082 = vrot.slane %v1081, 4
        %v1083 = vadd.f32 %v1081, %v1082
        %v1084 = vrot.slane %v1083, 2
        %v1085 = vadd.f32 %v1083, %v1084
        %v1086 = vrot.slane %v1085, 1
        %v1087 = vadd.f32 %v1085, %v1086
        %v1088 = vadd.f32 %v1033, %v1087
        %v1089 = vrcp.pop 512.0
        %v1090 = vmul.f32 512.0, %v1089
        %v1091 = vsub.f32 1.0, %v1090
        %v1092 = vmul.f32 %v1089, %v1091
        %v1093 = vadd.f32 %v1089, %v1092
        %vm1094 = vweird.f32 %v1089
        %v1095 = vsel %vm1094, %v1089, %v1093
        %v1096 = vmul.f32 %v1088, %v1095
        %v1097 = vsub.f32 %v870, %v1096
        %v1098 = vsub.f32 %v871, %v1096
        %v1099 = vsub.f32 %v872, %v1096
        %v1100 = vsub.f32 %v873, %v1096
        %v1101 = vsub.f32 %v874, %v1096
        %v1102 = vsub.f32 %v875, %v1096
        %v1103 = vsub.f32 %v876, %v1096
        %v1104 = vsub.f32 %v877, %v1096
        %v1105 = vsub.f32 %v878, %v1096
        %v1106 = vsub.f32 %v879, %v1096
        %v1107 = vsub.f32 %v880, %v1096
        %v1108 = vsub.f32 %v881, %v1096
        %v1109 = vsub.f32 %v882, %v1096
        %v1110 = vsub.f32 %v883, %v1096
        %v1111 = vsub.f32 %v884, %v1096
        %v1112 = vsub.f32 %v885, %v1096
        %v1113 = vmul.f32 %v1097, %v1097
        %v1114 = vmul.f32 %v1098, %v1098
        %v1115 = vmul.f32 %v1099, %v1099
        %v1116 = vmul.f32 %v1100, %v1100
        %v1117 = vmul.f32 %v1101, %v1101
        %v1118 = vmul.f32 %v1102, %v1102
        %v1119 = vmul.f32 %v1103, %v1103
        %v1120 = vmul.f32 %v1104, %v1104
        %v1121 = vmul.f32 %v1105, %v1105
        %v1122 = vmul.f32 %v1106, %v1106
        %v1123 = vmul.f32 %v1107, %v1107
        %v1124 = vmul.f32 %v1108, %v1108
        %v1125 = vmul.f32 %v1109, %v1109
        %v1126 = vmul.f32 %v1110, %v1110
        %v1127 = vmul.f32 %v1111, %v1111
        %v1128 = vmul.f32 %v1112, %v1112
        %v1129 = vsel %vm849, %v1113, 0.0
        %v1130 = vsel %vm849, %v1114, 0.0
        %v1131 = vadd.f32 %v1129, %v1130
        %v1132 = vsel %vm849, %v1115, 0.0
        %v1133 = vadd.f32 %v1131, %v1132
        %v1134 = vsel %vm849, %v1116, 0.0
        %v1135 = vadd.f32 %v1133, %v1134
        %v1136 = vsel %vm849, %v1117, 0.0
        %v1137 = vadd.f32 %v1135, %v1136
        %v1138 = vsel %vm849, %v1118, 0.0
        %v1139 = vadd.f32 %v1137, %v1138
        %v1140 = vsel %vm849, %v1119, 0.0
        %v1141 = vadd.f32 %v1139, %v1140
        %v1142 = vsel %vm849, %v1120, 0.0
        %v1143 = vadd.f32 %v1141, %v1142
        %v1144 = vsel %vm849, %v1121, 0.0
        %v1145 = vadd.f32 %v1143, %v1144
        %v1146 = vsel %vm849, %v1122, 0.0
        %v1147 = vadd.f32 %v1145, %v1146
        %v1148 = vsel %vm849, %v1123, 0.0
        %v1149 = vadd.f32 %v1147, %v1148
        %v1150 = vsel %vm849, %v1124, 0.0
        %v1151 = vadd.f32 %v1149, %v1150
        %v1152 = vsel %vm849, %v1125, 0.0
        %v1153 = vadd.f32 %v1151, %v1152
        %v1154 = vsel %vm849, %v1126, 0.0
        %v1155 = vadd.f32 %v1153, %v1154
        %v1156 = vsel %vm849, %v1127, 0.0
        %v1157 = vadd.f32 %v1155, %v1156
        %v1158 = vsel %vm849, %v1128, 0.0
        %v1159 = vadd.f32 %v1157, %v1158
        %v1160 = vrot.slane %v1159, 4
        %v1161 = vadd.f32 %v1159, %v1160
        %v1162 = vrot.slane %v1161, 2
        %v1163 = vadd.f32 %v1161, %v1162
        %v1164 = vrot.slane %v1163, 1
        %v1165 = vadd.f32 %v1163, %v1164
        %v1166 = vadd.f32 %v1165, 0.0
        %v1167 = vsub.f32 %v925, %v1096
        %v1168 = vsub.f32 %v926, %v1096
        %v1169 = vsub.f32 %v927, %v1096
        %v1170 = vsub.f32 %v928, %v1096
        %v1171 = vsub.f32 %v929, %v1096
        %v1172 = vsub.f32 %v930, %v1096
        %v1173 = vsub.f32 %v931, %v1096
        %v1174 = vsub.f32 %v932, %v1096
        %v1175 = vsub.f32 %v933, %v1096
        %v1176 = vsub.f32 %v934, %v1096
        %v1177 = vsub.f32 %v935, %v1096
        %v1178 = vsub.f32 %v936, %v1096
        %v1179 = vsub.f32 %v937, %v1096
        %v1180 = vsub.f32 %v938, %v1096
        %v1181 = vsub.f32 %v939, %v1096
        %v1182 = vsub.f32 %v940, %v1096
        %v1183 = vmul.f32 %v1167, %v1167
        %v1184 = vmul.f32 %v1168, %v1168
        %v1185 = vmul.f32 %v1169, %v1169
        %v1186 = vmul.f32 %v1170, %v1170
        %v1187 = vmul.f32 %v1171, %v1171
        %v1188 = vmul.f32 %v1172, %v1172
        %v1189 = vmul.f32 %v1173, %v1173
        %v1190 = vmul.f32 %v1174, %v1174
        %v1191 = vmul.f32 %v1175, %v1175
        %v1192 = vmul.f32 %v1176, %v1176
        %v1193 = vmul.f32 %v1177, %v1177
        %v1194 = vmul.f32 %v1178, %v1178
        %v1195 = vmul.f32 %v1179, %v1179
        %v1196 = vmul.f32 %v1180, %v1180
        %v1197 = vmul.f32 %v1181, %v1181
        %v1198 = vmul.f32 %v1182, %v1182
        %v1199 = vsel %vm849, %v1183, 0.0
        %v1200 = vsel %vm849, %v1184, 0.0
        %v1201 = vadd.f32 %v1199, %v1200
        %v1202 = vsel %vm849, %v1185, 0.0
        %v1203 = vadd.f32 %v1201, %v1202
        %v1204 = vsel %vm849, %v1186, 0.0
        %v1205 = vadd.f32 %v1203, %v1204
        %v1206 = vsel %vm849, %v1187, 0.0
        %v1207 = vadd.f32 %v1205, %v1206
        %v1208 = vsel %vm849, %v1188, 0.0
        %v1209 = vadd.f32 %v1207, %v1208
        %v1210 = vsel %vm849, %v1189, 0.0
        %v1211 = vadd.f32 %v1209, %v1210
        %v1212 = vsel %vm849, %v1190, 0.0
        %v1213 = vadd.f32 %v1211, %v1212
        %v1214 = vsel %vm849, %v1191, 0.0
        %v1215 = vadd.f32 %v1213, %v1214
        %v1216 = vsel %vm849, %v1192, 0.0
        %v1217 = vadd.f32 %v1215, %v1216
        %v1218 = vsel %vm849, %v1193, 0.0
        %v1219 = vadd.f32 %v1217, %v1218
        %v1220 = vsel %vm849, %v1194, 0.0
        %v1221 = vadd.f32 %v1219, %v1220
        %v1222 = vsel %vm849, %v1195, 0.0
        %v1223 = vadd.f32 %v1221, %v1222
        %v1224 = vsel %vm849, %v1196, 0.0
        %v1225 = vadd.f32 %v1223, %v1224
        %v1226 = vsel %vm849, %v1197, 0.0
        %v1227 = vadd.f32 %v1225, %v1226
        %v1228 = vsel %vm849, %v1198, 0.0
        %v1229 = vadd.f32 %v1227, %v1228
        %v1230 = vrot.slane %v1229, 4
        %v1231 = vadd.f32 %v1229, %v1230
        %v1232 = vrot.slane %v1231, 2
        %v1233 = vadd.f32 %v1231, %v1232
        %v1234 = vrot.slane %v1233, 1
        %v1235 = vadd.f32 %v1233, %v1234
        %v1236 = vadd.f32 %v1166, %v1235
        %v1237 = vsub.f32 %v980, %v1096
        %v1238 = vsub.f32 %v981, %v1096
        %v1239 = vsub.f32 %v982, %v1096
        %v1240 = vsub.f32 %v983, %v1096
        %v1241 = vsub.f32 %v984, %v1096
        %v1242 = vsub.f32 %v985, %v1096
        %v1243 = vsub.f32 %v986, %v1096
        %v1244 = vsub.f32 %v987, %v1096
        %v1245 = vsub.f32 %v988, %v1096
        %v1246 = vsub.f32 %v989, %v1096
        %v1247 = vsub.f32 %v990, %v1096
        %v1248 = vsub.f32 %v991, %v1096
        %v1249 = vsub.f32 %v992, %v1096
        %v1250 = vsub.f32 %v993, %v1096
        %v1251 = vsub.f32 %v994, %v1096
        %v1252 = vsub.f32 %v995, %v1096
        %v1253 = vmul.f32 %v1237, %v1237
        %v1254 = vmul.f32 %v1238, %v1238
        %v1255 = vmul.f32 %v1239, %v1239
        %v1256 = vmul.f32 %v1240, %v1240
        %v1257 = vmul.f32 %v1241, %v1241
        %v1258 = vmul.f32 %v1242, %v1242
        %v1259 = vmul.f32 %v1243, %v1243
        %v1260 = vmul.f32 %v1244, %v1244
        %v1261 = vmul.f32 %v1245, %v1245
        %v1262 = vmul.f32 %v1246, %v1246
        %v1263 = vmul.f32 %v1247, %v1247
        %v1264 = vmul.f32 %v1248, %v1248
        %v1265 = vmul.f32 %v1249, %v1249
        %v1266 = vmul.f32 %v1250, %v1250
        %v1267 = vmul.f32 %v1251, %v1251
        %v1268 = vmul.f32 %v1252, %v1252
        %v1269 = vsel %vm849, %v1253, 0.0
        %v1270 = vsel %vm849, %v1254, 0.0
        %v1271 = vadd.f32 %v1269, %v1270
        %v1272 = vsel %vm849, %v1255, 0.0
        %v1273 = vadd.f32 %v1271, %v1272
        %v1274 = vsel %vm849, %v1256, 0.0
        %v1275 = vadd.f32 %v1273, %v1274
        %v1276 = vsel %vm849, %v1257, 0.0
        %v1277 = vadd.f32 %v1275, %v1276
        %v1278 = vsel %vm849, %v1258, 0.0
        %v1279 = vadd.f32 %v1277, %v1278
        %v1280 = vsel %vm849, %v1259, 0.0
        %v1281 = vadd.f32 %v1279, %v1280
        %v1282 = vsel %vm849, %v1260, 0.0
        %v1283 = vadd.f32 %v1281, %v1282
        %v1284 = vsel %vm849, %v1261, 0.0
        %v1285 = vadd.f32 %v1283, %v1284
        %v1286 = vsel %vm849, %v1262, 0.0
        %v1287 = vadd.f32 %v1285, %v1286
        %v1288 = vsel %vm849, %v1263, 0.0
        %v1289 = vadd.f32 %v1287, %v1288
        %v1290 = vsel %vm849, %v1264, 0.0
        %v1291 = vadd.f32 %v1289, %v1290
        %v1292 = vsel %vm849, %v1265, 0.0
        %v1293 = vadd.f32 %v1291, %v1292
        %v1294 = vsel %vm849, %v1266, 0.0
        %v1295 = vadd.f32 %v1293, %v1294
        %v1296 = vsel %vm849, %v1267, 0.0
        %v1297 = vadd.f32 %v1295, %v1296
        %v1298 = vsel %vm849, %v1268, 0.0
        %v1299 = vadd.f32 %v1297, %v1298
        %v1300 = vrot.slane %v1299, 4
        %v1301 = vadd.f32 %v1299, %v1300
        %v1302 = vrot.slane %v1301, 2
        %v1303 = vadd.f32 %v1301, %v1302
        %v1304 = vrot.slane %v1303, 1
        %v1305 = vadd.f32 %v1303, %v1304
        %v1306 = vadd.f32 %v1236, %v1305
        %v1307 = vsub.f32 %v1035, %v1096
        %v1308 = vsub.f32 %v1036, %v1096
        %v1309 = vsub.f32 %v1037, %v1096
        %v1310 = vsub.f32 %v1038, %v1096
        %v1311 = vsub.f32 %v1039, %v1096
        %v1312 = vsub.f32 %v1040, %v1096
        %v1313 = vsub.f32 %v1041, %v1096
        %v1314 = vsub.f32 %v1042, %v1096
        %v1315 = vsub.f32 %v1043, %v1096
        %v1316 = vsub.f32 %v1044, %v1096
        %v1317 = vsub.f32 %v1045, %v1096
        %v1318 = vsub.f32 %v1046, %v1096
        %v1319 = vsub.f32 %v1047, %v1096
        %v1320 = vsub.f32 %v1048, %v1096
        %v1321 = vsub.f32 %v1049, %v1096
        %v1322 = vsub.f32 %v1050, %v1096
        %v1323 = vmul.f32 %v1307, %v1307
        %v1324 = vmul.f32 %v1308, %v1308
        %v1325 = vmul.f32 %v1309, %v1309
        %v1326 = vmul.f32 %v1310, %v1310
        %v1327 = vmul.f32 %v1311, %v1311
        %v1328 = vmul.f32 %v1312, %v1312
        %v1329 = vmul.f32 %v1313, %v1313
        %v1330 = vmul.f32 %v1314, %v1314
        %v1331 = vmul.f32 %v1315, %v1315
        %v1332 = vmul.f32 %v1316, %v1316
        %v1333 = vmul.f32 %v1317, %v1317
        %v1334 = vmul.f32 %v1318, %v1318
        %v1335 = vmul.f32 %v1319, %v1319
        %v1336 = vmul.f32 %v1320, %v1320
        %v1337 = vmul.f32 %v1321, %v1321
        %v1338 = vmul.f32 %v1322, %v1322
        %v1339 = vsel %vm849, %v1323, 0.0
        %v1340 = vsel %vm849, %v1324, 0.0
        %v1341 = vadd.f32 %v1339, %v1340
        %v1342 = vsel %vm849, %v1325, 0.0
        %v1343 = vadd.f32 %v1341, %v1342
        %v1344 = vsel %vm849, %v1326, 0.0
        %v1345 = vadd.f32 %v1343, %v1344
        %v1346 = vsel %vm849, %v1327, 0.0
        %v1347 = vadd.f32 %v1345, %v1346
        %v1348 = vsel %vm849, %v1328, 0.0
        %v1349 = vadd.f32 %v1347, %v1348
        %v1350 = vsel %vm849, %v1329, 0.0
        %v1351 = vadd.f32 %v1349, %v1350
        %v1352 = vsel %vm849, %v1330, 0.0
        %v1353 = vadd.f32 %v1351, %v1352
        %v1354 = vsel %vm849, %v1331, 0.0
        %v1355 = vadd.f32 %v1353, %v1354
        %v1356 = vsel %vm849, %v1332, 0.0
        %v1357 = vadd.f32 %v1355, %v1356
        %v1358 = vsel %vm849, %v1333, 0.0
        %v1359 = vadd.f32 %v1357, %v1358
        %v1360 = vsel %vm849, %v1334, 0.0
        %v1361 = vadd.f32 %v1359, %v1360
        %v1362 = vsel %vm849, %v1335, 0.0
        %v1363 = vadd.f32 %v1361, %v1362
        %v1364 = vsel %vm849, %v1336, 0.0
        %v1365 = vadd.f32 %v1363, %v1364
        %v1366 = vsel %vm849, %v1337, 0.0
        %v1367 = vadd.f32 %v1365, %v1366
        %v1368 = vsel %vm849, %v1338, 0.0
        %v1369 = vadd.f32 %v1367, %v1368
        %v1370 = vrot.slane %v1369, 4
        %v1371 = vadd.f32 %v1369, %v1370
        %v1372 = vrot.slane %v1371, 2
        %v1373 = vadd.f32 %v1371, %v1372
        %v1374 = vrot.slane %v1373, 1
        %v1375 = vadd.f32 %v1373, %v1374
        %v1376 = vadd.f32 %v1306, %v1375
        %v1377 = vmul.f32 %v1376, %v1095
        %v1378 = vadd.f32 %v1377, 1e-05
        %v1379 = vrsqrt.pop %v1378
        %v1380 = vmul.f32 %v1379, %v1378
        %v1381 = vmul.f32 %v1380, %v1379
        %v1382 = vmul.f32 0.5, %v1381
        %v1383 = vsub.f32 1.5, %v1382
        %v1384 = vmul.f32 %v1379, %v1383
        %vm1385 = vweird.f32 %v1378
        %vm1386 = vweird.f32 %v1379
        %vm1387 = vmor %vm1385, %vm1386
        %v1388 = vsel %vm1387, %v1379, %v1384
        %v1389 = vld [vmem:[%s2] sm:$0x1]
        %v1390 = vld [vmem:[%s3] sm:$0x1]
        %v1391 = vmul.f32 %v1097, %v1388
        %v1392 = vmul.f32 %v1098, %v1388
        %v1393 = vmul.f32 %v1099, %v1388
        %v1394 = vmul.f32 %v1100, %v1388
        %v1395 = vmul.f32 %v1101, %v1388
        %v1396 = vmul.f32 %v1102, %v1388
        %v1397 = vmul.f32 %v1103, %v1388
        %v1398 = vmul.f32 %v1104, %v1388
        %v1399 = vmul.f32 %v1105, %v1388
        %v1400 = vmul.f32 %v1106, %v1388
        %v1401 = vmul.f32 %v1107, %v1388
        %v1402 = vmul.f32 %v1108, %v1388
        %v1403 = vmul.f32 %v1109, %v1388
        %v1404 = vmul.f32 %v1110, %v1388
        %v1405 = vmul.f32 %v1111, %v1388
        %v1406 = vmul.f32 %v1112, %v1388
        %v1408 = vperm.slane %v1389, 0
        %v1410 = vmul.f32 %v1391, %v1408
        %v1411 = vmul.f32 %v1392, %v1408
        %v1412 = vmul.f32 %v1393, %v1408
        %v1413 = vmul.f32 %v1394, %v1408
        %v1414 = vmul.f32 %v1395, %v1408
        %v1415 = vmul.f32 %v1396, %v1408
        %v1416 = vmul.f32 %v1397, %v1408
        %v1417 = vmul.f32 %v1398, %v1408
        %v1418 = vmul.f32 %v1399, %v1408
        %v1419 = vmul.f32 %v1400, %v1408
        %v1420 = vmul.f32 %v1401, %v1408
        %v1421 = vmul.f32 %v1402, %v1408
        %v1422 = vmul.f32 %v1403, %v1408
        %v1423 = vmul.f32 %v1404, %v1408
        %v1424 = vmul.f32 %v1405, %v1408
        %v1425 = vmul.f32 %v1406, %v1408
        %v1427 = vperm.slane %v1390, 0
        %v1429 = vadd.f32 %v1410, %v1427
        %v1430 = vadd.f32 %v1411, %v1427
        %v1431 = vadd.f32 %v1412, %v1427
        %v1432 = vadd.f32 %v1413, %v1427
        %v1433 = vadd.f32 %v1414, %v1427
        %v1434 = vadd.f32 %v1415, %v1427
        %v1435 = vadd.f32 %v1416, %v1427
        %v1436 = vadd.f32 %v1417, %v1427
        %v1437 = vadd.f32 %v1418, %v1427
        %v1438 = vadd.f32 %v1419, %v1427
        %v1439 = vadd.f32 %v1420, %v1427
        %v1440 = vadd.f32 %v1421, %v1427
        %v1441 = vadd.f32 %v1422, %v1427
        %v1442 = vadd.f32 %v1423, %v1427
        %v1443 = vadd.f32 %v1424, %v1427
        %v1444 = vadd.f32 %v1425, %v1427
        %v1445 = vmax.f32 %v1429, 0.0
        %v1446 = vmax.f32 %v1430, 0.0
        %v1447 = vmax.f32 %v1431, 0.0
        %v1448 = vmax.f32 %v1432, 0.0
        %v1449 = vmax.f32 %v1433, 0.0
        %v1450 = vmax.f32 %v1434, 0.0
        %v1451 = vmax.f32 %v1435, 0.0
        %v1452 = vmax.f32 %v1436, 0.0
        %v1453 = vmax.f32 %v1437, 0.0
        %v1454 = vmax.f32 %v1438, 0.0
        %v1455 = vmax.f32 %v1439, 0.0
        %v1456 = vmax.f32 %v1440, 0.0
        %v1457 = vmax.f32 %v1441, 0.0
        %v1458 = vmax.f32 %v1442, 0.0
        %v1459 = vmax.f32 %v1443, 0.0
        %v1460 = vmax.f32 %v1444, 0.0
        %v1461 = vpack.c.bf16 %v1445, %v1445
        %v1462 = vpack.c.bf16 %v1446, %v1446
        %v1463 = vpack.c.bf16 %v1447, %v1447
        %v1464 = vpack.c.bf16 %v1448, %v1448
        %v1465 = vpack.c.bf16 %v1449, %v1449
        %v1466 = vpack.c.bf16 %v1450, %v1450
        %v1467 = vpack.c.bf16 %v1451, %v1451
        %v1468 = vpack.c.bf16 %v1452, %v1452
        %v1469 = vpack.c.bf16 %v1453, %v1453
        %v1470 = vpack.c.bf16 %v1454, %v1454
        %v1471 = vpack.c.bf16 %v1455, %v1455
        %v1472 = vpack.c.bf16 %v1456, %v1456
        %v1473 = vpack.c.bf16 %v1457, %v1457
        %v1474 = vpack.c.bf16 %v1458, %v1458
        %v1475 = vpack.c.bf16 %v1459, %v1459
        %v1476 = vpack.c.bf16 %v1460, %v1460
        %vm1477 = vcmask 519168
        %1478 = vst.msk [vmem:[%s4] sm:$0xf] %vm1477, %v1461
        %1479 = vst.msk [vmem:[%s4 + $0x4] sm:$0xf] %vm1477, %v1462
        %1480 = vst.msk [vmem:[%s4 + $0x8] sm:$0xf] %vm1477, %v1463
        %1481 = vst.msk [vmem:[%s4 + $0xc] sm:$0xf] %vm1477, %v1464
        %1482 = vst.msk [vmem:[%s4 + $0x10] sm:$0xf] %vm1477, %v1465
        %1483 = vst.msk [vmem:[%s4 + $0x14] sm:$0xf] %vm1477, %v1466
        %1484 = vst.msk [vmem:[%s4 + $0x18] sm:$0xf] %vm1477, %v1467
        %1485 = vst.msk [vmem:[%s4 + $0x1c] sm:$0xf] %vm1477, %v1468
        %1486 = vst.msk [vmem:[%s4 + $0x20] sm:$0xf] %vm1477, %v1469
        %1487 = vst.msk [vmem:[%s4 + $0x24] sm:$0xf] %vm1477, %v1470
        %1488 = vst.msk [vmem:[%s4 + $0x28] sm:$0xf] %vm1477, %v1471
        %1489 = vst.msk [vmem:[%s4 + $0x2c] sm:$0xf] %vm1477, %v1472
        %1490 = vst.msk [vmem:[%s4 + $0x30] sm:$0xf] %vm1477, %v1473
        %1491 = vst.msk [vmem:[%s4 + $0x34] sm:$0xf] %vm1477, %v1474
        %1492 = vst.msk [vmem:[%s4 + $0x38] sm:$0xf] %vm1477, %v1475
        %1493 = vst.msk [vmem:[%s4 + $0x3c] sm:$0xf] %vm1477, %v1476
        %v1494 = vld [vmem:[%s924] sm:$0xff]
        %v1495 = vld [vmem:[%s924 + $0x8] sm:$0xff]
        %v1496 = vld [vmem:[%s924 + $0x10] sm:$0xff]
        %v1497 = vld [vmem:[%s924 + $0x18] sm:$0xff]
        %v1498 = vld [vmem:[%s924 + $0x20] sm:$0xff]
        %v1499 = vld [vmem:[%s924 + $0x28] sm:$0xff]
        %v1500 = vld [vmem:[%s924 + $0x30] sm:$0xff]
        %v1501 = vld [vmem:[%s924 + $0x38] sm:$0xff]
        %v1502 = vld [vmem:[%s924 + $0x40] sm:$0xff]
        %v1503 = vld [vmem:[%s924 + $0x48] sm:$0xff]
        %v1504 = vld [vmem:[%s924 + $0x50] sm:$0xff]
        %v1505 = vld [vmem:[%s924 + $0x58] sm:$0xff]
        %v1506 = vld [vmem:[%s924 + $0x60] sm:$0xff]
        %v1507 = vld [vmem:[%s924 + $0x68] sm:$0xff]
        %v1508 = vld [vmem:[%s924 + $0x70] sm:$0xff]
        %v1509 = vld [vmem:[%s924 + $0x78] sm:$0xff]
        %v1510 = vsub.f32 %v1494, %v1096
        %v1511 = vsub.f32 %v1495, %v1096
        %v1512 = vsub.f32 %v1496, %v1096
        %v1513 = vsub.f32 %v1497, %v1096
        %v1514 = vsub.f32 %v1498, %v1096
        %v1515 = vsub.f32 %v1499, %v1096
        %v1516 = vsub.f32 %v1500, %v1096
        %v1517 = vsub.f32 %v1501, %v1096
        %v1518 = vsub.f32 %v1502, %v1096
        %v1519 = vsub.f32 %v1503, %v1096
        %v1520 = vsub.f32 %v1504, %v1096
        %v1521 = vsub.f32 %v1505, %v1096
        %v1522 = vsub.f32 %v1506, %v1096
        %v1523 = vsub.f32 %v1507, %v1096
        %v1524 = vsub.f32 %v1508, %v1096
        %v1525 = vsub.f32 %v1509, %v1096
        %v1526 = vmul.f32 %v1510, %v1388
        %v1527 = vmul.f32 %v1511, %v1388
        %v1528 = vmul.f32 %v1512, %v1388
        %v1529 = vmul.f32 %v1513, %v1388
        %v1530 = vmul.f32 %v1514, %v1388
        %v1531 = vmul.f32 %v1515, %v1388
        %v1532 = vmul.f32 %v1516, %v1388
        %v1533 = vmul.f32 %v1517, %v1388
        %v1534 = vmul.f32 %v1518, %v1388
        %v1535 = vmul.f32 %v1519, %v1388
        %v1536 = vmul.f32 %v1520, %v1388
        %v1537 = vmul.f32 %v1521, %v1388
        %v1538 = vmul.f32 %v1522, %v1388
        %v1539 = vmul.f32 %v1523, %v1388
        %v1540 = vmul.f32 %v1524, %v1388
        %v1541 = vmul.f32 %v1525, %v1388
        %v1542 = vmul.f32 %v1526, %v1408
        %v1543 = vmul.f32 %v1527, %v1408
        %v1544 = vmul.f32 %v1528, %v1408
        %v1545 = vmul.f32 %v1529, %v1408
        %v1546 = vmul.f32 %v1530, %v1408
        %v1547 = vmul.f32 %v1531, %v1408
        %v1548 = vmul.f32 %v1532, %v1408
        %v1549 = vmul.f32 %v1533, %v1408
        %v1550 = vmul.f32 %v1534, %v1408
        %v1551 = vmul.f32 %v1535, %v1408
        %v1552 = vmul.f32 %v1536, %v1408
        %v1553 = vmul.f32 %v1537, %v1408
        %v1554 = vmul.f32 %v1538, %v1408
        %v1555 = vmul.f32 %v1539, %v1408
        %v1556 = vmul.f32 %v1540, %v1408
        %v1557 = vmul.f32 %v1541, %v1408
        %v1558 = vadd.f32 %v1542, %v1427
        %v1559 = vadd.f32 %v1543, %v1427
        %v1560 = vadd.f32 %v1544, %v1427
        %v1561 = vadd.f32 %v1545, %v1427
        %v1562 = vadd.f32 %v1546, %v1427
        %v1563 = vadd.f32 %v1547, %v1427
        %v1564 = vadd.f32 %v1548, %v1427
        %v1565 = vadd.f32 %v1549, %v1427
        %v1566 = vadd.f32 %v1550, %v1427
        %v1567 = vadd.f32 %v1551, %v1427
        %v1568 = vadd.f32 %v1552, %v1427
        %v1569 = vadd.f32 %v1553, %v1427
        %v1570 = vadd.f32 %v1554, %v1427
        %v1571 = vadd.f32 %v1555, %v1427
        %v1572 = vadd.f32 %v1556, %v1427
        %v1573 = vadd.f32 %v1557, %v1427
        %v1574 = vmax.f32 %v1558, 0.0
        %v1575 = vmax.f32 %v1559, 0.0
        %v1576 = vmax.f32 %v1560, 0.0
        %v1577 = vmax.f32 %v1561, 0.0
        %v1578 = vmax.f32 %v1562, 0.0
        %v1579 = vmax.f32 %v1563, 0.0
        %v1580 = vmax.f32 %v1564, 0.0
        %v1581 = vmax.f32 %v1565, 0.0
        %v1582 = vmax.f32 %v1566, 0.0
        %v1583 = vmax.f32 %v1567, 0.0
        %v1584 = vmax.f32 %v1568, 0.0
        %v1585 = vmax.f32 %v1569, 0.0
        %v1586 = vmax.f32 %v1570, 0.0
        %v1587 = vmax.f32 %v1571, 0.0
        %v1588 = vmax.f32 %v1572, 0.0
        %v1589 = vmax.f32 %v1573, 0.0
        %v1590 = vpack.c.bf16 %v1574, %v1574
        %v1591 = vpack.c.bf16 %v1575, %v1575
        %v1592 = vpack.c.bf16 %v1576, %v1576
        %v1593 = vpack.c.bf16 %v1577, %v1577
        %v1594 = vpack.c.bf16 %v1578, %v1578
        %v1595 = vpack.c.bf16 %v1579, %v1579
        %v1596 = vpack.c.bf16 %v1580, %v1580
        %v1597 = vpack.c.bf16 %v1581, %v1581
        %v1598 = vpack.c.bf16 %v1582, %v1582
        %v1599 = vpack.c.bf16 %v1583, %v1583
        %v1600 = vpack.c.bf16 %v1584, %v1584
        %v1601 = vpack.c.bf16 %v1585, %v1585
        %v1602 = vpack.c.bf16 %v1586, %v1586
        %v1603 = vpack.c.bf16 %v1587, %v1587
        %v1604 = vpack.c.bf16 %v1588, %v1588
        %v1605 = vpack.c.bf16 %v1589, %v1589
        %s1606 = scalar_lea.vmem %s4, 64
        %1607 = vst.msk [vmem:[%s1606] sm:$0xf] %vm1477, %v1590
        %1608 = vst.msk [vmem:[%s1606 + $0x4] sm:$0xf] %vm1477, %v1591
        %1609 = vst.msk [vmem:[%s1606 + $0x8] sm:$0xf] %vm1477, %v1592
        %1610 = vst.msk [vmem:[%s1606 + $0xc] sm:$0xf] %vm1477, %v1593
        %1611 = vst.msk [vmem:[%s1606 + $0x10] sm:$0xf] %vm1477, %v1594
        %1612 = vst.msk [vmem:[%s1606 + $0x14] sm:$0xf] %vm1477, %v1595
        %1613 = vst.msk [vmem:[%s1606 + $0x18] sm:$0xf] %vm1477, %v1596
        %1614 = vst.msk [vmem:[%s1606 + $0x1c] sm:$0xf] %vm1477, %v1597
        %1615 = vst.msk [vmem:[%s1606 + $0x20] sm:$0xf] %vm1477, %v1598
        %1616 = vst.msk [vmem:[%s1606 + $0x24] sm:$0xf] %vm1477, %v1599
        %1617 = vst.msk [vmem:[%s1606 + $0x28] sm:$0xf] %vm1477, %v1600
        %1618 = vst.msk [vmem:[%s1606 + $0x2c] sm:$0xf] %vm1477, %v1601
        %1619 = vst.msk [vmem:[%s1606 + $0x30] sm:$0xf] %vm1477, %v1602
        %1620 = vst.msk [vmem:[%s1606 + $0x34] sm:$0xf] %vm1477, %v1603
        %1621 = vst.msk [vmem:[%s1606 + $0x38] sm:$0xf] %vm1477, %v1604
        %1622 = vst.msk [vmem:[%s1606 + $0x3c] sm:$0xf] %vm1477, %v1605
        %v1623 = vld [vmem:[%s979] sm:$0xff]
        %v1624 = vld [vmem:[%s979 + $0x8] sm:$0xff]
        %v1625 = vld [vmem:[%s979 + $0x10] sm:$0xff]
        %v1626 = vld [vmem:[%s979 + $0x18] sm:$0xff]
        %v1627 = vld [vmem:[%s979 + $0x20] sm:$0xff]
        %v1628 = vld [vmem:[%s979 + $0x28] sm:$0xff]
        %v1629 = vld [vmem:[%s979 + $0x30] sm:$0xff]
        %v1630 = vld [vmem:[%s979 + $0x38] sm:$0xff]
        %v1631 = vld [vmem:[%s979 + $0x40] sm:$0xff]
        %v1632 = vld [vmem:[%s979 + $0x48] sm:$0xff]
        %v1633 = vld [vmem:[%s979 + $0x50] sm:$0xff]
        %v1634 = vld [vmem:[%s979 + $0x58] sm:$0xff]
        %v1635 = vld [vmem:[%s979 + $0x60] sm:$0xff]
        %v1636 = vld [vmem:[%s979 + $0x68] sm:$0xff]
        %v1637 = vld [vmem:[%s979 + $0x70] sm:$0xff]
        %v1638 = vld [vmem:[%s979 + $0x78] sm:$0xff]
        %v1639 = vsub.f32 %v1623, %v1096
        %v1640 = vsub.f32 %v1624, %v1096
        %v1641 = vsub.f32 %v1625, %v1096
        %v1642 = vsub.f32 %v1626, %v1096
        %v1643 = vsub.f32 %v1627, %v1096
        %v1644 = vsub.f32 %v1628, %v1096
        %v1645 = vsub.f32 %v1629, %v1096
        %v1646 = vsub.f32 %v1630, %v1096
        %v1647 = vsub.f32 %v1631, %v1096
        %v1648 = vsub.f32 %v1632, %v1096
        %v1649 = vsub.f32 %v1633, %v1096
        %v1650 = vsub.f32 %v1634, %v1096
        %v1651 = vsub.f32 %v1635, %v1096
        %v1652 = vsub.f32 %v1636, %v1096
        %v1653 = vsub.f32 %v1637, %v1096
        %v1654 = vsub.f32 %v1638, %v1096
        %v1655 = vmul.f32 %v1639, %v1388
        %v1656 = vmul.f32 %v1640, %v1388
        %v1657 = vmul.f32 %v1641, %v1388
        %v1658 = vmul.f32 %v1642, %v1388
        %v1659 = vmul.f32 %v1643, %v1388
        %v1660 = vmul.f32 %v1644, %v1388
        %v1661 = vmul.f32 %v1645, %v1388
        %v1662 = vmul.f32 %v1646, %v1388
        %v1663 = vmul.f32 %v1647, %v1388
        %v1664 = vmul.f32 %v1648, %v1388
        %v1665 = vmul.f32 %v1649, %v1388
        %v1666 = vmul.f32 %v1650, %v1388
        %v1667 = vmul.f32 %v1651, %v1388
        %v1668 = vmul.f32 %v1652, %v1388
        %v1669 = vmul.f32 %v1653, %v1388
        %v1670 = vmul.f32 %v1654, %v1388
        %v1671 = vmul.f32 %v1655, %v1408
        %v1672 = vmul.f32 %v1656, %v1408
        %v1673 = vmul.f32 %v1657, %v1408
        %v1674 = vmul.f32 %v1658, %v1408
        %v1675 = vmul.f32 %v1659, %v1408
        %v1676 = vmul.f32 %v1660, %v1408
        %v1677 = vmul.f32 %v1661, %v1408
        %v1678 = vmul.f32 %v1662, %v1408
        %v1679 = vmul.f32 %v1663, %v1408
        %v1680 = vmul.f32 %v1664, %v1408
        %v1681 = vmul.f32 %v1665, %v1408
        %v1682 = vmul.f32 %v1666, %v1408
        %v1683 = vmul.f32 %v1667, %v1408
        %v1684 = vmul.f32 %v1668, %v1408
        %v1685 = vmul.f32 %v1669, %v1408
        %v1686 = vmul.f32 %v1670, %v1408
        %v1687 = vadd.f32 %v1671, %v1427
        %v1688 = vadd.f32 %v1672, %v1427
        %v1689 = vadd.f32 %v1673, %v1427
        %v1690 = vadd.f32 %v1674, %v1427
        %v1691 = vadd.f32 %v1675, %v1427
        %v1692 = vadd.f32 %v1676, %v1427
        %v1693 = vadd.f32 %v1677, %v1427
        %v1694 = vadd.f32 %v1678, %v1427
        %v1695 = vadd.f32 %v1679, %v1427
        %v1696 = vadd.f32 %v1680, %v1427
        %v1697 = vadd.f32 %v1681, %v1427
        %v1698 = vadd.f32 %v1682, %v1427
        %v1699 = vadd.f32 %v1683, %v1427
        %v1700 = vadd.f32 %v1684, %v1427
        %v1701 = vadd.f32 %v1685, %v1427
        %v1702 = vadd.f32 %v1686, %v1427
        %v1703 = vmax.f32 %v1687, 0.0
        %v1704 = vmax.f32 %v1688, 0.0
        %v1705 = vmax.f32 %v1689, 0.0
        %v1706 = vmax.f32 %v1690, 0.0
        %v1707 = vmax.f32 %v1691, 0.0
        %v1708 = vmax.f32 %v1692, 0.0
        %v1709 = vmax.f32 %v1693, 0.0
        %v1710 = vmax.f32 %v1694, 0.0
        %v1711 = vmax.f32 %v1695, 0.0
        %v1712 = vmax.f32 %v1696, 0.0
        %v1713 = vmax.f32 %v1697, 0.0
        %v1714 = vmax.f32 %v1698, 0.0
        %v1715 = vmax.f32 %v1699, 0.0
        %v1716 = vmax.f32 %v1700, 0.0
        %v1717 = vmax.f32 %v1701, 0.0
        %v1718 = vmax.f32 %v1702, 0.0
        %v1719 = vpack.c.bf16 %v1703, %v1703
        %v1720 = vpack.c.bf16 %v1704, %v1704
        %v1721 = vpack.c.bf16 %v1705, %v1705
        %v1722 = vpack.c.bf16 %v1706, %v1706
        %v1723 = vpack.c.bf16 %v1707, %v1707
        %v1724 = vpack.c.bf16 %v1708, %v1708
        %v1725 = vpack.c.bf16 %v1709, %v1709
        %v1726 = vpack.c.bf16 %v1710, %v1710
        %v1727 = vpack.c.bf16 %v1711, %v1711
        %v1728 = vpack.c.bf16 %v1712, %v1712
        %v1729 = vpack.c.bf16 %v1713, %v1713
        %v1730 = vpack.c.bf16 %v1714, %v1714
        %v1731 = vpack.c.bf16 %v1715, %v1715
        %v1732 = vpack.c.bf16 %v1716, %v1716
        %v1733 = vpack.c.bf16 %v1717, %v1717
        %v1734 = vpack.c.bf16 %v1718, %v1718
        %s1735 = scalar_lea.vmem %s4, 128
        %1736 = vst.msk [vmem:[%s1735] sm:$0xf] %vm1477, %v1719
        %1737 = vst.msk [vmem:[%s1735 + $0x4] sm:$0xf] %vm1477, %v1720
        %1738 = vst.msk [vmem:[%s1735 + $0x8] sm:$0xf] %vm1477, %v1721
        %1739 = vst.msk [vmem:[%s1735 + $0xc] sm:$0xf] %vm1477, %v1722
        %1740 = vst.msk [vmem:[%s1735 + $0x10] sm:$0xf] %vm1477, %v1723
        %1741 = vst.msk [vmem:[%s1735 + $0x14] sm:$0xf] %vm1477, %v1724
        %1742 = vst.msk [vmem:[%s1735 + $0x18] sm:$0xf] %vm1477, %v1725
        %1743 = vst.msk [vmem:[%s1735 + $0x1c] sm:$0xf] %vm1477, %v1726
        %1744 = vst.msk [vmem:[%s1735 + $0x20] sm:$0xf] %vm1477, %v1727
        %1745 = vst.msk [vmem:[%s1735 + $0x24] sm:$0xf] %vm1477, %v1728
        %1746 = vst.msk [vmem:[%s1735 + $0x28] sm:$0xf] %vm1477, %v1729
        %1747 = vst.msk [vmem:[%s1735 + $0x2c] sm:$0xf] %vm1477, %v1730
        %1748 = vst.msk [vmem:[%s1735 + $0x30] sm:$0xf] %vm1477, %v1731
        %1749 = vst.msk [vmem:[%s1735 + $0x34] sm:$0xf] %vm1477, %v1732
        %1750 = vst.msk [vmem:[%s1735 + $0x38] sm:$0xf] %vm1477, %v1733
        %1751 = vst.msk [vmem:[%s1735 + $0x3c] sm:$0xf] %vm1477, %v1734
        %v1752 = vld [vmem:[%s1034] sm:$0xff]
        %v1753 = vld [vmem:[%s1034 + $0x8] sm:$0xff]
        %v1754 = vld [vmem:[%s1034 + $0x10] sm:$0xff]
        %v1755 = vld [vmem:[%s1034 + $0x18] sm:$0xff]
        %v1756 = vld [vmem:[%s1034 + $0x20] sm:$0xff]
        %v1757 = vld [vmem:[%s1034 + $0x28] sm:$0xff]
        %v1758 = vld [vmem:[%s1034 + $0x30] sm:$0xff]
        %v1759 = vld [vmem:[%s1034 + $0x38] sm:$0xff]
        %v1760 = vld [vmem:[%s1034 + $0x40] sm:$0xff]
        %v1761 = vld [vmem:[%s1034 + $0x48] sm:$0xff]
        %v1762 = vld [vmem:[%s1034 + $0x50] sm:$0xff]
        %v1763 = vld [vmem:[%s1034 + $0x58] sm:$0xff]
        %v1764 = vld [vmem:[%s1034 + $0x60] sm:$0xff]
        %v1765 = vld [vmem:[%s1034 + $0x68] sm:$0xff]
        %v1766 = vld [vmem:[%s1034 + $0x70] sm:$0xff]
        %v1767 = vld [vmem:[%s1034 + $0x78] sm:$0xff]
        %v1768 = vsub.f32 %v1752, %v1096
        %v1769 = vsub.f32 %v1753, %v1096
        %v1770 = vsub.f32 %v1754, %v1096
        %v1771 = vsub.f32 %v1755, %v1096
        %v1772 = vsub.f32 %v1756, %v1096
        %v1773 = vsub.f32 %v1757, %v1096
        %v1774 = vsub.f32 %v1758, %v1096
        %v1775 = vsub.f32 %v1759, %v1096
        %v1776 = vsub.f32 %v1760, %v1096
        %v1777 = vsub.f32 %v1761, %v1096
        %v1778 = vsub.f32 %v1762, %v1096
        %v1779 = vsub.f32 %v1763, %v1096
        %v1780 = vsub.f32 %v1764, %v1096
        %v1781 = vsub.f32 %v1765, %v1096
        %v1782 = vsub.f32 %v1766, %v1096
        %v1783 = vsub.f32 %v1767, %v1096
        %v1784 = vmul.f32 %v1768, %v1388
        %v1785 = vmul.f32 %v1769, %v1388
        %v1786 = vmul.f32 %v1770, %v1388
        %v1787 = vmul.f32 %v1771, %v1388
        %v1788 = vmul.f32 %v1772, %v1388
        %v1789 = vmul.f32 %v1773, %v1388
        %v1790 = vmul.f32 %v1774, %v1388
        %v1791 = vmul.f32 %v1775, %v1388
        %v1792 = vmul.f32 %v1776, %v1388
        %v1793 = vmul.f32 %v1777, %v1388
        %v1794 = vmul.f32 %v1778, %v1388
        %v1795 = vmul.f32 %v1779, %v1388
        %v1796 = vmul.f32 %v1780, %v1388
        %v1797 = vmul.f32 %v1781, %v1388
        %v1798 = vmul.f32 %v1782, %v1388
        %v1799 = vmul.f32 %v1783, %v1388
        %v1800 = vmul.f32 %v1784, %v1408
        %v1801 = vmul.f32 %v1785, %v1408
        %v1802 = vmul.f32 %v1786, %v1408
        %v1803 = vmul.f32 %v1787, %v1408
        %v1804 = vmul.f32 %v1788, %v1408
        %v1805 = vmul.f32 %v1789, %v1408
        %v1806 = vmul.f32 %v1790, %v1408
        %v1807 = vmul.f32 %v1791, %v1408
        %v1808 = vmul.f32 %v1792, %v1408
        %v1809 = vmul.f32 %v1793, %v1408
        %v1810 = vmul.f32 %v1794, %v1408
        %v1811 = vmul.f32 %v1795, %v1408
        %v1812 = vmul.f32 %v1796, %v1408
        %v1813 = vmul.f32 %v1797, %v1408
        %v1814 = vmul.f32 %v1798, %v1408
        %v1815 = vmul.f32 %v1799, %v1408
        %v1816 = vadd.f32 %v1800, %v1427
        %v1817 = vadd.f32 %v1801, %v1427
        %v1818 = vadd.f32 %v1802, %v1427
        %v1819 = vadd.f32 %v1803, %v1427
        %v1820 = vadd.f32 %v1804, %v1427
        %v1821 = vadd.f32 %v1805, %v1427
        %v1822 = vadd.f32 %v1806, %v1427
        %v1823 = vadd.f32 %v1807, %v1427
        %v1824 = vadd.f32 %v1808, %v1427
        %v1825 = vadd.f32 %v1809, %v1427
        %v1826 = vadd.f32 %v1810, %v1427
        %v1827 = vadd.f32 %v1811, %v1427
        %v1828 = vadd.f32 %v1812, %v1427
        %v1829 = vadd.f32 %v1813, %v1427
        %v1830 = vadd.f32 %v1814, %v1427
        %v1831 = vadd.f32 %v1815, %v1427
        %v1832 = vmax.f32 %v1816, 0.0
        %v1833 = vmax.f32 %v1817, 0.0
        %v1834 = vmax.f32 %v1818, 0.0
        %v1835 = vmax.f32 %v1819, 0.0
        %v1836 = vmax.f32 %v1820, 0.0
        %v1837 = vmax.f32 %v1821, 0.0
        %v1838 = vmax.f32 %v1822, 0.0
        %v1839 = vmax.f32 %v1823, 0.0
        %v1840 = vmax.f32 %v1824, 0.0
        %v1841 = vmax.f32 %v1825, 0.0
        %v1842 = vmax.f32 %v1826, 0.0
        %v1843 = vmax.f32 %v1827, 0.0
        %v1844 = vmax.f32 %v1828, 0.0
        %v1845 = vmax.f32 %v1829, 0.0
        %v1846 = vmax.f32 %v1830, 0.0
        %v1847 = vmax.f32 %v1831, 0.0
        %v1848 = vpack.c.bf16 %v1832, %v1832
        %v1849 = vpack.c.bf16 %v1833, %v1833
        %v1850 = vpack.c.bf16 %v1834, %v1834
        %v1851 = vpack.c.bf16 %v1835, %v1835
        %v1852 = vpack.c.bf16 %v1836, %v1836
        %v1853 = vpack.c.bf16 %v1837, %v1837
        %v1854 = vpack.c.bf16 %v1838, %v1838
        %v1855 = vpack.c.bf16 %v1839, %v1839
        %v1856 = vpack.c.bf16 %v1840, %v1840
        %v1857 = vpack.c.bf16 %v1841, %v1841
        %v1858 = vpack.c.bf16 %v1842, %v1842
        %v1859 = vpack.c.bf16 %v1843, %v1843
        %v1860 = vpack.c.bf16 %v1844, %v1844
        %v1861 = vpack.c.bf16 %v1845, %v1845
        %v1862 = vpack.c.bf16 %v1846, %v1846
        %v1863 = vpack.c.bf16 %v1847, %v1847
        %s1864 = scalar_lea.vmem %s4, 192
        %1865 = vst.msk [vmem:[%s1864] sm:$0xf] %vm1477, %v1848
        %1866 = vst.msk [vmem:[%s1864 + $0x4] sm:$0xf] %vm1477, %v1849
        %1867 = vst.msk [vmem:[%s1864 + $0x8] sm:$0xf] %vm1477, %v1850
        %1868 = vst.msk [vmem:[%s1864 + $0xc] sm:$0xf] %vm1477, %v1851
        %1869 = vst.msk [vmem:[%s1864 + $0x10] sm:$0xf] %vm1477, %v1852
        %1870 = vst.msk [vmem:[%s1864 + $0x14] sm:$0xf] %vm1477, %v1853
        %1871 = vst.msk [vmem:[%s1864 + $0x18] sm:$0xf] %vm1477, %v1854
        %1872 = vst.msk [vmem:[%s1864 + $0x1c] sm:$0xf] %vm1477, %v1855
        %1873 = vst.msk [vmem:[%s1864 + $0x20] sm:$0xf] %vm1477, %v1856
        %1874 = vst.msk [vmem:[%s1864 + $0x24] sm:$0xf] %vm1477, %v1857
        %1875 = vst.msk [vmem:[%s1864 + $0x28] sm:$0xf] %vm1477, %v1858
        %1876 = vst.msk [vmem:[%s1864 + $0x2c] sm:$0xf] %vm1477, %v1859
        %1877 = vst.msk [vmem:[%s1864 + $0x30] sm:$0xf] %vm1477, %v1860
        %1878 = vst.msk [vmem:[%s1864 + $0x34] sm:$0xf] %vm1477, %v1861
        %1879 = vst.msk [vmem:[%s1864 + $0x38] sm:$0xf] %vm1477, %v1862
        %1880 = vst.msk [vmem:[%s1864 + $0x3c] sm:$0xf] %vm1477, %v1863
      $region40: #{generator_forward.6} parent=35 // pred_fallthru
        _
      // Predicated region
      $region41: #{generator_forward.6} parent=35 // pred_check
        %p1881 = pneg %p122
      $region42: #{generator_forward.6} parent=35 // pred_check_branch
        %1883 = sbr.rel (%p1881) target = $region44
      $region43: #{generator_forward.6} parent=35 // pred_region
        _
      $region44: #{generator_forward.6} parent=35 // pred_fallthru
        _
      // Predicated region
      $region45: #{generator_forward.6} parent=35 // pred_check
        %p1884 = pneg %p122
      $region46: #{generator_forward.6} parent=35 // pred_check_branch
        %1886 = sbr.rel (%p1884) target = $region48
      $region47: #{generator_forward.6} parent=35 // pred_region
        _
      $region48: #{generator_forward.6} parent=35 // pred_fallthru
        _
    $region36: #{generator_forward.6} parent=5 // pred_fallthru
      _
    %p1887 = scmp.le.s32.totalorder 2, %s10
    // Predicated region
    $region49: #{generator_forward.6} parent=5 // pred_check
      %p1888 = pneg %p1887
    $region50: #{generator_forward.6} parent=5 // pred_check_branch
      %1890 = sbr.rel (%p1888) target = $region52
    $region51: #{generator_forward.6} parent=5 // pred_region
      %s1891 = ssub.s32 %s10, 2
    $region52: #{generator_forward.6} parent=5 // pred_fallthru
      _
  $region6: #{generator_forward.6} parent=0 // loop_footer
    %s14 = sadd.s32 1, %s10
  $region7: #{generator_forward.6} parent=0 // loop_footer_branch
    %9 = sbr.rel target = $region3
  $region8: #{generator_forward.6} parent=0 // loop_exit
    _

// kernel: generator_forward.7
$region0: #{generator_forward.7}
  #allocation0 [shape = 'u32[]', space=smem, size = 0x4, offset = 0x4, fixed_abs, tag = 'smem constant byte address 0x4 - core index']
  #allocation1 [shape = 'u32[72,128]{1,0:T(1,128)}', space=vmem, size = 0x9000, scoped, tag = 'internal scratch']
  %s0 = inlined_call_operand.vmem [shape: bf16[392,576], index: 0, kind: input, shape index: {}]
  %s1 = inlined_call_operand.vmem [shape: bf16[576,4], index: 1, kind: input, shape index: {}]
  %s2 = inlined_call_operand.vmem [shape: f32[392,4], index: 2, kind: output, shape index: {}]
  %s3 = sld [smem:[#allocation0]]
  $region41: #{generator_forward.7} parent=0
    _
  %s5 = ssub.s32 1, %s3
  %s6 = scalar_select 0, %s5, %s3
  loop: start=0, step=1, limit=9
  $region2: #{generator_forward.7} parent=0 // loop_pre_header
    _
  $region3: #{generator_forward.7} parent=0 // loop_header
    %s8 = sphi 0, %s12
    %p9 = scmp.ge.s32.totalorder %s8, 9
    %s18 = sphi 0, %s20
    %s21 = sphi 0, %s18
    %s22 = sphi 0, %s21
    %s38 = sphi 0, %s22
    %s42 = sphi 0, %s42
    %s44 = sphi 0, %s42
    %s45 = sphi 0, %s44
    %s59 = sphi 0, %s45
    %s65 = sphi 0, %s67
    %s68 = sphi 0, %s65
    %s69 = sphi 0, %s68
    %s85 = sphi 0, %s69
  $region4: #{generator_forward.7} parent=0 // loop_header_branch
    %11 = sbr.rel (%p9) target = $region8
  $region5: #{generator_forward.7} parent=0 // loop_body
    %s13 = ssub.s32 %s8, 1
    %s14 = ssub.s32 %s8, 2
    %s15 = sadd.s32 %s8, 1
    %s16 = ssub.s32 %s8, %s15
    %p17 = scmp.eq.s32.totalorder %s16, 0
    %s19 = sadd.s32 %s18, 1
    %s20 = scalar_select %p17, %s18, %s19
    %p23 = pneg %p17
    %p24 = scmp.eq.s32.totalorder %s8, 6
    %p25 = por %p23, %p24
    %p26 = scmp.ne.s32.totalorder %s18, %s21
    %p27 = scmp.eq.s32.totalorder %s8, 0
    %p28 = por %p26, %p27
    %p29 = scmp.ne.s32.totalorder %s18, %s21
    %p30 = scmp.eq.s32.totalorder %s13, 6
    %p31 = por %p29, %p30
    %p32 = scmp.ne.s32.totalorder %s21, %s22
    %p33 = scmp.eq.s32.totalorder %s13, 0
    %p34 = por %p32, %p33
    %p35 = scmp.ne.s32.totalorder %s21, %s22
    %p36 = scmp.eq.s32.totalorder %s14, 6
    %p37 = por %p35, %p36
    %p39 = scmp.ne.s32.totalorder %s22, %s38
    %p40 = scmp.eq.s32.totalorder %s14, 0
    %p41 = por %p39, %p40
    %s43 = sadd.s32 %s42, 1
    %p46 = scmp.eq.s32.totalorder %s8, 6
    %p47 = scmp.ne.s32.totalorder %s42, %s44
    %p48 = scmp.eq.s32.totalorder %s8, 0
    %p49 = por %p47, %p48
    %p50 = scmp.ne.s32.totalorder %s42, %s44
    %p51 = scmp.eq.s32.totalorder %s13, 6
    %p52 = por %p50, %p51
    %p53 = scmp.ne.s32.totalorder %s44, %s45
    %p54 = scmp.eq.s32.totalorder %s13, 0
    %p55 = por %p53, %p54
    %p56 = scmp.ne.s32.totalorder %s44, %s45
    %p57 = scmp.eq.s32.totalorder %s14, 6
    %p58 = por %p56, %p57
    %p60 = scmp.ne.s32.totalorder %s45, %s59
    %p61 = scmp.eq.s32.totalorder %s14, 0
    %p62 = por %p60, %p61
    %s63 = ssub.s32 %s8, %s15
    %p64 = scmp.eq.s32.totalorder %s63, 0
    %s66 = sadd.s32 %s65, 1
    %s67 = scalar_select %p64, %s65, %s66
    %p70 = pneg %p64
    %p71 = scmp.eq.s32.totalorder %s8, 6
    %p72 = por %p70, %p71
    %p73 = scmp.ne.s32.totalorder %s65, %s68
    %p74 = scmp.eq.s32.totalorder %s8, 0
    %p75 = por %p73, %p74
    %p76 = scmp.ne.s32.totalorder %s65, %s68
    %p77 = scmp.eq.s32.totalorder %s13, 6
    %p78 = por %p76, %p77
    %p79 = scmp.ne.s32.totalorder %s68, %s69
    %p80 = scmp.eq.s32.totalorder %s13, 0
    %p81 = por %p79, %p80
    %p82 = scmp.ne.s32.totalorder %s68, %s69
    %p83 = scmp.eq.s32.totalorder %s14, 6
    %p84 = por %p82, %p83
    %p86 = scmp.ne.s32.totalorder %s69, %s85
    %p87 = scmp.eq.s32.totalorder %s14, 0
    %p88 = por %p86, %p87
    %p89 = scmp.le.s32.totalorder 1, %s8
    %p90 = scmp.lt.s32.totalorder %s8, 8
    %p91 = pnand %p89, %p90
    %p92 = pneg %p91
    // Predicated region
    $region9: #{generator_forward.7} parent=5 // pred_check
      _
    $region10: #{generator_forward.7} parent=5 // pred_check_branch
      %94 = sbr.rel (%p91) target = $region12
    $region11: #{generator_forward.7} parent=5 // pred_region
      %s95 = ssub.s32 %s8, 1
      // Predicated region
      $region13: #{generator_forward.7} parent=11 // pred_check
        %p96 = pneg %p55
      $region14: #{generator_forward.7} parent=11 // pred_check_branch
        %98 = sbr.rel (%p96) target = $region16
      $region15: #{generator_forward.7} parent=11 // pred_region
        _
      $region16: #{generator_forward.7} parent=11 // pred_fallthru
        _
    $region12: #{generator_forward.7} parent=5 // pred_fallthru
      _
    %p99 = scmp.lt.s32.totalorder %s8, 7
    // Predicated region
    $region17: #{generator_forward.7} parent=5 // pred_check
      %p100 = pneg %p99
    $region18: #{generator_forward.7} parent=5 // pred_check_branch
      %102 = sbr.rel (%p100) target = $region20
    $region19: #{generator_forward.7} parent=5 // pred_region
      // Predicated region
      $region21: #{generator_forward.7} parent=19 // pred_check
        %p103 = pneg %p28
      $region22: #{generator_forward.7} parent=19 // pred_check_branch
        %105 = sbr.rel (%p103) target = $region24
      $region23: #{generator_forward.7} parent=19 // pred_region
        %s106 = smul.u32 7, %s8
        %p107 = scmp.lt.s32.totalorder %s106, 48
        %s108 = scalar_select %p107, %s106, 48
        %s109 = smul.addr %s108, 5
        %s110 = smul.addr %s109, 4
        %s111 = scalar_lea.vmem %s0, %s110
        %s112 = smul.u32 7, %s8
      $region24: #{generator_forward.7} parent=19 // pred_fallthru
        _
    $region20: #{generator_forward.7} parent=5 // pred_fallthru
      _
    %p113 = scmp.le.s32.totalorder 1, %s8
    %p114 = scmp.lt.s32.totalorder %s8, 8
    %p115 = pnand %p113, %p114
    %p116 = pneg %p115
    // Predicated region
    $region25: #{generator_forward.7} parent=5 // pred_check
      _
    $region26: #{generator_forward.7} parent=5 // pred_check_branch
      %118 = sbr.rel (%p115) target = $region28
    $region27: #{generator_forward.7} parent=5 // pred_region
      %s119 = ssub.s32 %s8, 1
      %s120 = smul.u32 7, %s13
      %p121 = scmp.lt.s32.totalorder %s120, 48
      %s122 = scalar_select %p121, %s120, 48
      %s123 = smul.addr %s122, 5
      %s124 = smul.addr %s123, 4
      %s125 = scalar_lea.vmem %s0, %s124
      %p126 = pneg %p34
      %p127 = pneg %p31
      %p128 = pneg %p55
      %p129 = pneg %p52
      %p130 = pneg %p81
      %p131 = pneg %p78
      %s132 = smul.u32 7, %s13
      %p133 = scmp.lt.s32.totalorder %s132, 48
      %s134 = scalar_select %p133, %s132, 48
      %s135 = smul.addr %s134, 8
      %s136 = scalar_lea.vmem %s2, %s135
      %s137 = smul.u32 7, %s13
      %p138 = scmp.lt.s32.totalorder %s137, 48
      %s139 = scalar_select %p138, %s137, 48
      %s140 = smul.addr %s139, 5
      %s141 = smul.addr %s140, 4
      %s142 = scalar_lea.vmem %s0, %s141
      %s143 = smul.u32 7, %s13
      %s144 = smul.u32 7, %s13
      %p145 = scmp.lt.s32.totalorder %s144, 48
      %s146 = scalar_select %p145, %s144, 48
      %s147 = smul.addr %s146, 8
      %s148 = scalar_lea.vmem %s2, %s147
      %s149 = smul.u32 7, %s13
      %v151 = vld [vmem:[%s142] sm:$0xff]
      %v152 = vld [vmem:[%s142 + $0x8] sm:$0xff]
      %v153 = vld [vmem:[%s142 + $0x10] sm:$0xf]
      %v154 = vld [vmem:[%s142 + $0x14] sm:$0xff]
      %v155 = vld [vmem:[%s142 + $0x1c] sm:$0xff]
      %v156 = vld [vmem:[%s142 + $0x24] sm:$0xf]
      %v157 = vld [vmem:[%s142 + $0x28] sm:$0xff]
      %v158 = vld [vmem:[%s142 + $0x30] sm:$0xff]
      %v159 = vld [vmem:[%s142 + $0x38] sm:$0xf]
      %v160 = vld [vmem:[%s142 + $0x3c] sm:$0xff]
      %v161 = vld [vmem:[%s142 + $0x44] sm:$0xff]
      %v162 = vld [vmem:[%s142 + $0x4c] sm:$0xf]
      %v163 = vld [vmem:[%s142 + $0x50] sm:$0xff]
      %v164 = vld [vmem:[%s142 + $0x58] sm:$0xff]
      %v165 = vld [vmem:[%s142 + $0x60] sm:$0xf]
      %v166 = vld [vmem:[%s142 + $0x64] sm:$0xff]
      %v167 = vld [vmem:[%s142 + $0x6c] sm:$0xff]
      %v168 = vld [vmem:[%s142 + $0x74] sm:$0xf]
      %v169 = vld [vmem:[%s142 + $0x78] sm:$0xff]
      %v170 = vld [vmem:[%s142 + $0x80] sm:$0xff]
      %v171 = vld [vmem:[%s142 + $0x88] sm:$0xf]
      %v172 = vld [vmem:[%s1] sm:$0xf]
      %v173 = vld [vmem:[%s1 + $0x4] sm:$0xf]
      %v174 = vld [vmem:[%s1 + $0x8] sm:$0xf]
      %v175 = vld [vmem:[%s1 + $0xc] sm:$0xf]
      %v176 = vld [vmem:[%s1 + $0x10] sm:$0xf]
      %v177 = vld [vmem:[%s1 + $0x14] sm:$0xf]
      %v178 = vld [vmem:[%s1 + $0x18] sm:$0xf]
      %v179 = vld [vmem:[%s1 + $0x1c] sm:$0xf]
      %v180 = vld [vmem:[%s1 + $0x20] sm:$0xf]
      %v181 = vld [vmem:[%s1 + $0x24] sm:$0xf]
      %v182 = vld [vmem:[%s1 + $0x28] sm:$0xf]
      %v183 = vld [vmem:[%s1 + $0x2c] sm:$0xf]
      %v184 = vld [vmem:[%s1 + $0x30] sm:$0xf]
      %v185 = vld [vmem:[%s1 + $0x34] sm:$0xf]
      %v186 = vld [vmem:[%s1 + $0x38] sm:$0xf]
      %v187 = vld [vmem:[%s1 + $0x3c] sm:$0xf]
      %v188 = vld [vmem:[%s1 + $0x40] sm:$0xf]
      %v189 = vld [vmem:[%s1 + $0x44] sm:$0xf]
      %v190 = vld [vmem:[%s1 + $0x48] sm:$0xf]
      %v191 = vld [vmem:[%s1 + $0x4c] sm:$0xf]
      %v192 = vld [vmem:[%s1 + $0x50] sm:$0xf]
      %v193 = vld [vmem:[%s1 + $0x54] sm:$0xf]
      %v194 = vld [vmem:[%s1 + $0x58] sm:$0xf]
      %v195 = vld [vmem:[%s1 + $0x5c] sm:$0xf]
      %v196 = vld [vmem:[%s1 + $0x60] sm:$0xf]
      %v197 = vld [vmem:[%s1 + $0x64] sm:$0xf]
      %v198 = vld [vmem:[%s1 + $0x68] sm:$0xf]
      %v199 = vld [vmem:[%s1 + $0x6c] sm:$0xf]
      %v200 = vld [vmem:[%s1 + $0x70] sm:$0xf]
      %v201 = vld [vmem:[%s1 + $0x74] sm:$0xf]
      %v202 = vld [vmem:[%s1 + $0x78] sm:$0xf]
      %v203 = vld [vmem:[%s1 + $0x7c] sm:$0xf]
      %v204 = vld [vmem:[%s1 + $0x80] sm:$0xf]
      %v205 = vld [vmem:[%s1 + $0x84] sm:$0xf]
      %v206 = vld [vmem:[%s1 + $0x88] sm:$0xf]
      %v207 = vld [vmem:[%s1 + $0x8c] sm:$0xf]
      %v208 = vld [vmem:[%s1 + $0x90] sm:$0xf]
      %v209 = vld [vmem:[%s1 + $0x94] sm:$0xf]
      %v210 = vld [vmem:[%s1 + $0x98] sm:$0xf]
      %v211 = vld [vmem:[%s1 + $0x9c] sm:$0xf]
      %v212 = vld [vmem:[%s1 + $0xa0] sm:$0xf]
      %v213 = vld [vmem:[%s1 + $0xa4] sm:$0xf]
      %v214 = vld [vmem:[%s1 + $0xa8] sm:$0xf]
      %v215 = vld [vmem:[%s1 + $0xac] sm:$0xf]
      %v216 = vld [vmem:[%s1 + $0xb0] sm:$0xf]
      %v217 = vld [vmem:[%s1 + $0xb4] sm:$0xf]
      %v218 = vld [vmem:[%s1 + $0xb8] sm:$0xf]
      %v219 = vld [vmem:[%s1 + $0xbc] sm:$0xf]
      %v220 = vld [vmem:[%s1 + $0xc0] sm:$0xf]
      %v221 = vld [vmem:[%s1 + $0xc4] sm:$0xf]
      %v222 = vld [vmem:[%s1 + $0xc8] sm:$0xf]
      %v223 = vld [vmem:[%s1 + $0xcc] sm:$0xf]
      %v224 = vld [vmem:[%s1 + $0xd0] sm:$0xf]
      %v225 = vld [vmem:[%s1 + $0xd4] sm:$0xf]
      %v226 = vld [vmem:[%s1 + $0xd8] sm:$0xf]
      %v227 = vld [vmem:[%s1 + $0xdc] sm:$0xf]
      %v228 = vld [vmem:[%s1 + $0xe0] sm:$0xf]
      %v229 = vld [vmem:[%s1 + $0xe4] sm:$0xf]
      %v230 = vld [vmem:[%s1 + $0xe8] sm:$0xf]
      %v231 = vld [vmem:[%s1 + $0xec] sm:$0xf]
      %v232 = vld [vmem:[%s1 + $0xf0] sm:$0xf]
      %v233 = vld [vmem:[%s1 + $0xf4] sm:$0xf]
      %v234 = vld [vmem:[%s1 + $0xf8] sm:$0xf]
      %v235 = vld [vmem:[%s1 + $0xfc] sm:$0xf]
      %v236 = vld [vmem:[%s1 + $0x100] sm:$0xf]
      %v237 = vld [vmem:[%s1 + $0x104] sm:$0xf]
      %v238 = vld [vmem:[%s1 + $0x108] sm:$0xf]
      %v239 = vld [vmem:[%s1 + $0x10c] sm:$0xf]
      %v240 = vld [vmem:[%s1 + $0x110] sm:$0xf]
      %v241 = vld [vmem:[%s1 + $0x114] sm:$0xf]
      %v242 = vld [vmem:[%s1 + $0x118] sm:$0xf]
      %v243 = vld [vmem:[%s1 + $0x11c] sm:$0xf]
      %v265 = vunpack.c.l.b16 %v151
      %v266 = vunpack.c.h.b16 %v151
      %v267 = vunpack.c.l.b16 %v152
      %v268 = vunpack.c.h.b16 %v152
      %v269 = vunpack.c.l.b16 %v153
      %v270 = vunpack.c.l.b16 %v154
      %v271 = vunpack.c.h.b16 %v154
      %v272 = vunpack.c.l.b16 %v155
      %v273 = vunpack.c.h.b16 %v155
      %v274 = vunpack.c.l.b16 %v156
      %v275 = vunpack.c.l.b16 %v157
      %v276 = vunpack.c.h.b16 %v157
      %v277 = vunpack.c.l.b16 %v158
      %v278 = vunpack.c.h.b16 %v158
      %v279 = vunpack.c.l.b16 %v159
      %v280 = vunpack.c.l.b16 %v160
      %v281 = vunpack.c.h.b16 %v160
      %v282 = vunpack.c.l.b16 %v161
      %v283 = vunpack.c.h.b16 %v161
      %v284 = vunpack.c.l.b16 %v162
      %v285 = vunpack.c.l.b16 %v163
      %v286 = vunpack.c.h.b16 %v163
      %v287 = vunpack.c.l.b16 %v164
      %v288 = vunpack.c.h.b16 %v164
      %v289 = vunpack.c.l.b16 %v165
      %v290 = vunpack.c.l.b16 %v166
      %v291 = vunpack.c.h.b16 %v166
      %v292 = vunpack.c.l.b16 %v167
      %v293 = vunpack.c.h.b16 %v167
      %v294 = vunpack.c.l.b16 %v168
      %v295 = vunpack.c.l.b16 %v169
      %v296 = vunpack.c.h.b16 %v169
      %v297 = vunpack.c.l.b16 %v170
      %v298 = vunpack.c.h.b16 %v170
      %v299 = vunpack.c.l.b16 %v171
      %v300 = vpack.c.b16 %v270, %v265
      %v301 = vpack.c.b16 %v271, %v266
      %v302 = vpack.c.b16 %v272, %v267
      %v303 = vpack.c.b16 %v273, %v268
      %v304 = vpack.c.b16 %v274, %v269
      %v305 = vpack.c.b16 %v280, %v275
      %v306 = vpack.c.b16 %v281, %v276
      %v307 = vpack.c.b16 %v282, %v277
      %v308 = vpack.c.b16 %v283, %v278
      %v309 = vpack.c.b16 %v284, %v279
      %v310 = vpack.c.b16 %v290, %v285
      %v311 = vpack.c.b16 %v291, %v286
      %v312 = vpack.c.b16 %v292, %v287
      %v313 = vpack.c.b16 %v293, %v288
      %v314 = vpack.c.b16 %v294, %v289
      %v315 = vpack.c.b16 %v295, %v295
      %v316 = vpack.c.b16 %v296, %v296
      %v317 = vpack.c.b16 %v297, %v297
      %v318 = vpack.c.b16 %v298, %v298
      %v319 = vpack.c.b16 %v299, %v299
      %v408 = vunpack.c.l.b16 %v172
      %v409 = vunpack.c.l.b16 %v173
      %v410 = vunpack.c.l.b16 %v174
      %v411 = vunpack.c.l.b16 %v175
      %v412 = vunpack.c.l.b16 %v176
      %v413 = vunpack.c.l.b16 %v177
      %v414 = vunpack.c.l.b16 %v178
      %v415 = vunpack.c.l.b16 %v179
      %v416 = vunpack.c.l.b16 %v180
      %v417 = vunpack.c.l.b16 %v181
      %v418 = vunpack.c.l.b16 %v182
      %v419 = vunpack.c.l.b16 %v183
      %v420 = vunpack.c.l.b16 %v184
      %v421 = vunpack.c.l.b16 %v185
      %v422 = vunpack.c.l.b16 %v186
      %v423 = vunpack.c.l.b16 %v187
      %v424 = vunpack.c.l.b16 %v188
      %v425 = vunpack.c.l.b16 %v189
      %v426 = vunpack.c.l.b16 %v190
      %v427 = vunpack.c.l.b16 %v191
      %v428 = vunpack.c.l.b16 %v192
      %v429 = vunpack.c.l.b16 %v193
      %v430 = vunpack.c.l.b16 %v194
      %v431 = vunpack.c.l.b16 %v195
      %v432 = vunpack.c.l.b16 %v196
      %v433 = vunpack.c.l.b16 %v197
      %v434 = vunpack.c.l.b16 %v198
      %v435 = vunpack.c.l.b16 %v199
      %v436 = vunpack.c.l.b16 %v200
      %v437 = vunpack.c.l.b16 %v201
      %v438 = vunpack.c.l.b16 %v202
      %v439 = vunpack.c.l.b16 %v203
      %v440 = vunpack.c.l.b16 %v204
      %v441 = vunpack.c.l.b16 %v205
      %v442 = vunpack.c.l.b16 %v206
      %v443 = vunpack.c.l.b16 %v207
      %v444 = vunpack.c.l.b16 %v208
      %v445 = vunpack.c.l.b16 %v209
      %v446 = vunpack.c.l.b16 %v210
      %v447 = vunpack.c.l.b16 %v211
      %v448 = vunpack.c.l.b16 %v212
      %v449 = vunpack.c.l.b16 %v213
      %v450 = vunpack.c.l.b16 %v214
      %v451 = vunpack.c.l.b16 %v215
      %v452 = vunpack.c.l.b16 %v216
      %v453 = vunpack.c.l.b16 %v217
      %v454 = vunpack.c.l.b16 %v218
      %v455 = vunpack.c.l.b16 %v219
      %v456 = vunpack.c.l.b16 %v220
      %v457 = vunpack.c.l.b16 %v221
      %v458 = vunpack.c.l.b16 %v222
      %v459 = vunpack.c.l.b16 %v223
      %v460 = vunpack.c.l.b16 %v224
      %v461 = vunpack.c.l.b16 %v225
      %v462 = vunpack.c.l.b16 %v226
      %v463 = vunpack.c.l.b16 %v227
      %v464 = vunpack.c.l.b16 %v228
      %v465 = vunpack.c.l.b16 %v229
      %v466 = vunpack.c.l.b16 %v230
      %v467 = vunpack.c.l.b16 %v231
      %v468 = vunpack.c.l.b16 %v232
      %v469 = vunpack.c.l.b16 %v233
      %v470 = vunpack.c.l.b16 %v234
      %v471 = vunpack.c.l.b16 %v235
      %v472 = vunpack.c.l.b16 %v236
      %v473 = vunpack.c.l.b16 %v237
      %v474 = vunpack.c.l.b16 %v238
      %v475 = vunpack.c.l.b16 %v239
      %v476 = vunpack.c.l.b16 %v240
      %v477 = vunpack.c.l.b16 %v241
      %v478 = vunpack.c.l.b16 %v242
      %v479 = vunpack.c.l.b16 %v243
      %v480 = vpack.c.b16 %v409, %v408
      %v481 = vpack.c.b16 %v411, %v410
      %v482 = vpack.c.b16 %v413, %v412
      %v483 = vpack.c.b16 %v415, %v414
      %v484 = vpack.c.b16 %v417, %v416
      %v485 = vpack.c.b16 %v419, %v418
      %v486 = vpack.c.b16 %v421, %v420
      %v487 = vpack.c.b16 %v423, %v422
      %v488 = vpack.c.b16 %v425, %v424
      %v489 = vpack.c.b16 %v427, %v426
      %v490 = vpack.c.b16 %v429, %v428
      %v491 = vpack.c.b16 %v431, %v430
      %v492 = vpack.c.b16 %v433, %v432
      %v493 = vpack.c.b16 %v435, %v434
      %v494 = vpack.c.b16 %v437, %v436
      %v495 = vpack.c.b16 %v439, %v438
      %v496 = vpack.c.b16 %v441, %v440
      %v497 = vpack.c.b16 %v443, %v442
      %v498 = vpack.c.b16 %v445, %v444
      %v499 = vpack.c.b16 %v447, %v446
      %v500 = vpack.c.b16 %v449, %v448
      %v501 = vpack.c.b16 %v451, %v450
      %v502 = vpack.c.b16 %v453, %v452
      %v503 = vpack.c.b16 %v455, %v454
      %v504 = vpack.c.b16 %v457, %v456
      %v505 = vpack.c.b16 %v459, %v458
      %v506 = vpack.c.b16 %v461, %v460
      %v507 = vpack.c.b16 %v463, %v462
      %v508 = vpack.c.b16 %v465, %v464
      %v509 = vpack.c.b16 %v467, %v466
      %v510 = vpack.c.b16 %v469, %v468
      %v511 = vpack.c.b16 %v471, %v470
      %v512 = vpack.c.b16 %v473, %v472
      %v513 = vpack.c.b16 %v475, %v474
      %v514 = vpack.c.b16 %v477, %v476
      %v515 = vpack.c.b16 %v479, %v478
      %vm552 = vcmask 523264
      %v554 = vsel %vm552, %v304, 0
      %v557 = vsel %vm552, %v309, 0
      %v560 = vsel %vm552, %v314, 0
      %v563 = vsel %vm552, %v319, 0
      %565 = vmatpush.bf16.msra.mxu0 %v487
      %566 = vmatpush.bf16.msra.mxu0 %v486
      %567 = vmatpush.bf16.msra.mxu0 %v485
      %568 = vmatpush.bf16.msra.mxu0 %v484
      %569 = vmatpush.bf16.msra.mxu0 %v483
      %570 = vmatpush.bf16.msra.mxu0 %v482
      %571 = vmatpush.bf16.msra.mxu0 %v481
      %572 = vmatpush.bf16.msra.mxu0 %v480
      %573 = vmatmul.bf16.gmra.mxu0 %v300
      %v574 = vpop.f32.mrf.mxu0
      %v575 = vadd.f32 0.0, %v574
      %v576 = vpop.f32.mrf.mxu0
      %v577 = vadd.f32 0.0, %v576
      %578 = vmatmul.bf16.gmra.mxu0 %v305
      %v579 = vpop.f32.mrf.mxu0
      %v580 = vadd.f32 0.0, %v579
      %v581 = vpop.f32.mrf.mxu0
      %v582 = vadd.f32 0.0, %v581
      %583 = vmatmul.bf16.gmra.mxu0 %v310
      %v584 = vpop.f32.mrf.mxu0
      %v585 = vadd.f32 0.0, %v584
      %v586 = vpop.f32.mrf.mxu0
      %v587 = vadd.f32 0.0, %v586
      %588 = vmatmul.bf16.gmra.mxu0 %v315
      %v589 = vpop.f32.mrf.mxu0
      %v590 = vadd.f32 0.0, %v589
      %v591 = vpop.f32.mrf.mxu0
      %592 = vdwg.mxu0
      %593 = vmatpush.bf16.msra.mxu0 %v495
      %594 = vmatpush.bf16.msra.mxu0 %v494
      %595 = vmatpush.bf16.msra.mxu0 %v493
      %596 = vmatpush.bf16.msra.mxu0 %v492
      %597 = vmatpush.bf16.msra.mxu0 %v491
      %598 = vmatpush.bf16.msra.mxu0 %v490
      %599 = vmatpush.bf16.msra.mxu0 %v489
      %600 = vmatpush.bf16.msra.mxu0 %v488
      %601 = vmatmul.bf16.gmra.mxu0 %v301
      %v602 = vpop.f32.mrf.mxu0
      %v603 = vadd.f32 %v575, %v602
      %v604 = vpop.f32.mrf.mxu0
      %v605 = vadd.f32 %v577, %v604
      %606 = vmatmul.bf16.gmra.mxu0 %v306
      %v607 = vpop.f32.mrf.mxu0
      %v608 = vadd.f32 %v580, %v607
      %v609 = vpop.f32.mrf.mxu0
      %v610 = vadd.f32 %v582, %v609
      %611 = vmatmul.bf16.gmra.mxu0 %v311
      %v612 = vpop.f32.mrf.mxu0
      %v613 = vadd.f32 %v585, %v612
      %v614 = vpop.f32.mrf.mxu0
      %v615 = vadd.f32 %v587, %v614
      %616 = vmatmul.bf16.gmra.mxu0 %v316
      %v617 = vpop.f32.mrf.mxu0
      %v618 = vadd.f32 %v590, %v617
      %v619 = vpop.f32.mrf.mxu0
      %620 = vdwg.mxu0
      %621 = vmatpush.bf16.msra.mxu0 %v503
      %622 = vmatpush.bf16.msra.mxu0 %v502
      %623 = vmatpush.bf16.msra.mxu0 %v501
      %624 = vmatpush.bf16.msra.mxu0 %v500
      %625 = vmatpush.bf16.msra.mxu0 %v499
      %626 = vmatpush.bf16.msra.mxu0 %v498
      %627 = vmatpush.bf16.msra.mxu0 %v497
      %628 = vmatpush.bf16.msra.mxu0 %v496
      %629 = vmatmul.bf16.gmra.mxu0 %v302
      %v630 = vpop.f32.mrf.mxu0
      %v631 = vadd.f32 %v603, %v630
      %v632 = vpop.f32.mrf.mxu0
      %v633 = vadd.f32 %v605, %v632
      %634 = vmatmul.bf16.gmra.mxu0 %v307
      %v635 = vpop.f32.mrf.mxu0
      %v636 = vadd.f32 %v608, %v635
      %v637 = vpop.f32.mrf.mxu0
      %v638 = vadd.f32 %v610, %v637
      %639 = vmatmul.bf16.gmra.mxu0 %v312
      %v640 = vpop.f32.mrf.mxu0
      %v641 = vadd.f32 %v613, %v640
      %v642 = vpop.f32.mrf.mxu0
      %v643 = vadd.f32 %v615, %v642
      %644 = vmatmul.bf16.gmra.mxu0 %v317
      %v645 = vpop.f32.mrf.mxu0
      %v646 = vadd.f32 %v618, %v645
      %v647 = vpop.f32.mrf.mxu0
      %648 = vdwg.mxu0
      %649 = vmatpush.bf16.msra.mxu0 %v511
      %650 = vmatpush.bf16.msra.mxu0 %v510
      %651 = vmatpush.bf16.msra.mxu0 %v509
      %652 = vmatpush.bf16.msra.mxu0 %v508
      %653 = vmatpush.bf16.msra.mxu0 %v507
      %654 = vmatpush.bf16.msra.mxu0 %v506
      %655 = vmatpush.bf16.msra.mxu0 %v505
      %656 = vmatpush.bf16.msra.mxu0 %v504
      %657 = vmatmul.bf16.gmra.mxu0 %v303
      %v658 = vpop.f32.mrf.mxu0
      %v659 = vadd.f32 %v631, %v658
      %v660 = vpop.f32.mrf.mxu0
      %v661 = vadd.f32 %v633, %v660
      %662 = vmatmul.bf16.gmra.mxu0 %v308
      %v663 = vpop.f32.mrf.mxu0
      %v664 = vadd.f32 %v636, %v663
      %v665 = vpop.f32.mrf.mxu0
      %v666 = vadd.f32 %v638, %v665
      %667 = vmatmul.bf16.gmra.mxu0 %v313
      %v668 = vpop.f32.mrf.mxu0
      %v669 = vadd.f32 %v641, %v668
      %v670 = vpop.f32.mrf.mxu0
      %v671 = vadd.f32 %v643, %v670
      %672 = vmatmul.bf16.gmra.mxu0 %v318
      %v673 = vpop.f32.mrf.mxu0
      %v674 = vadd.f32 %v646, %v673
      %v675 = vpop.f32.mrf.mxu0
      %676 = vdwg.mxu0
      %677 = vmatpush.bf16.msra.mxu0 0
      %678 = vmatpush.bf16.msra.mxu0 0
      %679 = vmatpush.bf16.msra.mxu0 0
      %680 = vmatpush.bf16.msra.mxu0 0
      %681 = vmatpush.bf16.msra.mxu0 %v515
      %682 = vmatpush.bf16.msra.mxu0 %v514
      %683 = vmatpush.bf16.msra.mxu0 %v513
      %684 = vmatpush.bf16.msra.mxu0 %v512
      %685 = vmatmul.bf16.gmra.mxu0 %v554
      %v686 = vpop.f32.mrf.mxu0
      %v687 = vadd.f32 %v659, %v686
      %v688 = vpop.f32.mrf.mxu0
      %v689 = vadd.f32 %v661, %v688
      %690 = vmatmul.bf16.gmra.mxu0 %v557
      %v691 = vpop.f32.mrf.mxu0
      %v692 = vadd.f32 %v664, %v691
      %v693 = vpop.f32.mrf.mxu0
      %v694 = vadd.f32 %v666, %v693
      %695 = vmatmul.bf16.gmra.mxu0 %v560
      %v696 = vpop.f32.mrf.mxu0
      %v697 = vadd.f32 %v669, %v696
      %v698 = vpop.f32.mrf.mxu0
      %v699 = vadd.f32 %v671, %v698
      %700 = vmatmul.bf16.gmra.mxu0 %v563
      %v701 = vpop.f32.mrf.mxu0
      %v702 = vadd.f32 %v674, %v701
      %v703 = vpop.f32.mrf.mxu0
      %704 = vdwg.mxu0
      %v705 = vtanh.pop %v687
      %v706 = vtanh.pop %v689
      %v707 = vtanh.pop %v692
      %v708 = vtanh.pop %v694
      %v709 = vtanh.pop %v697
      %v710 = vtanh.pop %v699
      %v711 = vtanh.pop %v702
      %vm712 = vcmask 31744
      %713 = vst.msk [vmem:[%s148] sm:$0xff] %vm712, %v705
      %714 = vst.msk [vmem:[%s148 + $0x8] sm:$0xff] %vm712, %v706
      %715 = vst.msk [vmem:[%s148 + $0x10] sm:$0xff] %vm712, %v707
      %716 = vst.msk [vmem:[%s148 + $0x18] sm:$0xff] %vm712, %v708
      %717 = vst.msk [vmem:[%s148 + $0x20] sm:$0xff] %vm712, %v709
      %718 = vst.msk [vmem:[%s148 + $0x28] sm:$0xff] %vm712, %v710
      %719 = vst.msk [vmem:[%s148 + $0x30] sm:$0xff] %vm712, %v711
      %s720 = smul.u32 7, %s13
      %p721 = scmp.lt.s32.totalorder %s720, 48
      %s722 = scalar_select %p721, %s720, 48
      %s723 = smul.addr %s722, 8
      %s724 = scalar_lea.vmem %s2, %s723
      // Predicated region
      $region29: #{generator_forward.7} parent=27 // pred_check
        %p725 = pneg %p78
      $region30: #{generator_forward.7} parent=27 // pred_check_branch
        %727 = sbr.rel (%p725) target = $region32
      $region31: #{generator_forward.7} parent=27 // pred_region
        %s728 = smul.u32 7, %s13
      $region32: #{generator_forward.7} parent=27 // pred_fallthru
        _
    $region28: #{generator_forward.7} parent=5 // pred_fallthru
      _
    %p729 = scmp.le.s32.totalorder 2, %s8
    // Predicated region
    $region33: #{generator_forward.7} parent=5 // pred_check
      %p730 = pneg %p729
    $region34: #{generator_forward.7} parent=5 // pred_check_branch
      %732 = sbr.rel (%p730) target = $region36
    $region35: #{generator_forward.7} parent=5 // pred_region
      %s733 = ssub.s32 %s8, 2
      // Predicated region
      $region37: #{generator_forward.7} parent=35 // pred_check
        %p734 = pneg %p84
      $region38: #{generator_forward.7} parent=35 // pred_check_branch
        %736 = sbr.rel (%p734) target = $region40
      $region39: #{generator_forward.7} parent=35 // pred_region
        %s737 = smul.u32 7, %s14
        %p738 = scmp.lt.s32.totalorder %s737, 48
        %s739 = scalar_select %p738, %s737, 48
        %s740 = smul.addr %s739, 8
        %s741 = scalar_lea.vmem %s2, %s740
      $region40: #{generator_forward.7} parent=35 // pred_fallthru
        _
    $region36: #{generator_forward.7} parent=5 // pred_fallthru
      _
  $region6: #{generator_forward.7} parent=0 // loop_footer
    %s12 = sadd.s32 1, %s8
  $region7: #{generator_forward.7} parent=0 // loop_footer_branch
    %7 = sbr.rel target = $region3
  $region8: #{generator_forward.7} parent=0 // loop_exit
    _

</llo_original>
